<compile_context>
chip_gen: v7x
topology: tpu7x:2x2x1
jax: 0.10.0
libtpu: 0.0.40
codegen_flags: <defaults>
</compile_context>

<pallas_src>
import numpy as np

import jax
import jax.numpy as jnp
from jax import lax
from jax.experimental import pallas as pl
from jax.experimental.pallas import tpu as pltpu

N_IN_CHANNELS = 1
N_OUT_CLASSES = 7          # len(classes) in the reference script
BLOCK_N = 128              # max batch tile per grid step (multiple of 8)


# ----------------------------------------------------------------------------
# Fused Pallas kernel: one batch tile of `bn` images end-to-end.
#
# Row layout of every conv-stage tensor: rows = (image, height) with a fixed
# power-of-two height slab per image (32 / 16 / 8 rows), so strided sublane
# reads never cross image boundaries; the last few rows of each slab carry
# don't-care values that never feed a valid output.  Lanes = (width, channel).
# ----------------------------------------------------------------------------
def _lenet_kernel(x_ref,
                  w1e_ref, w1o_ref, b1_ref,
                  w2e_ref, w2o_ref, b2_ref,
                  f1w_ref, f1b_ref, f2w_ref, f2b_ref, f3w_ref, f3b_ref,
                  o_ref,
                  x_s, z1_s, h1_s, z2_s, h2_s):
    f32 = jnp.float32
    bf16 = jnp.bfloat16
    bn = o_ref.shape[0]
    r1 = bn * 32           # conv1 rows  (h = 0..31, valid 0..27)
    r2 = bn * 16           # conv2 rows  (h = 0..15, valid 0..13 in / 0..9 out)
    r3 = bn * 8            # pooled-2 rows (h = 0..7, valid 0..4)

    # Stage the input into a sublane-padded scratch so each conv kernel-row
    # offset is a plain contiguous slice (no one-hot gathers, no reshapes).
    x_s[0:r1, :] = x_ref[...]
    x_s[r1:r1 + 8, :] = jnp.zeros((8, x_s.shape[1]), f32)

    # ---- conv1 + bias + ReLU, with the W-half of the 2x2 max-pool folded
    #      into precomputed even/odd banded weights (pool-W / +bias / ReLU
    #      commute because ReLU is monotone and the bias is column-constant).
    acc_e = acc_o = None
    for i in range(5):
        xi = x_s[pl.ds(i, r1), :].astype(bf16)                    # rows h+i
        de = jnp.dot(xi, w1e_ref[i], preferred_element_type=f32)  # (r1, 84)
        do = jnp.dot(xi, w1o_ref[i], preferred_element_type=f32)
        acc_e = de if acc_e is None else acc_e + de
        acc_o = do if acc_o is None else acc_o + do
    z1_s[...] = jnp.maximum(jnp.maximum(acc_e, acc_o) + b1_ref[...], 0.0)

    # ---- H-half of pool1: strided sublane reads (rows 2k vs 2k+1) + max.
    h1 = jnp.maximum(z1_s[pl.ds(0, r2, 2), :], z1_s[pl.ds(1, r2, 2), :])
    h1_s[0:r2, :] = h1                                            # (r2, 84)
    h1_s[r2:r2 + 8, :] = jnp.zeros((8, h1_s.shape[1]), f32)

    # ---- conv2 + bias + ReLU (+ W-half of pool2 via even/odd weights); the
    #      kernel-row offsets are again plain offset slices of the scratch.
    acc_e = acc_o = None
    for i in range(5):
        hi = h1_s[pl.ds(i, r2), :].astype(bf16)
        de = jnp.dot(hi, w2e_ref[i], preferred_element_type=f32)  # (r2, 80)
        do = jnp.dot(hi, w2o_ref[i], preferred_element_type=f32)
        acc_e = de if acc_e is None else acc_e + de
        acc_o = do if acc_o is None else acc_o + do
    z2_s[...] = jnp.maximum(jnp.maximum(acc_e, acc_o) + b2_ref[...], 0.0)

    # ---- H-half of pool2.
    h2_s[...] = jnp.maximum(z2_s[pl.ds(0, r3, 2), :],
                            z2_s[pl.ds(1, r3, 2), :])             # (r3, 80)

    # ---- fc1: per-pooled-height stride-8 row gather (the torch flatten),
    #      accumulated over 5 matmuls against height-blocked padded weights.
    acc = None
    for h in range(5):
        sh = h2_s[pl.ds(h, bn, 8), :].astype(bf16)                # (bn, 80)
        d = jnp.dot(sh, f1w_ref[h], preferred_element_type=f32)   # (bn, 128)
        acc = d if acc is None else acc + d
    y = jnp.maximum(acc + f1b_ref[...], 0.0).astype(bf16)

    # ---- fc2 / fc3, both padded to 128 lanes -> lane-dense HBM store.
    y = jnp.maximum(jnp.dot(y, f2w_ref[...], preferred_element_type=f32)
                    + f2b_ref[...], 0.0).astype(bf16)
    y = jnp.dot(y, f3w_ref[...], preferred_element_type=f32) + f3b_ref[...]
    o_ref[...] = y.astype(o_ref.dtype)                            # (bn, 128)


# ----------------------------------------------------------------------------
# One-time parameter preparation (torch-layout params -> kernel layout).
# ----------------------------------------------------------------------------
def prepare_params(params, dtype=jnp.bfloat16):
    w1 = np.asarray(params["conv1_w"], np.float32)   # (6, 1, 5, 5)
    b1 = np.asarray(params["conv1_b"], np.float32)
    w2 = np.asarray(params["conv2_w"], np.float32)   # (16, 6, 5, 5)
    b2 = np.asarray(params["conv2_b"], np.float32)
    f1 = np.asarray(params["fc1_w"], np.float32)     # (120, 400) torch (out, in)
    f1b = np.asarray(params["fc1_b"], np.float32)
    f2 = np.asarray(params["fc2_w"], np.float32)     # (84, 120)
    f2b = np.asarray(params["fc2_b"], np.float32)
    f3 = np.asarray(params["fc3_w"], np.float32)     # (7, 84)
    f3b = np.asarray(params["fc3_b"], np.float32)

    # conv1 banded-over-W weights: a1[i, w_in, wo, co] = w1[co, 0, i, w_in-wo].
    # Even / odd output columns implement the W half of the 2x2 max-pool.
    a1 = np.zeros((5, 32, 28, 6), np.float32)
    for i in range(5):
        for j in range(5):
            for wo in range(28):
                a1[i, wo + j, wo, :] = w1[:, 0, i, j]
    w1e = a1[:, :, 0::2, :].reshape(5, 32, 84)
    w1o = a1[:, :, 1::2, :].reshape(5, 32, 84)
    b1row = np.tile(b1, 14).reshape(1, 84)           # lane = wp*6 + c

    # conv2 banded weights: a2[i, (w_in, c), (wo, co)] = w2[co, c, i, w_in-wo].
    a2 = np.zeros((5, 14, 6, 10, 16), np.float32)
    for i in range(5):
        for j in range(5):
            for wo in range(10):
                a2[i, wo + j, :, wo, :] = w2[:, :, i, j].T
    a2 = a2.reshape(5, 84, 10, 16)
    w2e = a2[:, :, 0::2, :].reshape(5, 84, 80)
    w2o = a2[:, :, 1::2, :].reshape(5, 84, 80)
    b2row = np.tile(b2, 5).reshape(1, 80)             # lane = wp2*16 + co

    # fc1: regroup torch's (c, h, w) flatten into per-height (w, c) slabs and
    # pad the 120 outputs to 128 lanes.
    f1hw = f1.reshape(120, 16, 5, 5).transpose(2, 3, 1, 0).reshape(5, 80, 120)
    f1w = np.zeros((5, 80, 128), np.float32)
    f1w[..., :120] = f1hw
    f1brow = np.zeros((1, 128), np.float32)
    f1brow[0, :120] = f1b

    f2w = np.zeros((128, 128), np.float32)
    f2w[:120, :84] = f2.T
    f2brow = np.zeros((1, 128), np.float32)
    f2brow[0, :84] = f2b

    f3w = np.zeros((128, 128), np.float32)
    f3w[:84, :N_OUT_CLASSES] = f3.T
    f3brow = np.zeros((1, 128), np.float32)
    f3brow[0, :N_OUT_CLASSES] = f3b

    jb = lambda a: jnp.asarray(a, dtype)              # bf16 MXU operands
    jf = lambda a: jnp.asarray(a, jnp.float32)        # f32 bias rows
    return {
        "w1e": jb(w1e), "w1o": jb(w1o), "b1": jf(b1row),
        "w2e": jb(w2e), "w2o": jb(w2o), "b2": jf(b2row),
        "f1w": jb(f1w), "f1b": jf(f1brow),
        "f2w": jb(f2w), "f2b": jf(f2brow),
        "f3w": jb(f3w), "f3b": jf(f3brow),
    }


def _pick_block_n(n, max_block=BLOCK_N):
    n8 = max(8, ((n + 7) // 8) * 8)
    bn = min(max_block, n8)
    # Keep >= 2 grid steps when the batch allows it (v7x has 2 TensorCores).
    if n8 >= 16 and bn == n8:
        bn = max(8, (n8 // 16) * 8)
    return bn


def _cost_estimate(n_pad, bn, prep):
    r1, r2 = bn * 32, bn * 16
    flops_step = 2 * (
        10 * r1 * 32 * 84          # conv1: 5 offsets x even/odd banded matmuls
        + 10 * r2 * 84 * 80        # conv2
        + 5 * bn * 80 * 128        # fc1 (height-blocked)
        + bn * 128 * 128           # fc2 (padded)
        + bn * 128 * 128)          # fc3 (padded)
    flops = (n_pad // bn) * flops_step
    bytes_acc = n_pad * 32 * 32 * 4 + n_pad * 128 * 4
    bytes_acc += sum(int(v.size) * v.dtype.itemsize for v in prep.values())
    return int(flops), int(bytes_acc)


# ----------------------------------------------------------------------------
# Wrapper: one fused pallas_call over batch tiles.
# ----------------------------------------------------------------------------
def lenet_forward(prep, x, *, block_n=None):
    n = x.shape[0]
    if block_n is None:
        block_n = _pick_block_n(n)
    xs = x.reshape(n, 32, 32).astype(jnp.float32)
    n_pad = pl.cdiv(n, block_n) * block_n
    if n_pad != n:
        xs = jnp.concatenate(
            [xs, jnp.zeros((n_pad - n, 32, 32), jnp.float32)], axis=0)
    # Row-major (image, height) rows; free metadata reshape, no unfold.
    x2d = xs.reshape(n_pad * 32, 32)

    def const_spec(arr):
        nd = arr.ndim

        def imap(m):
            return (0,) * nd
        return pl.BlockSpec(arr.shape, imap)

    in_specs = [
        pl.BlockSpec((block_n * 32, 32), lambda m: (m, 0)),
        const_spec(prep["w1e"]), const_spec(prep["w1o"]), const_spec(prep["b1"]),
        const_spec(prep["w2e"]), const_spec(prep["w2o"]), const_spec(prep["b2"]),
        const_spec(prep["f1w"]), const_spec(prep["f1b"]),
        const_spec(prep["f2w"]), const_spec(prep["f2b"]),
        const_spec(prep["f3w"]), const_spec(prep["f3b"]),
    ]
    out_spec = pl.BlockSpec((block_n, 128), lambda m: (m, 0))

    scratch_shapes = [
        pltpu.VMEM((block_n * 32 + 8, 32), jnp.float32),   # staged input (+pad)
        pltpu.VMEM((block_n * 32, 84), jnp.float32),       # conv1 post-ReLU
        pltpu.VMEM((block_n * 16 + 8, 84), jnp.float32),   # pooled conv1 (+pad)
        pltpu.VMEM((block_n * 16, 80), jnp.float32),       # conv2 post-ReLU
        pltpu.VMEM((block_n * 8, 80), jnp.float32),        # pooled conv2
    ]

    flops, bytes_acc = _cost_estimate(n_pad, block_n, prep)

    out = pl.pallas_call(
        _lenet_kernel,
        out_shape=jax.ShapeDtypeStruct((n_pad, 128), jnp.float32),
        grid_spec=pltpu.PrefetchScalarGridSpec(
            num_scalar_prefetch=0,
            grid=(n_pad // block_n,),
            in_specs=in_specs,
            out_specs=out_spec,
            scratch_shapes=scratch_shapes),
        compiler_params=pltpu.CompilerParams(
            dimension_semantics=("parallel",),
            vmem_limit_bytes=32 * 1024 * 1024),
        cost_estimate=pl.CostEstimate(flops=flops, transcendentals=0,
                                      bytes_accessed=bytes_acc),
    )(x2d, prep["w1e"], prep["w1o"], prep["b1"],
      prep["w2e"], prep["w2o"], prep["b2"],
      prep["f1w"], prep["f1b"], prep["f2w"], prep["f2b"],
      prep["f3w"], prep["f3b"])

    return out[:n, :N_OUT_CLASSES]


# ----------------------------------------------------------------------------
# Deterministic torch-layout parameters + plain-JAX reference (for validation).
# ----------------------------------------------------------------------------
def init_params(key):
    ks = jax.random.split(key, 10)
    scale = 0.05

    def rnd(k, shape):
        return scale * jax.random.normal(k, shape, dtype=jnp.float32)

    return {
        "conv1_w": rnd(ks[0], (6, N_IN_CHANNELS, 5, 5)),
        "conv1_b": rnd(ks[1], (6,)),
        "conv2_w": rnd(ks[2], (16, 6, 5, 5)),
        "conv2_b": rnd(ks[3], (16,)),
        "fc1_w": rnd(ks[4], (120, 16 * 5 * 5)),
        "fc1_b": rnd(ks[5], (120,)),
        "fc2_w": rnd(ks[6], (84, 120)),
        "fc2_b": rnd(ks[7], (84,)),
        "fc3_w": rnd(ks[8], (N_OUT_CLASSES, 84)),
        "fc3_b": rnd(ks[9], (N_OUT_CLASSES,)),
    }


def net_forward_reference(params, x):
    dn = ("NCHW", "OIHW", "NCHW")
    y = lax.conv_general_dilated(x, params["conv1_w"], (1, 1), "VALID",
                                 dimension_numbers=dn)
    y = jax.nn.relu(y + params["conv1_b"][None, :, None, None])
    y = lax.reduce_window(y, -jnp.inf, lax.max, (1, 1, 2, 2), (1, 1, 2, 2), "VALID")
    y = lax.conv_general_dilated(y, params["conv2_w"], (1, 1), "VALID",
                                 dimension_numbers=dn)
    y = jax.nn.relu(y + params["conv2_b"][None, :, None, None])
    y = lax.reduce_window(y, -jnp.inf, lax.max, (1, 1, 2, 2), (1, 1, 2, 2), "VALID")
    y = y.reshape(y.shape[0], -1)                     # torch flatten: (c, h, w)
    y = jax.nn.relu(y @ params["fc1_w"].T + params["fc1_b"])
    y = jax.nn.relu(y @ params["fc2_w"].T + params["fc2_b"])
    return y @ params["fc3_w"].T + params["fc3_b"]


if __name__ == "__main__":
    key = jax.random.PRNGKey(0)
    pkey, xkey = jax.random.split(key)
    params = init_params(pkey)
    # Input must be 32x32 so that 16*5*5 = 400 features reach fc1.
    x = jax.random.normal(xkey, (2, N_IN_CHANNELS, 32, 32), dtype=jnp.float32)

    prep = prepare_params(params)                     # one-time weight prep
    fwd = jax.jit(lenet_forward)

    logits = jax.block_until_ready(fwd(prep, x))
    ref = jax.block_until_ready(net_forward_reference(params, x))

    assert logits.shape == (2, N_OUT_CLASSES)
    assert bool(jnp.all(jnp.isfinite(logits)))
    assert bool(jnp.allclose(logits, ref, atol=1e-2, rtol=1e-1))
    print("KERNEL_OK")
</pallas_src>

<mosaic_0001>
module attributes {stable_mosaic.version = 11 : i64} {
  func.func @_lenet_kernel(%arg0: i32, %arg1: memref<256x32xf32, #tpu.memory_space<vmem>>, %arg2: memref<5x32x84xbf16, #tpu.memory_space<vmem>>, %arg3: memref<5x32x84xbf16, #tpu.memory_space<vmem>>, %arg4: memref<1x84xf32, #tpu.memory_space<vmem>>, %arg5: memref<5x84x80xbf16, #tpu.memory_space<vmem>>, %arg6: memref<5x84x80xbf16, #tpu.memory_space<vmem>>, %arg7: memref<1x80xf32, #tpu.memory_space<vmem>>, %arg8: memref<5x80x128xbf16, #tpu.memory_space<vmem>>, %arg9: memref<1x128xf32, #tpu.memory_space<vmem>>, %arg10: memref<128x128xbf16, #tpu.memory_space<vmem>>, %arg11: memref<1x128xf32, #tpu.memory_space<vmem>>, %arg12: memref<128x128xbf16, #tpu.memory_space<vmem>>, %arg13: memref<1x128xf32, #tpu.memory_space<vmem>>, %arg14: memref<8x128xf32, #tpu.memory_space<vmem>>, %arg15: memref<264x32xf32, #tpu.memory_space<vmem>>, %arg16: memref<256x84xf32, #tpu.memory_space<vmem>>, %arg17: memref<136x84xf32, #tpu.memory_space<vmem>>, %arg18: memref<128x80xf32, #tpu.memory_space<vmem>>, %arg19: memref<64x80xf32, #tpu.memory_space<vmem>>) attributes {dimension_semantics = [#tpu.dimension_semantics<parallel>], iteration_bounds = array<i64: 1>, scalar_prefetch = 0 : i64, scratch_operands = 5 : i64, tpu.core_type = #tpu.core_type<tc>, window_params = [{transform_indices = @transform_0, window_bounds = array<i64: 256, 32>}, {pipeline_mode = #tpu.pipeline_mode<synchronous>, transform_indices = @transform_1, window_bounds = array<i64: 5, 32, 84>}, {pipeline_mode = #tpu.pipeline_mode<synchronous>, transform_indices = @transform_2, window_bounds = array<i64: 5, 32, 84>}, {pipeline_mode = #tpu.pipeline_mode<synchronous>, transform_indices = @transform_3, window_bounds = array<i64: 1, 84>}, {pipeline_mode = #tpu.pipeline_mode<synchronous>, transform_indices = @transform_4, window_bounds = array<i64: 5, 84, 80>}, {pipeline_mode = #tpu.pipeline_mode<synchronous>, transform_indices = @transform_5, window_bounds = array<i64: 5, 84, 80>}, {pipeline_mode = #tpu.pipeline_mode<synchronous>, transform_indices = @transform_6, window_bounds = array<i64: 1, 80>}, {pipeline_mode = #tpu.pipeline_mode<synchronous>, transform_indices = @transform_7, window_bounds = array<i64: 5, 80, 128>}, {pipeline_mode = #tpu.pipeline_mode<synchronous>, transform_indices = @transform_8, window_bounds = array<i64: 1, 128>}, {pipeline_mode = #tpu.pipeline_mode<synchronous>, transform_indices = @transform_9, window_bounds = array<i64: 128, 128>}, {pipeline_mode = #tpu.pipeline_mode<synchronous>, transform_indices = @transform_10, window_bounds = array<i64: 1, 128>}, {pipeline_mode = #tpu.pipeline_mode<synchronous>, transform_indices = @transform_11, window_bounds = array<i64: 128, 128>}, {pipeline_mode = #tpu.pipeline_mode<synchronous>, transform_indices = @transform_12, window_bounds = array<i64: 1, 128>}, {transform_indices = @transform_13, window_bounds = array<i64: 8, 128>}]} {
    %c0 = arith.constant 0 : index
    %c0_0 = arith.constant 0 : index
    %0 = vector.load %arg1[%c0, %c0_0] : memref<256x32xf32, #tpu.memory_space<vmem>>, vector<256x32xf32>
    %c0_1 = arith.constant 0 : index
    %c0_2 = arith.constant 0 : index
    %1 = vector.load %arg15[%c0_1, %c0_2] : memref<264x32xf32, #tpu.memory_space<vmem>>, vector<256x32xf32>
    tpu.vector_store %arg15[%c0_1, %c0_2], %0 {strides = array<i32>} : memref<264x32xf32, #tpu.memory_space<vmem>>, vector<256x32xf32>,
    %cst = arith.constant 0.000000e+00 : f32
    %2 = vector.broadcast %cst : f32 to vector<8x32xf32>
    %c256 = arith.constant 256 : index
    %c0_3 = arith.constant 0 : index
    %3 = vector.load %arg15[%c256, %c0_3] : memref<264x32xf32, #tpu.memory_space<vmem>>, vector<8x32xf32>
    tpu.vector_store %arg15[%c256, %c0_3], %2 {strides = array<i32>} : memref<264x32xf32, #tpu.memory_space<vmem>>, vector<8x32xf32>,
    %c0_4 = arith.constant 0 : index
    %c0_5 = arith.constant 0 : index
    %4 = vector.load %arg15[%c0_4, %c0_5] : memref<264x32xf32, #tpu.memory_space<vmem>>, vector<256x32xf32>
    %5 = arith.truncf %4 : vector<256x32xf32> to vector<256x32xbf16>
    %c0_6 = arith.constant 0 : index
    %c0_7 = arith.constant 0 : index
    %c0_8 = arith.constant 0 : index
    %6 = vector.load %arg2[%c0_6, %c0_7, %c0_8] : memref<5x32x84xbf16, #tpu.memory_space<vmem>>, vector<1x32x84xbf16>
    %7 = vector.shape_cast %6 : vector<1x32x84xbf16> to vector<32x84xbf16>
    %cst_9 = arith.constant dense<0.000000e+00> : vector<256x84xf32>
    %8 = tpu.matmul %5, %7, %cst_9 {dimension_numbers = #tpu.dot_dimension_numbers<[1], [0], [0], [1], [0, 0, 1, 1], [], []>} : vector<256x32xbf16>, vector<32x84xbf16>, vector<256x84xf32> -> vector<256x84xf32>
    %c0_10 = arith.constant 0 : index
    %c0_11 = arith.constant 0 : index
    %c0_12 = arith.constant 0 : index
    %9 = vector.load %arg3[%c0_10, %c0_11, %c0_12] : memref<5x32x84xbf16, #tpu.memory_space<vmem>>, vector<1x32x84xbf16>
    %10 = vector.shape_cast %9 : vector<1x32x84xbf16> to vector<32x84xbf16>
    %cst_13 = arith.constant dense<0.000000e+00> : vector<256x84xf32>
    %11 = tpu.matmul %5, %10, %cst_13 {dimension_numbers = #tpu.dot_dimension_numbers<[1], [0], [0], [1], [0, 0, 1, 1], [], []>} : vector<256x32xbf16>, vector<32x84xbf16>, vector<256x84xf32> -> vector<256x84xf32>
    %c1 = arith.constant 1 : index
    %c0_14 = arith.constant 0 : index
    %12 = vector.load %arg15[%c1, %c0_14] : memref<264x32xf32, #tpu.memory_space<vmem>>, vector<256x32xf32>
    %13 = arith.truncf %12 : vector<256x32xf32> to vector<256x32xbf16>
    %c1_15 = arith.constant 1 : index
    %c0_16 = arith.constant 0 : index
    %c0_17 = arith.constant 0 : index
    %14 = vector.load %arg2[%c1_15, %c0_16, %c0_17] : memref<5x32x84xbf16, #tpu.memory_space<vmem>>, vector<1x32x84xbf16>
    %15 = vector.shape_cast %14 : vector<1x32x84xbf16> to vector<32x84xbf16>
    %cst_18 = arith.constant dense<0.000000e+00> : vector<256x84xf32>
    %16 = tpu.matmul %13, %15, %cst_18 {dimension_numbers = #tpu.dot_dimension_numbers<[1], [0], [0], [1], [0, 0, 1, 1], [], []>} : vector<256x32xbf16>, vector<32x84xbf16>, vector<256x84xf32> -> vector<256x84xf32>
    %c1_19 = arith.constant 1 : index
    %c0_20 = arith.constant 0 : index
    %c0_21 = arith.constant 0 : index
    %17 = vector.load %arg3[%c1_19, %c0_20, %c0_21] : memref<5x32x84xbf16, #tpu.memory_space<vmem>>, vector<1x32x84xbf16>
    %18 = vector.shape_cast %17 : vector<1x32x84xbf16> to vector<32x84xbf16>
    %cst_22 = arith.constant dense<0.000000e+00> : vector<256x84xf32>
    %19 = tpu.matmul %13, %18, %cst_22 {dimension_numbers = #tpu.dot_dimension_numbers<[1], [0], [0], [1], [0, 0, 1, 1], [], []>} : vector<256x32xbf16>, vector<32x84xbf16>, vector<256x84xf32> -> vector<256x84xf32>
    %20 = arith.addf %8, %16 : vector<256x84xf32>
    %21 = arith.addf %11, %19 : vector<256x84xf32>
    %c2 = arith.constant 2 : index
    %c0_23 = arith.constant 0 : index
    %22 = vector.load %arg15[%c2, %c0_23] : memref<264x32xf32, #tpu.memory_space<vmem>>, vector<256x32xf32>
    %23 = arith.truncf %22 : vector<256x32xf32> to vector<256x32xbf16>
    %c2_24 = arith.constant 2 : index
    %c0_25 = arith.constant 0 : index
    %c0_26 = arith.constant 0 : index
    %24 = vector.load %arg2[%c2_24, %c0_25, %c0_26] : memref<5x32x84xbf16, #tpu.memory_space<vmem>>, vector<1x32x84xbf16>
    %25 = vector.shape_cast %24 : vector<1x32x84xbf16> to vector<32x84xbf16>
    %cst_27 = arith.constant dense<0.000000e+00> : vector<256x84xf32>
    %26 = tpu.matmul %23, %25, %cst_27 {dimension_numbers = #tpu.dot_dimension_numbers<[1], [0], [0], [1], [0, 0, 1, 1], [], []>} : vector<256x32xbf16>, vector<32x84xbf16>, vector<256x84xf32> -> vector<256x84xf32>
    %c2_28 = arith.constant 2 : index
    %c0_29 = arith.constant 0 : index
    %c0_30 = arith.constant 0 : index
    %27 = vector.load %arg3[%c2_28, %c0_29, %c0_30] : memref<5x32x84xbf16, #tpu.memory_space<vmem>>, vector<1x32x84xbf16>
    %28 = vector.shape_cast %27 : vector<1x32x84xbf16> to vector<32x84xbf16>
    %cst_31 = arith.constant dense<0.000000e+00> : vector<256x84xf32>
    %29 = tpu.matmul %23, %28, %cst_31 {dimension_numbers = #tpu.dot_dimension_numbers<[1], [0], [0], [1], [0, 0, 1, 1], [], []>} : vector<256x32xbf16>, vector<32x84xbf16>, vector<256x84xf32> -> vector<256x84xf32>
    %30 = arith.addf %20, %26 : vector<256x84xf32>
    %31 = arith.addf %21, %29 : vector<256x84xf32>
    %c3 = arith.constant 3 : index
    %c0_32 = arith.constant 0 : index
    %32 = vector.load %arg15[%c3, %c0_32] : memref<264x32xf32, #tpu.memory_space<vmem>>, vector<256x32xf32>
    %33 = arith.truncf %32 : vector<256x32xf32> to vector<256x32xbf16>
    %c3_33 = arith.constant 3 : index
    %c0_34 = arith.constant 0 : index
    %c0_35 = arith.constant 0 : index
    %34 = vector.load %arg2[%c3_33, %c0_34, %c0_35] : memref<5x32x84xbf16, #tpu.memory_space<vmem>>, vector<1x32x84xbf16>
    %35 = vector.shape_cast %34 : vector<1x32x84xbf16> to vector<32x84xbf16>
    %cst_36 = arith.constant dense<0.000000e+00> : vector<256x84xf32>
    %36 = tpu.matmul %33, %35, %cst_36 {dimension_numbers = #tpu.dot_dimension_numbers<[1], [0], [0], [1], [0, 0, 1, 1], [], []>} : vector<256x32xbf16>, vector<32x84xbf16>, vector<256x84xf32> -> vector<256x84xf32>
    %c3_37 = arith.constant 3 : index
    %c0_38 = arith.constant 0 : index
    %c0_39 = arith.constant 0 : index
    %37 = vector.load %arg3[%c3_37, %c0_38, %c0_39] : memref<5x32x84xbf16, #tpu.memory_space<vmem>>, vector<1x32x84xbf16>
    %38 = vector.shape_cast %37 : vector<1x32x84xbf16> to vector<32x84xbf16>
    %cst_40 = arith.constant dense<0.000000e+00> : vector<256x84xf32>
    %39 = tpu.matmul %33, %38, %cst_40 {dimension_numbers = #tpu.dot_dimension_numbers<[1], [0], [0], [1], [0, 0, 1, 1], [], []>} : vector<256x32xbf16>, vector<32x84xbf16>, vector<256x84xf32> -> vector<256x84xf32>
    %40 = arith.addf %30, %36 : vector<256x84xf32>
    %41 = arith.addf %31, %39 : vector<256x84xf32>
    %c4 = arith.constant 4 : index
    %c0_41 = arith.constant 0 : index
    %42 = vector.load %arg15[%c4, %c0_41] : memref<264x32xf32, #tpu.memory_space<vmem>>, vector<256x32xf32>
    %43 = arith.truncf %42 : vector<256x32xf32> to vector<256x32xbf16>
    %c4_42 = arith.constant 4 : index
    %c0_43 = arith.constant 0 : index
    %c0_44 = arith.constant 0 : index
    %44 = vector.load %arg2[%c4_42, %c0_43, %c0_44] : memref<5x32x84xbf16, #tpu.memory_space<vmem>>, vector<1x32x84xbf16>
    %45 = vector.shape_cast %44 : vector<1x32x84xbf16> to vector<32x84xbf16>
    %cst_45 = arith.constant dense<0.000000e+00> : vector<256x84xf32>
    %46 = tpu.matmul %43, %45, %cst_45 {dimension_numbers = #tpu.dot_dimension_numbers<[1], [0], [0], [1], [0, 0, 1, 1], [], []>} : vector<256x32xbf16>, vector<32x84xbf16>, vector<256x84xf32> -> vector<256x84xf32>
    %c4_46 = arith.constant 4 : index
    %c0_47 = arith.constant 0 : index
    %c0_48 = arith.constant 0 : index
    %47 = vector.load %arg3[%c4_46, %c0_47, %c0_48] : memref<5x32x84xbf16, #tpu.memory_space<vmem>>, vector<1x32x84xbf16>
    %48 = vector.shape_cast %47 : vector<1x32x84xbf16> to vector<32x84xbf16>
    %cst_49 = arith.constant dense<0.000000e+00> : vector<256x84xf32>
    %49 = tpu.matmul %43, %48, %cst_49 {dimension_numbers = #tpu.dot_dimension_numbers<[1], [0], [0], [1], [0, 0, 1, 1], [], []>} : vector<256x32xbf16>, vector<32x84xbf16>, vector<256x84xf32> -> vector<256x84xf32>
    %50 = arith.addf %40, %46 : vector<256x84xf32>
    %51 = arith.addf %41, %49 : vector<256x84xf32>
    %52 = arith.maximumf %50, %51 : vector<256x84xf32>
    %c0_50 = arith.constant 0 : index
    %c0_51 = arith.constant 0 : index
    %53 = vector.load %arg4[%c0_50, %c0_51] : memref<1x84xf32, #tpu.memory_space<vmem>>, vector<1x84xf32>
    %54 = vector.broadcast %53 : vector<1x84xf32> to vector<256x84xf32>
    %55 = arith.addf %52, %54 : vector<256x84xf32>
    %cst_52 = arith.constant 0.000000e+00 : f32
    %56 = vector.broadcast %cst_52 : f32 to vector<256x84xf32>
    %57 = arith.maximumf %55, %56 : vector<256x84xf32>
    %c0_53 = arith.constant 0 : index
    %c0_54 = arith.constant 0 : index
    %58 = vector.load %arg16[%c0_53, %c0_54] : memref<256x84xf32, #tpu.memory_space<vmem>>, vector<256x84xf32>
    tpu.vector_store %arg16[%c0_53, %c0_54], %57 {strides = array<i32>} : memref<256x84xf32, #tpu.memory_space<vmem>>, vector<256x84xf32>,
    %c0_55 = arith.constant 0 : index
    %c0_56 = arith.constant 0 : index
    %59 = tpu.strided_load %arg16[%c0_55, %c0_56] {strides = array<i32: 2, 1>} : memref<256x84xf32, #tpu.memory_space<vmem>>, vector<128x84xf32>
    %c1_57 = arith.constant 1 : index
    %c0_58 = arith.constant 0 : index
    %60 = tpu.strided_load %arg16[%c1_57, %c0_58] {strides = array<i32: 2, 1>} : memref<256x84xf32, #tpu.memory_space<vmem>>, vector<128x84xf32>
    %61 = arith.maximumf %59, %60 : vector<128x84xf32>
    %c0_59 = arith.constant 0 : index
    %c0_60 = arith.constant 0 : index
    %62 = vector.load %arg17[%c0_59, %c0_60] : memref<136x84xf32, #tpu.memory_space<vmem>>, vector<128x84xf32>
    tpu.vector_store %arg17[%c0_59, %c0_60], %61 {strides = array<i32>} : memref<136x84xf32, #tpu.memory_space<vmem>>, vector<128x84xf32>,
    %cst_61 = arith.constant 0.000000e+00 : f32
    %63 = vector.broadcast %cst_61 : f32 to vector<8x84xf32>
    %c128 = arith.constant 128 : index
    %c0_62 = arith.constant 0 : index
    %64 = vector.load %arg17[%c128, %c0_62] : memref<136x84xf32, #tpu.memory_space<vmem>>, vector<8x84xf32>
    tpu.vector_store %arg17[%c128, %c0_62], %63 {strides = array<i32>} : memref<136x84xf32, #tpu.memory_space<vmem>>, vector<8x84xf32>,
    %c0_63 = arith.constant 0 : index
    %c0_64 = arith.constant 0 : index
    %65 = vector.load %arg17[%c0_63, %c0_64] : memref<136x84xf32, #tpu.memory_space<vmem>>, vector<128x84xf32>
    %66 = arith.truncf %65 : vector<128x84xf32> to vector<128x84xbf16>
    %c0_65 = arith.constant 0 : index
    %c0_66 = arith.constant 0 : index
    %c0_67 = arith.constant 0 : index
    %67 = vector.load %arg5[%c0_65, %c0_66, %c0_67] : memref<5x84x80xbf16, #tpu.memory_space<vmem>>, vector<1x84x80xbf16>
    %68 = vector.shape_cast %67 : vector<1x84x80xbf16> to vector<84x80xbf16>
    %cst_68 = arith.constant dense<0.000000e+00> : vector<128x80xf32>
    %69 = tpu.matmul %66, %68, %cst_68 {dimension_numbers = #tpu.dot_dimension_numbers<[1], [0], [0], [1], [0, 0, 1, 1], [], []>} : vector<128x84xbf16>, vector<84x80xbf16>, vector<128x80xf32> -> vector<128x80xf32>
    %c0_69 = arith.constant 0 : index
    %c0_70 = arith.constant 0 : index
    %c0_71 = arith.constant 0 : index
    %70 = vector.load %arg6[%c0_69, %c0_70, %c0_71] : memref<5x84x80xbf16, #tpu.memory_space<vmem>>, vector<1x84x80xbf16>
    %71 = vector.shape_cast %70 : vector<1x84x80xbf16> to vector<84x80xbf16>
    %cst_72 = arith.constant dense<0.000000e+00> : vector<128x80xf32>
    %72 = tpu.matmul %66, %71, %cst_72 {dimension_numbers = #tpu.dot_dimension_numbers<[1], [0], [0], [1], [0, 0, 1, 1], [], []>} : vector<128x84xbf16>, vector<84x80xbf16>, vector<128x80xf32> -> vector<128x80xf32>
    %c1_73 = arith.constant 1 : index
    %c0_74 = arith.constant 0 : index
    %73 = vector.load %arg17[%c1_73, %c0_74] : memref<136x84xf32, #tpu.memory_space<vmem>>, vector<128x84xf32>
    %74 = arith.truncf %73 : vector<128x84xf32> to vector<128x84xbf16>
    %c1_75 = arith.constant 1 : index
    %c0_76 = arith.constant 0 : index
    %c0_77 = arith.constant 0 : index
    %75 = vector.load %arg5[%c1_75, %c0_76, %c0_77] : memref<5x84x80xbf16, #tpu.memory_space<vmem>>, vector<1x84x80xbf16>
    %76 = vector.shape_cast %75 : vector<1x84x80xbf16> to vector<84x80xbf16>
    %cst_78 = arith.constant dense<0.000000e+00> : vector<128x80xf32>
    %77 = tpu.matmul %74, %76, %cst_78 {dimension_numbers = #tpu.dot_dimension_numbers<[1], [0], [0], [1], [0, 0, 1, 1], [], []>} : vector<128x84xbf16>, vector<84x80xbf16>, vector<128x80xf32> -> vector<128x80xf32>
    %c1_79 = arith.constant 1 : index
    %c0_80 = arith.constant 0 : index
    %c0_81 = arith.constant 0 : index
    %78 = vector.load %arg6[%c1_79, %c0_80, %c0_81] : memref<5x84x80xbf16, #tpu.memory_space<vmem>>, vector<1x84x80xbf16>
    %79 = vector.shape_cast %78 : vector<1x84x80xbf16> to vector<84x80xbf16>
    %cst_82 = arith.constant dense<0.000000e+00> : vector<128x80xf32>
    %80 = tpu.matmul %74, %79, %cst_82 {dimension_numbers = #tpu.dot_dimension_numbers<[1], [0], [0], [1], [0, 0, 1, 1], [], []>} : vector<128x84xbf16>, vector<84x80xbf16>, vector<128x80xf32> -> vector<128x80xf32>
    %81 = arith.addf %69, %77 : vector<128x80xf32>
    %82 = arith.addf %72, %80 : vector<128x80xf32>
    %c2_83 = arith.constant 2 : index
    %c0_84 = arith.constant 0 : index
    %83 = vector.load %arg17[%c2_83, %c0_84] : memref<136x84xf32, #tpu.memory_space<vmem>>, vector<128x84xf32>
    %84 = arith.truncf %83 : vector<128x84xf32> to vector<128x84xbf16>
    %c2_85 = arith.constant 2 : index
    %c0_86 = arith.constant 0 : index
    %c0_87 = arith.constant 0 : index
    %85 = vector.load %arg5[%c2_85, %c0_86, %c0_87] : memref<5x84x80xbf16, #tpu.memory_space<vmem>>, vector<1x84x80xbf16>
    %86 = vector.shape_cast %85 : vector<1x84x80xbf16> to vector<84x80xbf16>
    %cst_88 = arith.constant dense<0.000000e+00> : vector<128x80xf32>
    %87 = tpu.matmul %84, %86, %cst_88 {dimension_numbers = #tpu.dot_dimension_numbers<[1], [0], [0], [1], [0, 0, 1, 1], [], []>} : vector<128x84xbf16>, vector<84x80xbf16>, vector<128x80xf32> -> vector<128x80xf32>
    %c2_89 = arith.constant 2 : index
    %c0_90 = arith.constant 0 : index
    %c0_91 = arith.constant 0 : index
    %88 = vector.load %arg6[%c2_89, %c0_90, %c0_91] : memref<5x84x80xbf16, #tpu.memory_space<vmem>>, vector<1x84x80xbf16>
    %89 = vector.shape_cast %88 : vector<1x84x80xbf16> to vector<84x80xbf16>
    %cst_92 = arith.constant dense<0.000000e+00> : vector<128x80xf32>
    %90 = tpu.matmul %84, %89, %cst_92 {dimension_numbers = #tpu.dot_dimension_numbers<[1], [0], [0], [1], [0, 0, 1, 1], [], []>} : vector<128x84xbf16>, vector<84x80xbf16>, vector<128x80xf32> -> vector<128x80xf32>
    %91 = arith.addf %81, %87 : vector<128x80xf32>
    %92 = arith.addf %82, %90 : vector<128x80xf32>
    %c3_93 = arith.constant 3 : index
    %c0_94 = arith.constant 0 : index
    %93 = vector.load %arg17[%c3_93, %c0_94] : memref<136x84xf32, #tpu.memory_space<vmem>>, vector<128x84xf32>
    %94 = arith.truncf %93 : vector<128x84xf32> to vector<128x84xbf16>
    %c3_95 = arith.constant 3 : index
    %c0_96 = arith.constant 0 : index
    %c0_97 = arith.constant 0 : index
    %95 = vector.load %arg5[%c3_95, %c0_96, %c0_97] : memref<5x84x80xbf16, #tpu.memory_space<vmem>>, vector<1x84x80xbf16>
    %96 = vector.shape_cast %95 : vector<1x84x80xbf16> to vector<84x80xbf16>
    %cst_98 = arith.constant dense<0.000000e+00> : vector<128x80xf32>
    %97 = tpu.matmul %94, %96, %cst_98 {dimension_numbers = #tpu.dot_dimension_numbers<[1], [0], [0], [1], [0, 0, 1, 1], [], []>} : vector<128x84xbf16>, vector<84x80xbf16>, vector<128x80xf32> -> vector<128x80xf32>
    %c3_99 = arith.constant 3 : index
    %c0_100 = arith.constant 0 : index
    %c0_101 = arith.constant 0 : index
    %98 = vector.load %arg6[%c3_99, %c0_100, %c0_101] : memref<5x84x80xbf16, #tpu.memory_space<vmem>>, vector<1x84x80xbf16>
    %99 = vector.shape_cast %98 : vector<1x84x80xbf16> to vector<84x80xbf16>
    %cst_102 = arith.constant dense<0.000000e+00> : vector<128x80xf32>
    %100 = tpu.matmul %94, %99, %cst_102 {dimension_numbers = #tpu.dot_dimension_numbers<[1], [0], [0], [1], [0, 0, 1, 1], [], []>} : vector<128x84xbf16>, vector<84x80xbf16>, vector<128x80xf32> -> vector<128x80xf32>
    %101 = arith.addf %91, %97 : vector<128x80xf32>
    %102 = arith.addf %92, %100 : vector<128x80xf32>
    %c4_103 = arith.constant 4 : index
    %c0_104 = arith.constant 0 : index
    %103 = vector.load %arg17[%c4_103, %c0_104] : memref<136x84xf32, #tpu.memory_space<vmem>>, vector<128x84xf32>
    %104 = arith.truncf %103 : vector<128x84xf32> to vector<128x84xbf16>
    %c4_105 = arith.constant 4 : index
    %c0_106 = arith.constant 0 : index
    %c0_107 = arith.constant 0 : index
    %105 = vector.load %arg5[%c4_105, %c0_106, %c0_107] : memref<5x84x80xbf16, #tpu.memory_space<vmem>>, vector<1x84x80xbf16>
    %106 = vector.shape_cast %105 : vector<1x84x80xbf16> to vector<84x80xbf16>
    %cst_108 = arith.constant dense<0.000000e+00> : vector<128x80xf32>
    %107 = tpu.matmul %104, %106, %cst_108 {dimension_numbers = #tpu.dot_dimension_numbers<[1], [0], [0], [1], [0, 0, 1, 1], [], []>} : vector<128x84xbf16>, vector<84x80xbf16>, vector<128x80xf32> -> vector<128x80xf32>
    %c4_109 = arith.constant 4 : index
    %c0_110 = arith.constant 0 : index
    %c0_111 = arith.constant 0 : index
    %108 = vector.load %arg6[%c4_109, %c0_110, %c0_111] : memref<5x84x80xbf16, #tpu.memory_space<vmem>>, vector<1x84x80xbf16>
    %109 = vector.shape_cast %108 : vector<1x84x80xbf16> to vector<84x80xbf16>
    %cst_112 = arith.constant dense<0.000000e+00> : vector<128x80xf32>
    %110 = tpu.matmul %104, %109, %cst_112 {dimension_numbers = #tpu.dot_dimension_numbers<[1], [0], [0], [1], [0, 0, 1, 1], [], []>} : vector<128x84xbf16>, vector<84x80xbf16>, vector<128x80xf32> -> vector<128x80xf32>
    %111 = arith.addf %101, %107 : vector<128x80xf32>
    %112 = arith.addf %102, %110 : vector<128x80xf32>
    %113 = arith.maximumf %111, %112 : vector<128x80xf32>
    %c0_113 = arith.constant 0 : index
    %c0_114 = arith.constant 0 : index
    %114 = vector.load %arg7[%c0_113, %c0_114] : memref<1x80xf32, #tpu.memory_space<vmem>>, vector<1x80xf32>
    %115 = vector.broadcast %114 : vector<1x80xf32> to vector<128x80xf32>
    %116 = arith.addf %113, %115 : vector<128x80xf32>
    %cst_115 = arith.constant 0.000000e+00 : f32
    %117 = vector.broadcast %cst_115 : f32 to vector<128x80xf32>
    %118 = arith.maximumf %116, %117 : vector<128x80xf32>
    %c0_116 = arith.constant 0 : index
    %c0_117 = arith.constant 0 : index
    %119 = vector.load %arg18[%c0_116, %c0_117] : memref<128x80xf32, #tpu.memory_space<vmem>>, vector<128x80xf32>
    tpu.vector_store %arg18[%c0_116, %c0_117], %118 {strides = array<i32>} : memref<128x80xf32, #tpu.memory_space<vmem>>, vector<128x80xf32>,
    %c0_118 = arith.constant 0 : index
    %c0_119 = arith.constant 0 : index
    %120 = tpu.strided_load %arg18[%c0_118, %c0_119] {strides = array<i32: 2, 1>} : memref<128x80xf32, #tpu.memory_space<vmem>>, vector<64x80xf32>
    %c1_120 = arith.constant 1 : index
    %c0_121 = arith.constant 0 : index
    %121 = tpu.strided_load %arg18[%c1_120, %c0_121] {strides = array<i32: 2, 1>} : memref<128x80xf32, #tpu.memory_space<vmem>>, vector<64x80xf32>
    %122 = arith.maximumf %120, %121 : vector<64x80xf32>
    %c0_122 = arith.constant 0 : index
    %c0_123 = arith.constant 0 : index
    %123 = vector.load %arg19[%c0_122, %c0_123] : memref<64x80xf32, #tpu.memory_space<vmem>>, vector<64x80xf32>
    tpu.vector_store %arg19[%c0_122, %c0_123], %122 {strides = array<i32>} : memref<64x80xf32, #tpu.memory_space<vmem>>, vector<64x80xf32>,
    %c0_124 = arith.constant 0 : index
    %c0_125 = arith.constant 0 : index
    %124 = tpu.strided_load %arg19[%c0_124, %c0_125] {strides = array<i32: 8, 1>} : memref<64x80xf32, #tpu.memory_space<vmem>>, vector<8x80xf32>
    %125 = arith.truncf %124 : vector<8x80xf32> to vector<8x80xbf16>
    %c0_126 = arith.constant 0 : index
    %c0_127 = arith.constant 0 : index
    %c0_128 = arith.constant 0 : index
    %126 = vector.load %arg8[%c0_126, %c0_127, %c0_128] : memref<5x80x128xbf16, #tpu.memory_space<vmem>>, vector<1x80x128xbf16>
    %127 = vector.shape_cast %126 : vector<1x80x128xbf16> to vector<80x128xbf16>
    %cst_129 = arith.constant dense<0.000000e+00> : vector<8x128xf32>
    %128 = tpu.matmul %125, %127, %cst_129 {dimension_numbers = #tpu.dot_dimension_numbers<[1], [0], [0], [1], [0, 0, 1, 1], [], []>} : vector<8x80xbf16>, vector<80x128xbf16>, vector<8x128xf32> -> vector<8x128xf32>
    %c1_130 = arith.constant 1 : index
    %c0_131 = arith.constant 0 : index
    %129 = tpu.strided_load %arg19[%c1_130, %c0_131] {strides = array<i32: 8, 1>} : memref<64x80xf32, #tpu.memory_space<vmem>>, vector<8x80xf32>
    %130 = arith.truncf %129 : vector<8x80xf32> to vector<8x80xbf16>
    %c1_132 = arith.constant 1 : index
    %c0_133 = arith.constant 0 : index
    %c0_134 = arith.constant 0 : index
    %131 = vector.load %arg8[%c1_132, %c0_133, %c0_134] : memref<5x80x128xbf16, #tpu.memory_space<vmem>>, vector<1x80x128xbf16>
    %132 = vector.shape_cast %131 : vector<1x80x128xbf16> to vector<80x128xbf16>
    %cst_135 = arith.constant dense<0.000000e+00> : vector<8x128xf32>
    %133 = tpu.matmul %130, %132, %cst_135 {dimension_numbers = #tpu.dot_dimension_numbers<[1], [0], [0], [1], [0, 0, 1, 1], [], []>} : vector<8x80xbf16>, vector<80x128xbf16>, vector<8x128xf32> -> vector<8x128xf32>
    %134 = arith.addf %128, %133 : vector<8x128xf32>
    %c2_136 = arith.constant 2 : index
    %c0_137 = arith.constant 0 : index
    %135 = tpu.strided_load %arg19[%c2_136, %c0_137] {strides = array<i32: 8, 1>} : memref<64x80xf32, #tpu.memory_space<vmem>>, vector<8x80xf32>
    %136 = arith.truncf %135 : vector<8x80xf32> to vector<8x80xbf16>
    %c2_138 = arith.constant 2 : index
    %c0_139 = arith.constant 0 : index
    %c0_140 = arith.constant 0 : index
    %137 = vector.load %arg8[%c2_138, %c0_139, %c0_140] : memref<5x80x128xbf16, #tpu.memory_space<vmem>>, vector<1x80x128xbf16>
    %138 = vector.shape_cast %137 : vector<1x80x128xbf16> to vector<80x128xbf16>
    %cst_141 = arith.constant dense<0.000000e+00> : vector<8x128xf32>
    %139 = tpu.matmul %136, %138, %cst_141 {dimension_numbers = #tpu.dot_dimension_numbers<[1], [0], [0], [1], [0, 0, 1, 1], [], []>} : vector<8x80xbf16>, vector<80x128xbf16>, vector<8x128xf32> -> vector<8x128xf32>
    %140 = arith.addf %134, %139 : vector<8x128xf32>
    %c3_142 = arith.constant 3 : index
    %c0_143 = arith.constant 0 : index
    %141 = tpu.strided_load %arg19[%c3_142, %c0_143] {strides = array<i32: 8, 1>} : memref<64x80xf32, #tpu.memory_space<vmem>>, vector<8x80xf32>
    %142 = arith.truncf %141 : vector<8x80xf32> to vector<8x80xbf16>
    %c3_144 = arith.constant 3 : index
    %c0_145 = arith.constant 0 : index
    %c0_146 = arith.constant 0 : index
    %143 = vector.load %arg8[%c3_144, %c0_145, %c0_146] : memref<5x80x128xbf16, #tpu.memory_space<vmem>>, vector<1x80x128xbf16>
    %144 = vector.shape_cast %143 : vector<1x80x128xbf16> to vector<80x128xbf16>
    %cst_147 = arith.constant dense<0.000000e+00> : vector<8x128xf32>
    %145 = tpu.matmul %142, %144, %cst_147 {dimension_numbers = #tpu.dot_dimension_numbers<[1], [0], [0], [1], [0, 0, 1, 1], [], []>} : vector<8x80xbf16>, vector<80x128xbf16>, vector<8x128xf32> -> vector<8x128xf32>
    %146 = arith.addf %140, %145 : vector<8x128xf32>
    %c4_148 = arith.constant 4 : index
    %c0_149 = arith.constant 0 : index
    %147 = tpu.strided_load %arg19[%c4_148, %c0_149] {strides = array<i32: 8, 1>} : memref<64x80xf32, #tpu.memory_space<vmem>>, vector<8x80xf32>
    %148 = arith.truncf %147 : vector<8x80xf32> to vector<8x80xbf16>
    %c4_150 = arith.constant 4 : index
    %c0_151 = arith.constant 0 : index
    %c0_152 = arith.constant 0 : index
    %149 = vector.load %arg8[%c4_150, %c0_151, %c0_152] : memref<5x80x128xbf16, #tpu.memory_space<vmem>>, vector<1x80x128xbf16>
    %150 = vector.shape_cast %149 : vector<1x80x128xbf16> to vector<80x128xbf16>
    %cst_153 = arith.constant dense<0.000000e+00> : vector<8x128xf32>
    %151 = tpu.matmul %148, %150, %cst_153 {dimension_numbers = #tpu.dot_dimension_numbers<[1], [0], [0], [1], [0, 0, 1, 1], [], []>} : vector<8x80xbf16>, vector<80x128xbf16>, vector<8x128xf32> -> vector<8x128xf32>
    %152 = arith.addf %146, %151 : vector<8x128xf32>
    %c0_154 = arith.constant 0 : index
    %c0_155 = arith.constant 0 : index
    %153 = vector.load %arg9[%c0_154, %c0_155] : memref<1x128xf32, #tpu.memory_space<vmem>>, vector<1x128xf32>
    %154 = vector.broadcast %153 : vector<1x128xf32> to vector<8x128xf32>
    %155 = arith.addf %152, %154 : vector<8x128xf32>
    %cst_156 = arith.constant 0.000000e+00 : f32
    %156 = vector.broadcast %cst_156 : f32 to vector<8x128xf32>
    %157 = arith.maximumf %155, %156 : vector<8x128xf32>
    %158 = arith.truncf %157 : vector<8x128xf32> to vector<8x128xbf16>
    %c0_157 = arith.constant 0 : index
    %c0_158 = arith.constant 0 : index
    %159 = vector.load %arg10[%c0_157, %c0_158] : memref<128x128xbf16, #tpu.memory_space<vmem>>, vector<128x128xbf16>
    %cst_159 = arith.constant dense<0.000000e+00> : vector<8x128xf32>
    %160 = tpu.matmul %158, %159, %cst_159 {dimension_numbers = #tpu.dot_dimension_numbers<[1], [0], [0], [1], [0, 0, 1, 1], [], []>} : vector<8x128xbf16>, vector<128x128xbf16>, vector<8x128xf32> -> vector<8x128xf32>
    %c0_160 = arith.constant 0 : index
    %c0_161 = arith.constant 0 : index
    %161 = vector.load %arg11[%c0_160, %c0_161] : memref<1x128xf32, #tpu.memory_space<vmem>>, vector<1x128xf32>
    %162 = vector.broadcast %161 : vector<1x128xf32> to vector<8x128xf32>
    %163 = arith.addf %160, %162 : vector<8x128xf32>
    %cst_162 = arith.constant 0.000000e+00 : f32
    %164 = vector.broadcast %cst_162 : f32 to vector<8x128xf32>
    %165 = arith.maximumf %163, %164 : vector<8x128xf32>
    %166 = arith.truncf %165 : vector<8x128xf32> to vector<8x128xbf16>
    %c0_163 = arith.constant 0 : index
    %c0_164 = arith.constant 0 : index
    %167 = vector.load %arg12[%c0_163, %c0_164] : memref<128x128xbf16, #tpu.memory_space<vmem>>, vector<128x128xbf16>
    %cst_165 = arith.constant dense<0.000000e+00> : vector<8x128xf32>
    %168 = tpu.matmul %166, %167, %cst_165 {dimension_numbers = #tpu.dot_dimension_numbers<[1], [0], [0], [1], [0, 0, 1, 1], [], []>} : vector<8x128xbf16>, vector<128x128xbf16>, vector<8x128xf32> -> vector<8x128xf32>
    %c0_166 = arith.constant 0 : index
    %c0_167 = arith.constant 0 : index
    %169 = vector.load %arg13[%c0_166, %c0_167] : memref<1x128xf32, #tpu.memory_space<vmem>>, vector<1x128xf32>
    %170 = vector.broadcast %169 : vector<1x128xf32> to vector<8x128xf32>
    %171 = arith.addf %168, %170 : vector<8x128xf32>
    %c0_168 = arith.constant 0 : index
    %c0_169 = arith.constant 0 : index
    %172 = vector.load %arg14[%c0_168, %c0_169] : memref<8x128xf32, #tpu.memory_space<vmem>>, vector<8x128xf32>
    tpu.vector_store %arg14[%c0_168, %c0_169], %171 {strides = array<i32>} : memref<8x128xf32, #tpu.memory_space<vmem>>, vector<8x128xf32>,
    return
  }
  func.func @transform_0(%arg0: i32) -> (i32, i32) {
    %c0_i32 = arith.constant 0 : i32
    %c0_i32_0 = arith.constant 0 : i32
    return %arg0, %c0_i32 : i32, i32
  }
  func.func @transform_1(%arg0: i32) -> (i32, i32, i32) {
    %c0_i32 = arith.constant 0 : i32
    %c0_i32_0 = arith.constant 0 : i32
    %c0_i32_1 = arith.constant 0 : i32
    %c0_i32_2 = arith.constant 0 : i32
    return %c0_i32, %c0_i32_0, %c0_i32_1 : i32, i32, i32
  }
  func.func @transform_2(%arg0: i32) -> (i32, i32, i32) {
    %c0_i32 = arith.constant 0 : i32
    %c0_i32_0 = arith.constant 0 : i32
    %c0_i32_1 = arith.constant 0 : i32
    %c0_i32_2 = arith.constant 0 : i32
    return %c0_i32, %c0_i32_0, %c0_i32_1 : i32, i32, i32
  }
  func.func @transform_3(%arg0: i32) -> (i32, i32) {
    %c0_i32 = arith.constant 0 : i32
    %c0_i32_0 = arith.constant 0 : i32
    %c0_i32_1 = arith.constant 0 : i32
    return %c0_i32, %c0_i32_0 : i32, i32
  }
  func.func @transform_4(%arg0: i32) -> (i32, i32, i32) {
    %c0_i32 = arith.constant 0 : i32
    %c0_i32_0 = arith.constant 0 : i32
    %c0_i32_1 = arith.constant 0 : i32
    %c0_i32_2 = arith.constant 0 : i32
    return %c0_i32, %c0_i32_0, %c0_i32_1 : i32, i32, i32
  }
  func.func @transform_5(%arg0: i32) -> (i32, i32, i32) {
    %c0_i32 = arith.constant 0 : i32
    %c0_i32_0 = arith.constant 0 : i32
    %c0_i32_1 = arith.constant 0 : i32
    %c0_i32_2 = arith.constant 0 : i32
    return %c0_i32, %c0_i32_0, %c0_i32_1 : i32, i32, i32
  }
  func.func @transform_6(%arg0: i32) -> (i32, i32) {
    %c0_i32 = arith.constant 0 : i32
    %c0_i32_0 = arith.constant 0 : i32
    %c0_i32_1 = arith.constant 0 : i32
    return %c0_i32, %c0_i32_0 : i32, i32
  }
  func.func @transform_7(%arg0: i32) -> (i32, i32, i32) {
    %c0_i32 = arith.constant 0 : i32
    %c0_i32_0 = arith.constant 0 : i32
    %c0_i32_1 = arith.constant 0 : i32
    %c0_i32_2 = arith.constant 0 : i32
    return %c0_i32, %c0_i32_0, %c0_i32_1 : i32, i32, i32
  }
  func.func @transform_8(%arg0: i32) -> (i32, i32) {
    %c0_i32 = arith.constant 0 : i32
    %c0_i32_0 = arith.constant 0 : i32
    %c0_i32_1 = arith.constant 0 : i32
    return %c0_i32, %c0_i32_0 : i32, i32
  }
  func.func @transform_9(%arg0: i32) -> (i32, i32) {
    %c0_i32 = arith.constant 0 : i32
    %c0_i32_0 = arith.constant 0 : i32
    %c0_i32_1 = arith.constant 0 : i32
    return %c0_i32, %c0_i32_0 : i32, i32
  }
  func.func @transform_10(%arg0: i32) -> (i32, i32) {
    %c0_i32 = arith.constant 0 : i32
    %c0_i32_0 = arith.constant 0 : i32
    %c0_i32_1 = arith.constant 0 : i32
    return %c0_i32, %c0_i32_0 : i32, i32
  }
  func.func @transform_11(%arg0: i32) -> (i32, i32) {
    %c0_i32 = arith.constant 0 : i32
    %c0_i32_0 = arith.constant 0 : i32
    %c0_i32_1 = arith.constant 0 : i32
    return %c0_i32, %c0_i32_0 : i32, i32
  }
  func.func @transform_12(%arg0: i32) -> (i32, i32) {
    %c0_i32 = arith.constant 0 : i32
    %c0_i32_0 = arith.constant 0 : i32
    %c0_i32_1 = arith.constant 0 : i32
    return %c0_i32, %c0_i32_0 : i32, i32
  }
  func.func @transform_13(%arg0: i32) -> (i32, i32) {
    %c0_i32 = arith.constant 0 : i32
    %c0_i32_0 = arith.constant 0 : i32
    return %arg0, %c0_i32 : i32, i32
  }
}

</mosaic_0001>

<llo_original>
// kernel: lenet_forward.1
$region0: #{lenet_forward.1}
  #allocation0 [shape = 'u32[]', space=smem, size = 0x4, offset = 0x4, fixed_abs, tag = 'smem constant byte address 0x4 - core index']
  #allocation1 [shape = 'u32[144,128]{1,0:T(1,128)}', space=vmem, size = 0x12000, scoped, tag = 'internal scratch']
  #allocation2 [shape = 'f32[264,32]{1,0:T(8,128)}', space=vmem, size = 0x21000, scoped, tag = 'scratch operand']
  #allocation3 [shape = 'f32[256,84]{1,0:T(8,128)}', space=vmem, size = 0x20000, scoped, tag = 'scratch operand']
  #allocation4 [shape = 'f32[136,84]{1,0:T(8,128)}', space=vmem, size = 0x11000, scoped, tag = 'scratch operand']
  #allocation5 [shape = 'f32[128,80]{1,0:T(8,128)}', space=vmem, size = 0x10000, scoped, tag = 'scratch operand']
  #allocation6 [shape = 'f32[64,80]{1,0:T(8,128)}', space=vmem, size = 0x8000, scoped, tag = 'scratch operand']
  %s0 = inlined_call_operand.vmem [shape: f32[256,32], index: 0, kind: input, shape index: {}]
  %s1 = inlined_call_operand.vmem [shape: bf16[5,32,84], index: 1, kind: input, shape index: {}]
  %s2 = inlined_call_operand.vmem [shape: bf16[5,32,84], index: 2, kind: input, shape index: {}]
  %s3 = inlined_call_operand.vmem [shape: f32[1,84], index: 3, kind: input, shape index: {}]
  %s4 = inlined_call_operand.vmem [shape: bf16[5,84,80], index: 4, kind: input, shape index: {}]
  %s5 = inlined_call_operand.vmem [shape: bf16[5,84,80], index: 5, kind: input, shape index: {}]
  %s6 = inlined_call_operand.vmem [shape: f32[1,80], index: 6, kind: input, shape index: {}]
  %s7 = inlined_call_operand.vmem [shape: bf16[5,80,128], index: 7, kind: input, shape index: {}]
  %s8 = inlined_call_operand.vmem [shape: f32[1,128], index: 8, kind: input, shape index: {}]
  %s9 = inlined_call_operand.vmem [shape: bf16[128,128], index: 9, kind: input, shape index: {}]
  %s10 = inlined_call_operand.vmem [shape: f32[1,128], index: 10, kind: input, shape index: {}]
  %s11 = inlined_call_operand.vmem [shape: bf16[128,128], index: 11, kind: input, shape index: {}]
  %s12 = inlined_call_operand.vmem [shape: f32[1,128], index: 12, kind: input, shape index: {}]
  %s13 = inlined_call_operand.vmem [shape: f32[8,128], index: 13, kind: output, shape index: {}]
  %s14 = sld [smem:[#allocation0]]
  $region62: #{lenet_forward.1} parent=0
    _
  %s16 = ssub.s32 1, %s14
  %s17 = scalar_select 0, %s16, %s14
  // Predicated region
  $region2: #{lenet_forward.1} parent=0 // pred_check
    _
  $region3: #{lenet_forward.1} parent=0 // pred_check_branch
    %19 = sbr.rel (0) target = $region5
  $region4: #{lenet_forward.1} parent=0 // pred_region
    _
  $region5: #{lenet_forward.1} parent=0 // pred_fallthru
    _
  // Predicated region
  $region6: #{lenet_forward.1} parent=0 // pred_check
    _
  $region7: #{lenet_forward.1} parent=0 // pred_check_branch
    %21 = sbr.rel (0) target = $region9
  $region8: #{lenet_forward.1} parent=0 // pred_region
    _
  $region9: #{lenet_forward.1} parent=0 // pred_fallthru
    _
  // Predicated region
  $region10: #{lenet_forward.1} parent=0 // pred_check
    _
  $region11: #{lenet_forward.1} parent=0 // pred_check_branch
    %23 = sbr.rel (0) target = $region13
  $region12: #{lenet_forward.1} parent=0 // pred_region
    _
  $region13: #{lenet_forward.1} parent=0 // pred_fallthru
    _
  // Predicated region
  $region14: #{lenet_forward.1} parent=0 // pred_check
    _
  $region15: #{lenet_forward.1} parent=0 // pred_check_branch
    %25 = sbr.rel (0) target = $region17
  $region16: #{lenet_forward.1} parent=0 // pred_region
    _
  $region17: #{lenet_forward.1} parent=0 // pred_fallthru
    _
  // Predicated region
  $region18: #{lenet_forward.1} parent=0 // pred_check
    _
  $region19: #{lenet_forward.1} parent=0 // pred_check_branch
    %27 = sbr.rel (0) target = $region21
  $region20: #{lenet_forward.1} parent=0 // pred_region
    _
  $region21: #{lenet_forward.1} parent=0 // pred_fallthru
    _
  // Predicated region
  $region22: #{lenet_forward.1} parent=0 // pred_check
    _
  $region23: #{lenet_forward.1} parent=0 // pred_check_branch
    %29 = sbr.rel (0) target = $region25
  $region24: #{lenet_forward.1} parent=0 // pred_region
    _
  $region25: #{lenet_forward.1} parent=0 // pred_fallthru
    _
  // Predicated region
  $region26: #{lenet_forward.1} parent=0 // pred_check
    _
  $region27: #{lenet_forward.1} parent=0 // pred_check_branch
    %31 = sbr.rel (0) target = $region29
  $region28: #{lenet_forward.1} parent=0 // pred_region
    _
  $region29: #{lenet_forward.1} parent=0 // pred_fallthru
    _
  // Predicated region
  $region30: #{lenet_forward.1} parent=0 // pred_check
    _
  $region31: #{lenet_forward.1} parent=0 // pred_check_branch
    %33 = sbr.rel (0) target = $region33
  $region32: #{lenet_forward.1} parent=0 // pred_region
    _
  $region33: #{lenet_forward.1} parent=0 // pred_fallthru
    _
  // Predicated region
  $region34: #{lenet_forward.1} parent=0 // pred_check
    _
  $region35: #{lenet_forward.1} parent=0 // pred_check_branch
    %35 = sbr.rel (0) target = $region37
  $region36: #{lenet_forward.1} parent=0 // pred_region
    _
  $region37: #{lenet_forward.1} parent=0 // pred_fallthru
    _
  // Predicated region
  $region38: #{lenet_forward.1} parent=0 // pred_check
    _
  $region39: #{lenet_forward.1} parent=0 // pred_check_branch
    %37 = sbr.rel (0) target = $region41
  $region40: #{lenet_forward.1} parent=0 // pred_region
    _
  $region41: #{lenet_forward.1} parent=0 // pred_fallthru
    _
  // Predicated region
  $region42: #{lenet_forward.1} parent=0 // pred_check
    _
  $region43: #{lenet_forward.1} parent=0 // pred_check_branch
    %39 = sbr.rel (0) target = $region45
  $region44: #{lenet_forward.1} parent=0 // pred_region
    _
  $region45: #{lenet_forward.1} parent=0 // pred_fallthru
    _
  // Predicated region
  $region46: #{lenet_forward.1} parent=0 // pred_check
    _
  $region47: #{lenet_forward.1} parent=0 // pred_check_branch
    %41 = sbr.rel (0) target = $region49
  $region48: #{lenet_forward.1} parent=0 // pred_region
    _
  $region49: #{lenet_forward.1} parent=0 // pred_fallthru
    _
  // Predicated region
  $region50: #{lenet_forward.1} parent=0 // pred_check
    _
  $region51: #{lenet_forward.1} parent=0 // pred_check_branch
    %43 = sbr.rel (0) target = $region53
  $region52: #{lenet_forward.1} parent=0 // pred_region
    _
  $region53: #{lenet_forward.1} parent=0 // pred_fallthru
    _
  %v45 = vld [vmem:[%s0] sm:$0xff]
  %v46 = vld [vmem:[%s0 + $0x8] sm:$0xff]
  %v47 = vld [vmem:[%s0 + $0x10] sm:$0xff]
  %v48 = vld [vmem:[%s0 + $0x18] sm:$0xff]
  %v49 = vld [vmem:[%s0 + $0x20] sm:$0xff]
  %v50 = vld [vmem:[%s0 + $0x28] sm:$0xff]
  %v51 = vld [vmem:[%s0 + $0x30] sm:$0xff]
  %v52 = vld [vmem:[%s0 + $0x38] sm:$0xff]
  %v53 = vld [vmem:[%s0 + $0x40] sm:$0xff]
  %v54 = vld [vmem:[%s0 + $0x48] sm:$0xff]
  %v55 = vld [vmem:[%s0 + $0x50] sm:$0xff]
  %v56 = vld [vmem:[%s0 + $0x58] sm:$0xff]
  %v57 = vld [vmem:[%s0 + $0x60] sm:$0xff]
  %v58 = vld [vmem:[%s0 + $0x68] sm:$0xff]
  %v59 = vld [vmem:[%s0 + $0x70] sm:$0xff]
  %v60 = vld [vmem:[%s0 + $0x78] sm:$0xff]
  %v61 = vld [vmem:[%s0 + $0x80] sm:$0xff]
  %v62 = vld [vmem:[%s0 + $0x88] sm:$0xff]
  %v63 = vld [vmem:[%s0 + $0x90] sm:$0xff]
  %v64 = vld [vmem:[%s0 + $0x98] sm:$0xff]
  %v65 = vld [vmem:[%s0 + $0xa0] sm:$0xff]
  %v66 = vld [vmem:[%s0 + $0xa8] sm:$0xff]
  %v67 = vld [vmem:[%s0 + $0xb0] sm:$0xff]
  %v68 = vld [vmem:[%s0 + $0xb8] sm:$0xff]
  %v69 = vld [vmem:[%s0 + $0xc0] sm:$0xff]
  %v70 = vld [vmem:[%s0 + $0xc8] sm:$0xff]
  %v71 = vld [vmem:[%s0 + $0xd0] sm:$0xff]
  %v72 = vld [vmem:[%s0 + $0xd8] sm:$0xff]
  %v73 = vld [vmem:[%s0 + $0xe0] sm:$0xff]
  %v74 = vld [vmem:[%s0 + $0xe8] sm:$0xff]
  %v75 = vld [vmem:[%s0 + $0xf0] sm:$0xff]
  %v76 = vld [vmem:[%s0 + $0xf8] sm:$0xff]
  %vm77 = vcmask 261120
  %78 = vst.msk [vmem:[#allocation2] sm:$0xff] %vm77, %v45
  %79 = vst.msk [vmem:[#allocation2 + $0x8] sm:$0xff] %vm77, %v46
  %80 = vst.msk [vmem:[#allocation2 + $0x10] sm:$0xff] %vm77, %v47
  %81 = vst.msk [vmem:[#allocation2 + $0x18] sm:$0xff] %vm77, %v48
  %82 = vst.msk [vmem:[#allocation2 + $0x20] sm:$0xff] %vm77, %v49
  %83 = vst.msk [vmem:[#allocation2 + $0x28] sm:$0xff] %vm77, %v50
  %84 = vst.msk [vmem:[#allocation2 + $0x30] sm:$0xff] %vm77, %v51
  %85 = vst.msk [vmem:[#allocation2 + $0x38] sm:$0xff] %vm77, %v52
  %86 = vst.msk [vmem:[#allocation2 + $0x40] sm:$0xff] %vm77, %v53
  %87 = vst.msk [vmem:[#allocation2 + $0x48] sm:$0xff] %vm77, %v54
  %88 = vst.msk [vmem:[#allocation2 + $0x50] sm:$0xff] %vm77, %v55
  %89 = vst.msk [vmem:[#allocation2 + $0x58] sm:$0xff] %vm77, %v56
  %90 = vst.msk [vmem:[#allocation2 + $0x60] sm:$0xff] %vm77, %v57
  %91 = vst.msk [vmem:[#allocation2 + $0x68] sm:$0xff] %vm77, %v58
  %92 = vst.msk [vmem:[#allocation2 + $0x70] sm:$0xff] %vm77, %v59
  %93 = vst.msk [vmem:[#allocation2 + $0x78] sm:$0xff] %vm77, %v60
  %94 = vst.msk [vmem:[#allocation2 + $0x80] sm:$0xff] %vm77, %v61
  %95 = vst.msk [vmem:[#allocation2 + $0x88] sm:$0xff] %vm77, %v62
  %96 = vst.msk [vmem:[#allocation2 + $0x90] sm:$0xff] %vm77, %v63
  %97 = vst.msk [vmem:[#allocation2 + $0x98] sm:$0xff] %vm77, %v64
  %98 = vst.msk [vmem:[#allocation2 + $0xa0] sm:$0xff] %vm77, %v65
  %99 = vst.msk [vmem:[#allocation2 + $0xa8] sm:$0xff] %vm77, %v66
  %100 = vst.msk [vmem:[#allocation2 + $0xb0] sm:$0xff] %vm77, %v67
  %101 = vst.msk [vmem:[#allocation2 + $0xb8] sm:$0xff] %vm77, %v68
  %102 = vst.msk [vmem:[#allocation2 + $0xc0] sm:$0xff] %vm77, %v69
  %103 = vst.msk [vmem:[#allocation2 + $0xc8] sm:$0xff] %vm77, %v70
  %104 = vst.msk [vmem:[#allocation2 + $0xd0] sm:$0xff] %vm77, %v71
  %105 = vst.msk [vmem:[#allocation2 + $0xd8] sm:$0xff] %vm77, %v72
  %106 = vst.msk [vmem:[#allocation2 + $0xe0] sm:$0xff] %vm77, %v73
  %107 = vst.msk [vmem:[#allocation2 + $0xe8] sm:$0xff] %vm77, %v74
  %108 = vst.msk [vmem:[#allocation2 + $0xf0] sm:$0xff] %vm77, %v75
  %109 = vst.msk [vmem:[#allocation2 + $0xf8] sm:$0xff] %vm77, %v76
  %110 = vst.msk [vmem:[#allocation2 + $0x100] sm:$0xff] %vm77, 0.0
  %v111 = vld [vmem:[#allocation2] sm:$0xff]
  %v112 = vld [vmem:[#allocation2 + $0x8] sm:$0xff]
  %v113 = vld [vmem:[#allocation2 + $0x10] sm:$0xff]
  %v114 = vld [vmem:[#allocation2 + $0x18] sm:$0xff]
  %v115 = vld [vmem:[#allocation2 + $0x20] sm:$0xff]
  %v116 = vld [vmem:[#allocation2 + $0x28] sm:$0xff]
  %v117 = vld [vmem:[#allocation2 + $0x30] sm:$0xff]
  %v118 = vld [vmem:[#allocation2 + $0x38] sm:$0xff]
  %v119 = vld [vmem:[#allocation2 + $0x40] sm:$0xff]
  %v120 = vld [vmem:[#allocation2 + $0x48] sm:$0xff]
  %v121 = vld [vmem:[#allocation2 + $0x50] sm:$0xff]
  %v122 = vld [vmem:[#allocation2 + $0x58] sm:$0xff]
  %v123 = vld [vmem:[#allocation2 + $0x60] sm:$0xff]
  %v124 = vld [vmem:[#allocation2 + $0x68] sm:$0xff]
  %v125 = vld [vmem:[#allocation2 + $0x70] sm:$0xff]
  %v126 = vld [vmem:[#allocation2 + $0x78] sm:$0xff]
  %v127 = vld [vmem:[#allocation2 + $0x80] sm:$0xff]
  %v128 = vld [vmem:[#allocation2 + $0x88] sm:$0xff]
  %v129 = vld [vmem:[#allocation2 + $0x90] sm:$0xff]
  %v130 = vld [vmem:[#allocation2 + $0x98] sm:$0xff]
  %v131 = vld [vmem:[#allocation2 + $0xa0] sm:$0xff]
  %v132 = vld [vmem:[#allocation2 + $0xa8] sm:$0xff]
  %v133 = vld [vmem:[#allocation2 + $0xb0] sm:$0xff]
  %v134 = vld [vmem:[#allocation2 + $0xb8] sm:$0xff]
  %v135 = vld [vmem:[#allocation2 + $0xc0] sm:$0xff]
  %v136 = vld [vmem:[#allocation2 + $0xc8] sm:$0xff]
  %v137 = vld [vmem:[#allocation2 + $0xd0] sm:$0xff]
  %v138 = vld [vmem:[#allocation2 + $0xd8] sm:$0xff]
  %v139 = vld [vmem:[#allocation2 + $0xe0] sm:$0xff]
  %v140 = vld [vmem:[#allocation2 + $0xe8] sm:$0xff]
  %v141 = vld [vmem:[#allocation2 + $0xf0] sm:$0xff]
  %v142 = vld [vmem:[#allocation2 + $0xf8] sm:$0xff]
  %v143 = vpack.c.bf16 %v112, %v111
  %v144 = vpack.c.bf16 %v114, %v113
  %v145 = vpack.c.bf16 %v116, %v115
  %v146 = vpack.c.bf16 %v118, %v117
  %v147 = vpack.c.bf16 %v120, %v119
  %v148 = vpack.c.bf16 %v122, %v121
  %v149 = vpack.c.bf16 %v124, %v123
  %v150 = vpack.c.bf16 %v126, %v125
  %v151 = vpack.c.bf16 %v128, %v127
  %v152 = vpack.c.bf16 %v130, %v129
  %v153 = vpack.c.bf16 %v132, %v131
  %v154 = vpack.c.bf16 %v134, %v133
  %v155 = vpack.c.bf16 %v136, %v135
  %v156 = vpack.c.bf16 %v138, %v137
  %v157 = vpack.c.bf16 %v140, %v139
  %v158 = vpack.c.bf16 %v142, %v141
  %v159 = vld [vmem:[%s1] sm:$0xf]
  %v160 = vld [vmem:[%s1 + $0x4] sm:$0xf]
  %v161 = vld [vmem:[%s1 + $0x8] sm:$0xf]
  %v162 = vld [vmem:[%s1 + $0xc] sm:$0xf]
  %v163 = vld [vmem:[%s2] sm:$0xf]
  %v164 = vld [vmem:[%s2 + $0x4] sm:$0xf]
  %v165 = vld [vmem:[%s2 + $0x8] sm:$0xf]
  %v166 = vld [vmem:[%s2 + $0xc] sm:$0xf]
  %v167 = vld [vmem:[#allocation2 + $0x1] sm:$0xff]
  %v168 = vld [vmem:[#allocation2 + $0x9] sm:$0xff]
  %v169 = vld [vmem:[#allocation2 + $0x11] sm:$0xff]
  %v170 = vld [vmem:[#allocation2 + $0x19] sm:$0xff]
  %v171 = vld [vmem:[#allocation2 + $0x21] sm:$0xff]
  %v172 = vld [vmem:[#allocation2 + $0x29] sm:$0xff]
  %v173 = vld [vmem:[#allocation2 + $0x31] sm:$0xff]
  %v174 = vld [vmem:[#allocation2 + $0x39] sm:$0xff]
  %v175 = vld [vmem:[#allocation2 + $0x41] sm:$0xff]
  %v176 = vld [vmem:[#allocation2 + $0x49] sm:$0xff]
  %v177 = vld [vmem:[#allocation2 + $0x51] sm:$0xff]
  %v178 = vld [vmem:[#allocation2 + $0x59] sm:$0xff]
  %v179 = vld [vmem:[#allocation2 + $0x61] sm:$0xff]
  %v180 = vld [vmem:[#allocation2 + $0x69] sm:$0xff]
  %v181 = vld [vmem:[#allocation2 + $0x71] sm:$0xff]
  %v182 = vld [vmem:[#allocation2 + $0x79] sm:$0xff]
  %v183 = vld [vmem:[#allocation2 + $0x81] sm:$0xff]
  %v184 = vld [vmem:[#allocation2 + $0x89] sm:$0xff]
  %v185 = vld [vmem:[#allocation2 + $0x91] sm:$0xff]
  %v186 = vld [vmem:[#allocation2 + $0x99] sm:$0xff]
  %v187 = vld [vmem:[#allocation2 + $0xa1] sm:$0xff]
  %v188 = vld [vmem:[#allocation2 + $0xa9] sm:$0xff]
  %v189 = vld [vmem:[#allocation2 + $0xb1] sm:$0xff]
  %v190 = vld [vmem:[#allocation2 + $0xb9] sm:$0xff]
  %v191 = vld [vmem:[#allocation2 + $0xc1] sm:$0xff]
  %v192 = vld [vmem:[#allocation2 + $0xc9] sm:$0xff]
  %v193 = vld [vmem:[#allocation2 + $0xd1] sm:$0xff]
  %v194 = vld [vmem:[#allocation2 + $0xd9] sm:$0xff]
  %v195 = vld [vmem:[#allocation2 + $0xe1] sm:$0xff]
  %v196 = vld [vmem:[#allocation2 + $0xe9] sm:$0xff]
  %v197 = vld [vmem:[#allocation2 + $0xf1] sm:$0xff]
  %v198 = vld [vmem:[#allocation2 + $0xf9] sm:$0xff]
  %v199 = vpack.c.bf16 %v168, %v167
  %v200 = vpack.c.bf16 %v170, %v169
  %v201 = vpack.c.bf16 %v172, %v171
  %v202 = vpack.c.bf16 %v174, %v173
  %v203 = vpack.c.bf16 %v176, %v175
  %v204 = vpack.c.bf16 %v178, %v177
  %v205 = vpack.c.bf16 %v180, %v179
  %v206 = vpack.c.bf16 %v182, %v181
  %v207 = vpack.c.bf16 %v184, %v183
  %v208 = vpack.c.bf16 %v186, %v185
  %v209 = vpack.c.bf16 %v188, %v187
  %v210 = vpack.c.bf16 %v190, %v189
  %v211 = vpack.c.bf16 %v192, %v191
  %v212 = vpack.c.bf16 %v194, %v193
  %v213 = vpack.c.bf16 %v196, %v195
  %v214 = vpack.c.bf16 %v198, %v197
  %s215 = scalar_lea.vmem %s1, 16
  %v216 = vld [vmem:[%s215] sm:$0xf]
  %v217 = vld [vmem:[%s215 + $0x4] sm:$0xf]
  %v218 = vld [vmem:[%s215 + $0x8] sm:$0xf]
  %v219 = vld [vmem:[%s215 + $0xc] sm:$0xf]
  %v224 = vunpack.c.l.b16 %v216
  %v225 = vunpack.c.l.b16 %v217
  %v226 = vunpack.c.l.b16 %v218
  %v227 = vunpack.c.l.b16 %v219
  %v228 = vpack.c.b16 %v225, %v224
  %v229 = vpack.c.b16 %v227, %v226
  %v233 = vsel %vm77, %v199, 0
  %v236 = vsel %vm77, %v200, 0
  %v239 = vsel %vm77, %v201, 0
  %v242 = vsel %vm77, %v202, 0
  %v245 = vsel %vm77, %v203, 0
  %v248 = vsel %vm77, %v204, 0
  %v251 = vsel %vm77, %v205, 0
  %v254 = vsel %vm77, %v206, 0
  %v257 = vsel %vm77, %v207, 0
  %v260 = vsel %vm77, %v208, 0
  %v263 = vsel %vm77, %v209, 0
  %v266 = vsel %vm77, %v210, 0
  %v269 = vsel %vm77, %v211, 0
  %v272 = vsel %vm77, %v212, 0
  %v275 = vsel %vm77, %v213, 0
  %v278 = vsel %vm77, %v214, 0
  %280 = vmatprep.subr.bf16.mxu0 0
  %281 = vmatpush1.bf16.msra.mxu0 %v228
  %282 = vmatprep.subr.bf16.mxu0 0
  %283 = vmatpush1.bf16.msra.mxu0 %v229
  %284 = vmatprep.subr.bf16.mxu0 0
  %285 = vmatpush1.bf16.msra.mxu0 0
  %286 = vmatprep.subr.bf16.mxu0 0
  %287 = vmatpush1.bf16.msra.mxu0 0
  %288 = vmatprep.subr.bf16.mxu0 0
  %289 = vmatpush1.bf16.msra.mxu0 0
  %290 = vmatprep.subr.bf16.mxu0 0
  %291 = vmatpush1.bf16.msra.mxu0 0
  %292 = vmatprep.subr.bf16.mxu0 0
  %293 = vmatpush1.bf16.msra.mxu0 0
  %294 = vmatprep.subr.bf16.mxu0 0
  %295 = vmatpush1.bf16.msra.mxu0 0
  %296 = vmatprep.subr.bf16.mxu0 0
  %297 = vmatpush1.bf16.msra.mxu0 0
  %298 = vmatprep.subr.bf16.mxu0 0
  %299 = vmatpush1.bf16.msra.mxu0 0
  %300 = vmatprep.subr.bf16.mxu0 0
  %301 = vmatpush1.bf16.msra.mxu0 0
  %302 = vmatprep.subr.bf16.mxu0 0
  %303 = vmatpush1.bf16.msra.mxu0 0
  %304 = vmatprep.subr.bf16.mxu0 0
  %305 = vmatpush1.bf16.msra.mxu0 0
  %306 = vmatprep.subr.bf16.mxu0 0
  %307 = vmatpush1.bf16.msra.mxu0 0
  %308 = vmatprep.subr.bf16.mxu0 0
  %309 = vmatpush1.bf16.msra.mxu0 0
  %310 = vmatprep.subr.bf16.mxu0 0
  %311 = vmatpush1.bf16.msra.mxu0 0
  %312 = vmatprep.mubr.bf16.mxu0 0
  %313 = vmatmul.mubr.bf16.gmra.mrb[0].mxu0 %v233
  %v314 = vpop.f32.mrb[0].mxu0
  %v315 = vadd.f32 0.0, %v314
  %v316 = vpop.f32.mrb[0].mxu0
  %v317 = vpop.f32.mrb[0].mxu0
  %v318 = vadd.f32 0.0, %v317
  %v319 = vpop.f32.mrb[0].mxu0
  %320 = vmatprep.mubr.bf16.mxu0 0
  %321 = vmatmul.mubr.bf16.gmra.mrb[0].mxu0 %v236
  %v322 = vpop.f32.mrb[0].mxu0
  %v323 = vadd.f32 0.0, %v322
  %v324 = vpop.f32.mrb[0].mxu0
  %v325 = vpop.f32.mrb[0].mxu0
  %v326 = vadd.f32 0.0, %v325
  %v327 = vpop.f32.mrb[0].mxu0
  %328 = vmatprep.mubr.bf16.mxu0 0
  %329 = vmatmul.mubr.bf16.gmra.mrb[0].mxu0 %v239
  %v330 = vpop.f32.mrb[0].mxu0
  %v331 = vadd.f32 0.0, %v330
  %v332 = vpop.f32.mrb[0].mxu0
  %v333 = vpop.f32.mrb[0].mxu0
  %v334 = vadd.f32 0.0, %v333
  %v335 = vpop.f32.mrb[0].mxu0
  %336 = vmatprep.mubr.bf16.mxu0 0
  %337 = vmatmul.mubr.bf16.gmra.mrb[0].mxu0 %v242
  %v338 = vpop.f32.mrb[0].mxu0
  %v339 = vadd.f32 0.0, %v338
  %v340 = vpop.f32.mrb[0].mxu0
  %v341 = vpop.f32.mrb[0].mxu0
  %v342 = vadd.f32 0.0, %v341
  %v343 = vpop.f32.mrb[0].mxu0
  %344 = vmatprep.mubr.bf16.mxu0 0
  %345 = vmatmul.mubr.bf16.gmra.mrb[0].mxu0 %v245
  %v346 = vpop.f32.mrb[0].mxu0
  %v347 = vadd.f32 0.0, %v346
  %v348 = vpop.f32.mrb[0].mxu0
  %v349 = vpop.f32.mrb[0].mxu0
  %v350 = vadd.f32 0.0, %v349
  %v351 = vpop.f32.mrb[0].mxu0
  %352 = vmatprep.mubr.bf16.mxu0 0
  %353 = vmatmul.mubr.bf16.gmra.mrb[0].mxu0 %v248
  %v354 = vpop.f32.mrb[0].mxu0
  %v355 = vadd.f32 0.0, %v354
  %v356 = vpop.f32.mrb[0].mxu0
  %v357 = vpop.f32.mrb[0].mxu0
  %v358 = vadd.f32 0.0, %v357
  %v359 = vpop.f32.mrb[0].mxu0
  %360 = vmatprep.mubr.bf16.mxu0 0
  %361 = vmatmul.mubr.bf16.gmra.mrb[0].mxu0 %v251
  %v362 = vpop.f32.mrb[0].mxu0
  %v363 = vadd.f32 0.0, %v362
  %v364 = vpop.f32.mrb[0].mxu0
  %v365 = vpop.f32.mrb[0].mxu0
  %v366 = vadd.f32 0.0, %v365
  %v367 = vpop.f32.mrb[0].mxu0
  %368 = vmatprep.mubr.bf16.mxu0 0
  %369 = vmatmul.mubr.bf16.gmra.mrb[0].mxu0 %v254
  %v370 = vpop.f32.mrb[0].mxu0
  %v371 = vadd.f32 0.0, %v370
  %v372 = vpop.f32.mrb[0].mxu0
  %v373 = vpop.f32.mrb[0].mxu0
  %v374 = vadd.f32 0.0, %v373
  %v375 = vpop.f32.mrb[0].mxu0
  %376 = vmatprep.mubr.bf16.mxu0 0
  %377 = vmatmul.mubr.bf16.gmra.mrb[0].mxu0 %v257
  %v378 = vpop.f32.mrb[0].mxu0
  %v379 = vadd.f32 0.0, %v378
  %v380 = vpop.f32.mrb[0].mxu0
  %v381 = vpop.f32.mrb[0].mxu0
  %v382 = vadd.f32 0.0, %v381
  %v383 = vpop.f32.mrb[0].mxu0
  %384 = vmatprep.mubr.bf16.mxu0 0
  %385 = vmatmul.mubr.bf16.gmra.mrb[0].mxu0 %v260
  %v386 = vpop.f32.mrb[0].mxu0
  %v387 = vadd.f32 0.0, %v386
  %v388 = vpop.f32.mrb[0].mxu0
  %v389 = vpop.f32.mrb[0].mxu0
  %v390 = vadd.f32 0.0, %v389
  %v391 = vpop.f32.mrb[0].mxu0
  %392 = vmatprep.mubr.bf16.mxu0 0
  %393 = vmatmul.mubr.bf16.gmra.mrb[0].mxu0 %v263
  %v394 = vpop.f32.mrb[0].mxu0
  %v395 = vadd.f32 0.0, %v394
  %v396 = vpop.f32.mrb[0].mxu0
  %v397 = vpop.f32.mrb[0].mxu0
  %v398 = vadd.f32 0.0, %v397
  %v399 = vpop.f32.mrb[0].mxu0
  %400 = vmatprep.mubr.bf16.mxu0 0
  %401 = vmatmul.mubr.bf16.gmra.mrb[0].mxu0 %v266
  %v402 = vpop.f32.mrb[0].mxu0
  %v403 = vadd.f32 0.0, %v402
  %v404 = vpop.f32.mrb[0].mxu0
  %v405 = vpop.f32.mrb[0].mxu0
  %v406 = vadd.f32 0.0, %v405
  %v407 = vpop.f32.mrb[0].mxu0
  %408 = vmatprep.mubr.bf16.mxu0 0
  %409 = vmatmul.mubr.bf16.gmra.mrb[0].mxu0 %v269
  %v410 = vpop.f32.mrb[0].mxu0
  %v411 = vadd.f32 0.0, %v410
  %v412 = vpop.f32.mrb[0].mxu0
  %v413 = vpop.f32.mrb[0].mxu0
  %v414 = vadd.f32 0.0, %v413
  %v415 = vpop.f32.mrb[0].mxu0
  %416 = vmatprep.mubr.bf16.mxu0 0
  %417 = vmatmul.mubr.bf16.gmra.mrb[0].mxu0 %v272
  %v418 = vpop.f32.mrb[0].mxu0
  %v419 = vadd.f32 0.0, %v418
  %v420 = vpop.f32.mrb[0].mxu0
  %v421 = vpop.f32.mrb[0].mxu0
  %v422 = vadd.f32 0.0, %v421
  %v423 = vpop.f32.mrb[0].mxu0
  %424 = vmatprep.mubr.bf16.mxu0 0
  %425 = vmatmul.mubr.bf16.gmra.mrb[0].mxu0 %v275
  %v426 = vpop.f32.mrb[0].mxu0
  %v427 = vadd.f32 0.0, %v426
  %v428 = vpop.f32.mrb[0].mxu0
  %v429 = vpop.f32.mrb[0].mxu0
  %v430 = vadd.f32 0.0, %v429
  %v431 = vpop.f32.mrb[0].mxu0
  %432 = vmatprep.mubr.bf16.mxu0 0
  %433 = vmatmul.mubr.bf16.gmra.mrb[0].mxu0 %v278
  %v434 = vpop.f32.mrb[0].mxu0
  %v435 = vadd.f32 0.0, %v434
  %v436 = vpop.f32.mrb[0].mxu0
  %v437 = vpop.f32.mrb[0].mxu0
  %v438 = vadd.f32 0.0, %v437
  %v439 = vpop.f32.mrb[0].mxu0
  %440 = vdwg.mxu0
  %s441 = scalar_lea.vmem %s2, 16
  %v442 = vld [vmem:[%s441] sm:$0xf]
  %v443 = vld [vmem:[%s441 + $0x4] sm:$0xf]
  %v444 = vld [vmem:[%s441 + $0x8] sm:$0xf]
  %v445 = vld [vmem:[%s441 + $0xc] sm:$0xf]
  %v450 = vunpack.c.l.b16 %v442
  %v451 = vunpack.c.l.b16 %v443
  %v452 = vunpack.c.l.b16 %v444
  %v453 = vunpack.c.l.b16 %v445
  %v454 = vpack.c.b16 %v451, %v450
  %v455 = vpack.c.b16 %v453, %v452
  %458 = vmatprep.subr.bf16.mxu0 0
  %459 = vmatpush1.bf16.msra.mxu0 %v454
  %460 = vmatprep.subr.bf16.mxu0 0
  %461 = vmatpush1.bf16.msra.mxu0 %v455
  %462 = vmatprep.subr.bf16.mxu0 0
  %463 = vmatpush1.bf16.msra.mxu0 0
  %464 = vmatprep.subr.bf16.mxu0 0
  %465 = vmatpush1.bf16.msra.mxu0 0
  %466 = vmatprep.subr.bf16.mxu0 0
  %467 = vmatpush1.bf16.msra.mxu0 0
  %468 = vmatprep.subr.bf16.mxu0 0
  %469 = vmatpush1.bf16.msra.mxu0 0
  %470 = vmatprep.subr.bf16.mxu0 0
  %471 = vmatpush1.bf16.msra.mxu0 0
  %472 = vmatprep.subr.bf16.mxu0 0
  %473 = vmatpush1.bf16.msra.mxu0 0
  %474 = vmatprep.subr.bf16.mxu0 0
  %475 = vmatpush1.bf16.msra.mxu0 0
  %476 = vmatprep.subr.bf16.mxu0 0
  %477 = vmatpush1.bf16.msra.mxu0 0
  %478 = vmatprep.subr.bf16.mxu0 0
  %479 = vmatpush1.bf16.msra.mxu0 0
  %480 = vmatprep.subr.bf16.mxu0 0
  %481 = vmatpush1.bf16.msra.mxu0 0
  %482 = vmatprep.subr.bf16.mxu0 0
  %483 = vmatpush1.bf16.msra.mxu0 0
  %484 = vmatprep.subr.bf16.mxu0 0
  %485 = vmatpush1.bf16.msra.mxu0 0
  %486 = vmatprep.subr.bf16.mxu0 0
  %487 = vmatpush1.bf16.msra.mxu0 0
  %488 = vmatprep.subr.bf16.mxu0 0
  %489 = vmatpush1.bf16.msra.mxu0 0
  %490 = vmatprep.mubr.bf16.mxu0 0
  %491 = vmatmul.mubr.bf16.gmra.mrb[0].mxu0 %v233
  %v492 = vpop.f32.mrb[0].mxu0
  %v493 = vadd.f32 0.0, %v492
  %v494 = vpop.f32.mrb[0].mxu0
  %v495 = vpop.f32.mrb[0].mxu0
  %v496 = vadd.f32 0.0, %v495
  %v497 = vpop.f32.mrb[0].mxu0
  %498 = vmatprep.mubr.bf16.mxu0 0
  %499 = vmatmul.mubr.bf16.gmra.mrb[0].mxu0 %v236
  %v500 = vpop.f32.mrb[0].mxu0
  %v501 = vadd.f32 0.0, %v500
  %v502 = vpop.f32.mrb[0].mxu0
  %v503 = vpop.f32.mrb[0].mxu0
  %v504 = vadd.f32 0.0, %v503
  %v505 = vpop.f32.mrb[0].mxu0
  %506 = vmatprep.mubr.bf16.mxu0 0
  %507 = vmatmul.mubr.bf16.gmra.mrb[0].mxu0 %v239
  %v508 = vpop.f32.mrb[0].mxu0
  %v509 = vadd.f32 0.0, %v508
  %v510 = vpop.f32.mrb[0].mxu0
  %v511 = vpop.f32.mrb[0].mxu0
  %v512 = vadd.f32 0.0, %v511
  %v513 = vpop.f32.mrb[0].mxu0
  %514 = vmatprep.mubr.bf16.mxu0 0
  %515 = vmatmul.mubr.bf16.gmra.mrb[0].mxu0 %v242
  %v516 = vpop.f32.mrb[0].mxu0
  %v517 = vadd.f32 0.0, %v516
  %v518 = vpop.f32.mrb[0].mxu0
  %v519 = vpop.f32.mrb[0].mxu0
  %v520 = vadd.f32 0.0, %v519
  %v521 = vpop.f32.mrb[0].mxu0
  %522 = vmatprep.mubr.bf16.mxu0 0
  %523 = vmatmul.mubr.bf16.gmra.mrb[0].mxu0 %v245
  %v524 = vpop.f32.mrb[0].mxu0
  %v525 = vadd.f32 0.0, %v524
  %v526 = vpop.f32.mrb[0].mxu0
  %v527 = vpop.f32.mrb[0].mxu0
  %v528 = vadd.f32 0.0, %v527
  %v529 = vpop.f32.mrb[0].mxu0
  %530 = vmatprep.mubr.bf16.mxu0 0
  %531 = vmatmul.mubr.bf16.gmra.mrb[0].mxu0 %v248
  %v532 = vpop.f32.mrb[0].mxu0
  %v533 = vadd.f32 0.0, %v532
  %v534 = vpop.f32.mrb[0].mxu0
  %v535 = vpop.f32.mrb[0].mxu0
  %v536 = vadd.f32 0.0, %v535
  %v537 = vpop.f32.mrb[0].mxu0
  %538 = vmatprep.mubr.bf16.mxu0 0
  %539 = vmatmul.mubr.bf16.gmra.mrb[0].mxu0 %v251
  %v540 = vpop.f32.mrb[0].mxu0
  %v541 = vadd.f32 0.0, %v540
  %v542 = vpop.f32.mrb[0].mxu0
  %v543 = vpop.f32.mrb[0].mxu0
  %v544 = vadd.f32 0.0, %v543
  %v545 = vpop.f32.mrb[0].mxu0
  %546 = vmatprep.mubr.bf16.mxu0 0
  %547 = vmatmul.mubr.bf16.gmra.mrb[0].mxu0 %v254
  %v548 = vpop.f32.mrb[0].mxu0
  %v549 = vadd.f32 0.0, %v548
  %v550 = vpop.f32.mrb[0].mxu0
  %v551 = vpop.f32.mrb[0].mxu0
  %v552 = vadd.f32 0.0, %v551
  %v553 = vpop.f32.mrb[0].mxu0
  %554 = vmatprep.mubr.bf16.mxu0 0
  %555 = vmatmul.mubr.bf16.gmra.mrb[0].mxu0 %v257
  %v556 = vpop.f32.mrb[0].mxu0
  %v557 = vadd.f32 0.0, %v556
  %v558 = vpop.f32.mrb[0].mxu0
  %v559 = vpop.f32.mrb[0].mxu0
  %v560 = vadd.f32 0.0, %v559
  %v561 = vpop.f32.mrb[0].mxu0
  %562 = vmatprep.mubr.bf16.mxu0 0
  %563 = vmatmul.mubr.bf16.gmra.mrb[0].mxu0 %v260
  %v564 = vpop.f32.mrb[0].mxu0
  %v565 = vadd.f32 0.0, %v564
  %v566 = vpop.f32.mrb[0].mxu0
  %v567 = vpop.f32.mrb[0].mxu0
  %v568 = vadd.f32 0.0, %v567
  %v569 = vpop.f32.mrb[0].mxu0
  %570 = vmatprep.mubr.bf16.mxu0 0
  %571 = vmatmul.mubr.bf16.gmra.mrb[0].mxu0 %v263
  %v572 = vpop.f32.mrb[0].mxu0
  %v573 = vadd.f32 0.0, %v572
  %v574 = vpop.f32.mrb[0].mxu0
  %v575 = vpop.f32.mrb[0].mxu0
  %v576 = vadd.f32 0.0, %v575
  %v577 = vpop.f32.mrb[0].mxu0
  %578 = vmatprep.mubr.bf16.mxu0 0
  %579 = vmatmul.mubr.bf16.gmra.mrb[0].mxu0 %v266
  %v580 = vpop.f32.mrb[0].mxu0
  %v581 = vadd.f32 0.0, %v580
  %v582 = vpop.f32.mrb[0].mxu0
  %v583 = vpop.f32.mrb[0].mxu0
  %v584 = vadd.f32 0.0, %v583
  %v585 = vpop.f32.mrb[0].mxu0
  %586 = vmatprep.mubr.bf16.mxu0 0
  %587 = vmatmul.mubr.bf16.gmra.mrb[0].mxu0 %v269
  %v588 = vpop.f32.mrb[0].mxu0
  %v589 = vadd.f32 0.0, %v588
  %v590 = vpop.f32.mrb[0].mxu0
  %v591 = vpop.f32.mrb[0].mxu0
  %v592 = vadd.f32 0.0, %v591
  %v593 = vpop.f32.mrb[0].mxu0
  %594 = vmatprep.mubr.bf16.mxu0 0
  %595 = vmatmul.mubr.bf16.gmra.mrb[0].mxu0 %v272
  %v596 = vpop.f32.mrb[0].mxu0
  %v597 = vadd.f32 0.0, %v596
  %v598 = vpop.f32.mrb[0].mxu0
  %v599 = vpop.f32.mrb[0].mxu0
  %v600 = vadd.f32 0.0, %v599
  %v601 = vpop.f32.mrb[0].mxu0
  %602 = vmatprep.mubr.bf16.mxu0 0
  %603 = vmatmul.mubr.bf16.gmra.mrb[0].mxu0 %v275
  %v604 = vpop.f32.mrb[0].mxu0
  %v605 = vadd.f32 0.0, %v604
  %v606 = vpop.f32.mrb[0].mxu0
  %v607 = vpop.f32.mrb[0].mxu0
  %v608 = vadd.f32 0.0, %v607
  %v609 = vpop.f32.mrb[0].mxu0
  %610 = vmatprep.mubr.bf16.mxu0 0
  %611 = vmatmul.mubr.bf16.gmra.mrb[0].mxu0 %v278
  %v612 = vpop.f32.mrb[0].mxu0
  %v613 = vadd.f32 0.0, %v612
  %v614 = vpop.f32.mrb[0].mxu0
  %v615 = vpop.f32.mrb[0].mxu0
  %v616 = vadd.f32 0.0, %v615
  %v617 = vpop.f32.mrb[0].mxu0
  %618 = vdwg.mxu0
  %v623 = vunpack.c.l.b16 %v159
  %v624 = vunpack.c.l.b16 %v160
  %v625 = vunpack.c.l.b16 %v161
  %v626 = vunpack.c.l.b16 %v162
  %v627 = vpack.c.b16 %v624, %v623
  %v628 = vpack.c.b16 %v626, %v625
  %v632 = vsel %vm77, %v143, 0
  %v635 = vsel %vm77, %v144, 0
  %v638 = vsel %vm77, %v145, 0
  %v641 = vsel %vm77, %v146, 0
  %v644 = vsel %vm77, %v147, 0
  %v647 = vsel %vm77, %v148, 0
  %v650 = vsel %vm77, %v149, 0
  %v653 = vsel %vm77, %v150, 0
  %v656 = vsel %vm77, %v151, 0
  %v659 = vsel %vm77, %v152, 0
  %v662 = vsel %vm77, %v153, 0
  %v665 = vsel %vm77, %v154, 0
  %v668 = vsel %vm77, %v155, 0
  %v671 = vsel %vm77, %v156, 0
  %v674 = vsel %vm77, %v157, 0
  %v677 = vsel %vm77, %v158, 0
  %679 = vmatprep.subr.bf16.mxu0 0
  %680 = vmatpush1.bf16.msra.mxu0 %v627
  %681 = vmatprep.subr.bf16.mxu0 0
  %682 = vmatpush1.bf16.msra.mxu0 %v628
  %683 = vmatprep.subr.bf16.mxu0 0
  %684 = vmatpush1.bf16.msra.mxu0 0
  %685 = vmatprep.subr.bf16.mxu0 0
  %686 = vmatpush1.bf16.msra.mxu0 0
  %687 = vmatprep.subr.bf16.mxu0 0
  %688 = vmatpush1.bf16.msra.mxu0 0
  %689 = vmatprep.subr.bf16.mxu0 0
  %690 = vmatpush1.bf16.msra.mxu0 0
  %691 = vmatprep.subr.bf16.mxu0 0
  %692 = vmatpush1.bf16.msra.mxu0 0
  %693 = vmatprep.subr.bf16.mxu0 0
  %694 = vmatpush1.bf16.msra.mxu0 0
  %695 = vmatprep.subr.bf16.mxu0 0
  %696 = vmatpush1.bf16.msra.mxu0 0
  %697 = vmatprep.subr.bf16.mxu0 0
  %698 = vmatpush1.bf16.msra.mxu0 0
  %699 = vmatprep.subr.bf16.mxu0 0
  %700 = vmatpush1.bf16.msra.mxu0 0
  %701 = vmatprep.subr.bf16.mxu0 0
  %702 = vmatpush1.bf16.msra.mxu0 0
  %703 = vmatprep.subr.bf16.mxu0 0
  %704 = vmatpush1.bf16.msra.mxu0 0
  %705 = vmatprep.subr.bf16.mxu0 0
  %706 = vmatpush1.bf16.msra.mxu0 0
  %707 = vmatprep.subr.bf16.mxu0 0
  %708 = vmatpush1.bf16.msra.mxu0 0
  %709 = vmatprep.subr.bf16.mxu0 0
  %710 = vmatpush1.bf16.msra.mxu0 0
  %711 = vmatprep.mubr.bf16.mxu0 0
  %712 = vmatmul.mubr.bf16.gmra.mrb[0].mxu0 %v632
  %v713 = vpop.f32.mrb[0].mxu0
  %v714 = vadd.f32 %v315, %v713
  %v715 = vpop.f32.mrb[0].mxu0
  %v716 = vpop.f32.mrb[0].mxu0
  %v717 = vadd.f32 %v318, %v716
  %v718 = vpop.f32.mrb[0].mxu0
  %719 = vmatprep.mubr.bf16.mxu0 0
  %720 = vmatmul.mubr.bf16.gmra.mrb[0].mxu0 %v635
  %v721 = vpop.f32.mrb[0].mxu0
  %v722 = vadd.f32 %v323, %v721
  %v723 = vpop.f32.mrb[0].mxu0
  %v724 = vpop.f32.mrb[0].mxu0
  %v725 = vadd.f32 %v326, %v724
  %v726 = vpop.f32.mrb[0].mxu0
  %727 = vmatprep.mubr.bf16.mxu0 0
  %728 = vmatmul.mubr.bf16.gmra.mrb[0].mxu0 %v638
  %v729 = vpop.f32.mrb[0].mxu0
  %v730 = vadd.f32 %v331, %v729
  %v731 = vpop.f32.mrb[0].mxu0
  %v732 = vpop.f32.mrb[0].mxu0
  %v733 = vadd.f32 %v334, %v732
  %v734 = vpop.f32.mrb[0].mxu0
  %735 = vmatprep.mubr.bf16.mxu0 0
  %736 = vmatmul.mubr.bf16.gmra.mrb[0].mxu0 %v641
  %v737 = vpop.f32.mrb[0].mxu0
  %v738 = vadd.f32 %v339, %v737
  %v739 = vpop.f32.mrb[0].mxu0
  %v740 = vpop.f32.mrb[0].mxu0
  %v741 = vadd.f32 %v342, %v740
  %v742 = vpop.f32.mrb[0].mxu0
  %743 = vmatprep.mubr.bf16.mxu0 0
  %744 = vmatmul.mubr.bf16.gmra.mrb[0].mxu0 %v644
  %v745 = vpop.f32.mrb[0].mxu0
  %v746 = vadd.f32 %v347, %v745
  %v747 = vpop.f32.mrb[0].mxu0
  %v748 = vpop.f32.mrb[0].mxu0
  %v749 = vadd.f32 %v350, %v748
  %v750 = vpop.f32.mrb[0].mxu0
  %751 = vmatprep.mubr.bf16.mxu0 0
  %752 = vmatmul.mubr.bf16.gmra.mrb[0].mxu0 %v647
  %v753 = vpop.f32.mrb[0].mxu0
  %v754 = vadd.f32 %v355, %v753
  %v755 = vpop.f32.mrb[0].mxu0
  %v756 = vpop.f32.mrb[0].mxu0
  %v757 = vadd.f32 %v358, %v756
  %v758 = vpop.f32.mrb[0].mxu0
  %759 = vmatprep.mubr.bf16.mxu0 0
  %760 = vmatmul.mubr.bf16.gmra.mrb[0].mxu0 %v650
  %v761 = vpop.f32.mrb[0].mxu0
  %v762 = vadd.f32 %v363, %v761
  %v763 = vpop.f32.mrb[0].mxu0
  %v764 = vpop.f32.mrb[0].mxu0
  %v765 = vadd.f32 %v366, %v764
  %v766 = vpop.f32.mrb[0].mxu0
  %767 = vmatprep.mubr.bf16.mxu0 0
  %768 = vmatmul.mubr.bf16.gmra.mrb[0].mxu0 %v653
  %v769 = vpop.f32.mrb[0].mxu0
  %v770 = vadd.f32 %v371, %v769
  %v771 = vpop.f32.mrb[0].mxu0
  %v772 = vpop.f32.mrb[0].mxu0
  %v773 = vadd.f32 %v374, %v772
  %v774 = vpop.f32.mrb[0].mxu0
  %775 = vmatprep.mubr.bf16.mxu0 0
  %776 = vmatmul.mubr.bf16.gmra.mrb[0].mxu0 %v656
  %v777 = vpop.f32.mrb[0].mxu0
  %v778 = vadd.f32 %v379, %v777
  %v779 = vpop.f32.mrb[0].mxu0
  %v780 = vpop.f32.mrb[0].mxu0
  %v781 = vadd.f32 %v382, %v780
  %v782 = vpop.f32.mrb[0].mxu0
  %783 = vmatprep.mubr.bf16.mxu0 0
  %784 = vmatmul.mubr.bf16.gmra.mrb[0].mxu0 %v659
  %v785 = vpop.f32.mrb[0].mxu0
  %v786 = vadd.f32 %v387, %v785
  %v787 = vpop.f32.mrb[0].mxu0
  %v788 = vpop.f32.mrb[0].mxu0
  %v789 = vadd.f32 %v390, %v788
  %v790 = vpop.f32.mrb[0].mxu0
  %791 = vmatprep.mubr.bf16.mxu0 0
  %792 = vmatmul.mubr.bf16.gmra.mrb[0].mxu0 %v662
  %v793 = vpop.f32.mrb[0].mxu0
  %v794 = vadd.f32 %v395, %v793
  %v795 = vpop.f32.mrb[0].mxu0
  %v796 = vpop.f32.mrb[0].mxu0
  %v797 = vadd.f32 %v398, %v796
  %v798 = vpop.f32.mrb[0].mxu0
  %799 = vmatprep.mubr.bf16.mxu0 0
  %800 = vmatmul.mubr.bf16.gmra.mrb[0].mxu0 %v665
  %v801 = vpop.f32.mrb[0].mxu0
  %v802 = vadd.f32 %v403, %v801
  %v803 = vpop.f32.mrb[0].mxu0
  %v804 = vpop.f32.mrb[0].mxu0
  %v805 = vadd.f32 %v406, %v804
  %v806 = vpop.f32.mrb[0].mxu0
  %807 = vmatprep.mubr.bf16.mxu0 0
  %808 = vmatmul.mubr.bf16.gmra.mrb[0].mxu0 %v668
  %v809 = vpop.f32.mrb[0].mxu0
  %v810 = vadd.f32 %v411, %v809
  %v811 = vpop.f32.mrb[0].mxu0
  %v812 = vpop.f32.mrb[0].mxu0
  %v813 = vadd.f32 %v414, %v812
  %v814 = vpop.f32.mrb[0].mxu0
  %815 = vmatprep.mubr.bf16.mxu0 0
  %816 = vmatmul.mubr.bf16.gmra.mrb[0].mxu0 %v671
  %v817 = vpop.f32.mrb[0].mxu0
  %v818 = vadd.f32 %v419, %v817
  %v819 = vpop.f32.mrb[0].mxu0
  %v820 = vpop.f32.mrb[0].mxu0
  %v821 = vadd.f32 %v422, %v820
  %v822 = vpop.f32.mrb[0].mxu0
  %823 = vmatprep.mubr.bf16.mxu0 0
  %824 = vmatmul.mubr.bf16.gmra.mrb[0].mxu0 %v674
  %v825 = vpop.f32.mrb[0].mxu0
  %v826 = vadd.f32 %v427, %v825
  %v827 = vpop.f32.mrb[0].mxu0
  %v828 = vpop.f32.mrb[0].mxu0
  %v829 = vadd.f32 %v430, %v828
  %v830 = vpop.f32.mrb[0].mxu0
  %831 = vmatprep.mubr.bf16.mxu0 0
  %832 = vmatmul.mubr.bf16.gmra.mrb[0].mxu0 %v677
  %v833 = vpop.f32.mrb[0].mxu0
  %v834 = vadd.f32 %v435, %v833
  %v835 = vpop.f32.mrb[0].mxu0
  %v836 = vpop.f32.mrb[0].mxu0
  %v837 = vadd.f32 %v438, %v836
  %v838 = vpop.f32.mrb[0].mxu0
  %839 = vdwg.mxu0
  %v844 = vunpack.c.l.b16 %v163
  %v845 = vunpack.c.l.b16 %v164
  %v846 = vunpack.c.l.b16 %v165
  %v847 = vunpack.c.l.b16 %v166
  %v848 = vpack.c.b16 %v845, %v844
  %v849 = vpack.c.b16 %v847, %v846
  %852 = vmatprep.subr.bf16.mxu0 0
  %853 = vmatpush1.bf16.msra.mxu0 %v848
  %854 = vmatprep.subr.bf16.mxu0 0
  %855 = vmatpush1.bf16.msra.mxu0 %v849
  %856 = vmatprep.subr.bf16.mxu0 0
  %857 = vmatpush1.bf16.msra.mxu0 0
  %858 = vmatprep.subr.bf16.mxu0 0
  %859 = vmatpush1.bf16.msra.mxu0 0
  %860 = vmatprep.subr.bf16.mxu0 0
  %861 = vmatpush1.bf16.msra.mxu0 0
  %862 = vmatprep.subr.bf16.mxu0 0
  %863 = vmatpush1.bf16.msra.mxu0 0
  %864 = vmatprep.subr.bf16.mxu0 0
  %865 = vmatpush1.bf16.msra.mxu0 0
  %866 = vmatprep.subr.bf16.mxu0 0
  %867 = vmatpush1.bf16.msra.mxu0 0
  %868 = vmatprep.subr.bf16.mxu0 0
  %869 = vmatpush1.bf16.msra.mxu0 0
  %870 = vmatprep.subr.bf16.mxu0 0
  %871 = vmatpush1.bf16.msra.mxu0 0
  %872 = vmatprep.subr.bf16.mxu0 0
  %873 = vmatpush1.bf16.msra.mxu0 0
  %874 = vmatprep.subr.bf16.mxu0 0
  %875 = vmatpush1.bf16.msra.mxu0 0
  %876 = vmatprep.subr.bf16.mxu0 0
  %877 = vmatpush1.bf16.msra.mxu0 0
  %878 = vmatprep.subr.bf16.mxu0 0
  %879 = vmatpush1.bf16.msra.mxu0 0
  %880 = vmatprep.subr.bf16.mxu0 0
  %881 = vmatpush1.bf16.msra.mxu0 0
  %882 = vmatprep.subr.bf16.mxu0 0
  %883 = vmatpush1.bf16.msra.mxu0 0
  %884 = vmatprep.mubr.bf16.mxu0 0
  %885 = vmatmul.mubr.bf16.gmra.mrb[0].mxu0 %v632
  %v886 = vpop.f32.mrb[0].mxu0
  %v887 = vadd.f32 %v493, %v886
  %v888 = vpop.f32.mrb[0].mxu0
  %v889 = vpop.f32.mrb[0].mxu0
  %v890 = vadd.f32 %v496, %v889
  %v891 = vpop.f32.mrb[0].mxu0
  %892 = vmatprep.mubr.bf16.mxu0 0
  %893 = vmatmul.mubr.bf16.gmra.mrb[0].mxu0 %v635
  %v894 = vpop.f32.mrb[0].mxu0
  %v895 = vadd.f32 %v501, %v894
  %v896 = vpop.f32.mrb[0].mxu0
  %v897 = vpop.f32.mrb[0].mxu0
  %v898 = vadd.f32 %v504, %v897
  %v899 = vpop.f32.mrb[0].mxu0
  %900 = vmatprep.mubr.bf16.mxu0 0
  %901 = vmatmul.mubr.bf16.gmra.mrb[0].mxu0 %v638
  %v902 = vpop.f32.mrb[0].mxu0
  %v903 = vadd.f32 %v509, %v902
  %v904 = vpop.f32.mrb[0].mxu0
  %v905 = vpop.f32.mrb[0].mxu0
  %v906 = vadd.f32 %v512, %v905
  %v907 = vpop.f32.mrb[0].mxu0
  %908 = vmatprep.mubr.bf16.mxu0 0
  %909 = vmatmul.mubr.bf16.gmra.mrb[0].mxu0 %v641
  %v910 = vpop.f32.mrb[0].mxu0
  %v911 = vadd.f32 %v517, %v910
  %v912 = vpop.f32.mrb[0].mxu0
  %v913 = vpop.f32.mrb[0].mxu0
  %v914 = vadd.f32 %v520, %v913
  %v915 = vpop.f32.mrb[0].mxu0
  %916 = vmatprep.mubr.bf16.mxu0 0
  %917 = vmatmul.mubr.bf16.gmra.mrb[0].mxu0 %v644
  %v918 = vpop.f32.mrb[0].mxu0
  %v919 = vadd.f32 %v525, %v918
  %v920 = vpop.f32.mrb[0].mxu0
  %v921 = vpop.f32.mrb[0].mxu0
  %v922 = vadd.f32 %v528, %v921
  %v923 = vpop.f32.mrb[0].mxu0
  %924 = vmatprep.mubr.bf16.mxu0 0
  %925 = vmatmul.mubr.bf16.gmra.mrb[0].mxu0 %v647
  %v926 = vpop.f32.mrb[0].mxu0
  %v927 = vadd.f32 %v533, %v926
  %v928 = vpop.f32.mrb[0].mxu0
  %v929 = vpop.f32.mrb[0].mxu0
  %v930 = vadd.f32 %v536, %v929
  %v931 = vpop.f32.mrb[0].mxu0
  %932 = vmatprep.mubr.bf16.mxu0 0
  %933 = vmatmul.mubr.bf16.gmra.mrb[0].mxu0 %v650
  %v934 = vpop.f32.mrb[0].mxu0
  %v935 = vadd.f32 %v541, %v934
  %v936 = vpop.f32.mrb[0].mxu0
  %v937 = vpop.f32.mrb[0].mxu0
  %v938 = vadd.f32 %v544, %v937
  %v939 = vpop.f32.mrb[0].mxu0
  %940 = vmatprep.mubr.bf16.mxu0 0
  %941 = vmatmul.mubr.bf16.gmra.mrb[0].mxu0 %v653
  %v942 = vpop.f32.mrb[0].mxu0
  %v943 = vadd.f32 %v549, %v942
  %v944 = vpop.f32.mrb[0].mxu0
  %v945 = vpop.f32.mrb[0].mxu0
  %v946 = vadd.f32 %v552, %v945
  %v947 = vpop.f32.mrb[0].mxu0
  %948 = vmatprep.mubr.bf16.mxu0 0
  %949 = vmatmul.mubr.bf16.gmra.mrb[0].mxu0 %v656
  %v950 = vpop.f32.mrb[0].mxu0
  %v951 = vadd.f32 %v557, %v950
  %v952 = vpop.f32.mrb[0].mxu0
  %v953 = vpop.f32.mrb[0].mxu0
  %v954 = vadd.f32 %v560, %v953
  %v955 = vpop.f32.mrb[0].mxu0
  %956 = vmatprep.mubr.bf16.mxu0 0
  %957 = vmatmul.mubr.bf16.gmra.mrb[0].mxu0 %v659
  %v958 = vpop.f32.mrb[0].mxu0
  %v959 = vadd.f32 %v565, %v958
  %v960 = vpop.f32.mrb[0].mxu0
  %v961 = vpop.f32.mrb[0].mxu0
  %v962 = vadd.f32 %v568, %v961
  %v963 = vpop.f32.mrb[0].mxu0
  %964 = vmatprep.mubr.bf16.mxu0 0
  %965 = vmatmul.mubr.bf16.gmra.mrb[0].mxu0 %v662
  %v966 = vpop.f32.mrb[0].mxu0
  %v967 = vadd.f32 %v573, %v966
  %v968 = vpop.f32.mrb[0].mxu0
  %v969 = vpop.f32.mrb[0].mxu0
  %v970 = vadd.f32 %v576, %v969
  %v971 = vpop.f32.mrb[0].mxu0
  %972 = vmatprep.mubr.bf16.mxu0 0
  %973 = vmatmul.mubr.bf16.gmra.mrb[0].mxu0 %v665
  %v974 = vpop.f32.mrb[0].mxu0
  %v975 = vadd.f32 %v581, %v974
  %v976 = vpop.f32.mrb[0].mxu0
  %v977 = vpop.f32.mrb[0].mxu0
  %v978 = vadd.f32 %v584, %v977
  %v979 = vpop.f32.mrb[0].mxu0
  %980 = vmatprep.mubr.bf16.mxu0 0
  %981 = vmatmul.mubr.bf16.gmra.mrb[0].mxu0 %v668
  %v982 = vpop.f32.mrb[0].mxu0
  %v983 = vadd.f32 %v589, %v982
  %v984 = vpop.f32.mrb[0].mxu0
  %v985 = vpop.f32.mrb[0].mxu0
  %v986 = vadd.f32 %v592, %v985
  %v987 = vpop.f32.mrb[0].mxu0
  %988 = vmatprep.mubr.bf16.mxu0 0
  %989 = vmatmul.mubr.bf16.gmra.mrb[0].mxu0 %v671
  %v990 = vpop.f32.mrb[0].mxu0
  %v991 = vadd.f32 %v597, %v990
  %v992 = vpop.f32.mrb[0].mxu0
  %v993 = vpop.f32.mrb[0].mxu0
  %v994 = vadd.f32 %v600, %v993
  %v995 = vpop.f32.mrb[0].mxu0
  %996 = vmatprep.mubr.bf16.mxu0 0
  %997 = vmatmul.mubr.bf16.gmra.mrb[0].mxu0 %v674
  %v998 = vpop.f32.mrb[0].mxu0
  %v999 = vadd.f32 %v605, %v998
  %v1000 = vpop.f32.mrb[0].mxu0
  %v1001 = vpop.f32.mrb[0].mxu0
  %v1002 = vadd.f32 %v608, %v1001
  %v1003 = vpop.f32.mrb[0].mxu0
  %1004 = vmatprep.mubr.bf16.mxu0 0
  %1005 = vmatmul.mubr.bf16.gmra.mrb[0].mxu0 %v677
  %v1006 = vpop.f32.mrb[0].mxu0
  %v1007 = vadd.f32 %v613, %v1006
  %v1008 = vpop.f32.mrb[0].mxu0
  %v1009 = vpop.f32.mrb[0].mxu0
  %v1010 = vadd.f32 %v616, %v1009
  %v1011 = vpop.f32.mrb[0].mxu0
  %1012 = vdwg.mxu0
  %v1013 = vld [vmem:[#allocation2 + $0x2] sm:$0xff]
  %v1014 = vld [vmem:[#allocation2 + $0xa] sm:$0xff]
  %v1015 = vld [vmem:[#allocation2 + $0x12] sm:$0xff]
  %v1016 = vld [vmem:[#allocation2 + $0x1a] sm:$0xff]
  %v1017 = vld [vmem:[#allocation2 + $0x22] sm:$0xff]
  %v1018 = vld [vmem:[#allocation2 + $0x2a] sm:$0xff]
  %v1019 = vld [vmem:[#allocation2 + $0x32] sm:$0xff]
  %v1020 = vld [vmem:[#allocation2 + $0x3a] sm:$0xff]
  %v1021 = vld [vmem:[#allocation2 + $0x42] sm:$0xff]
  %v1022 = vld [vmem:[#allocation2 + $0x4a] sm:$0xff]
  %v1023 = vld [vmem:[#allocation2 + $0x52] sm:$0xff]
  %v1024 = vld [vmem:[#allocation2 + $0x5a] sm:$0xff]
  %v1025 = vld [vmem:[#allocation2 + $0x62] sm:$0xff]
  %v1026 = vld [vmem:[#allocation2 + $0x6a] sm:$0xff]
  %v1027 = vld [vmem:[#allocation2 + $0x72] sm:$0xff]
  %v1028 = vld [vmem:[#allocation2 + $0x7a] sm:$0xff]
  %v1029 = vld [vmem:[#allocation2 + $0x82] sm:$0xff]
  %v1030 = vld [vmem:[#allocation2 + $0x8a] sm:$0xff]
  %v1031 = vld [vmem:[#allocation2 + $0x92] sm:$0xff]
  %v1032 = vld [vmem:[#allocation2 + $0x9a] sm:$0xff]
  %v1033 = vld [vmem:[#allocation2 + $0xa2] sm:$0xff]
  %v1034 = vld [vmem:[#allocation2 + $0xaa] sm:$0xff]
  %v1035 = vld [vmem:[#allocation2 + $0xb2] sm:$0xff]
  %v1036 = vld [vmem:[#allocation2 + $0xba] sm:$0xff]
  %v1037 = vld [vmem:[#allocation2 + $0xc2] sm:$0xff]
  %v1038 = vld [vmem:[#allocation2 + $0xca] sm:$0xff]
  %v1039 = vld [vmem:[#allocation2 + $0xd2] sm:$0xff]
  %v1040 = vld [vmem:[#allocation2 + $0xda] sm:$0xff]
  %v1041 = vld [vmem:[#allocation2 + $0xe2] sm:$0xff]
  %v1042 = vld [vmem:[#allocation2 + $0xea] sm:$0xff]
  %v1043 = vld [vmem:[#allocation2 + $0xf2] sm:$0xff]
  %v1044 = vld [vmem:[#allocation2 + $0xfa] sm:$0xff]
  %v1045 = vpack.c.bf16 %v1014, %v1013
  %v1046 = vpack.c.bf16 %v1016, %v1015
  %v1047 = vpack.c.bf16 %v1018, %v1017
  %v1048 = vpack.c.bf16 %v1020, %v1019
  %v1049 = vpack.c.bf16 %v1022, %v1021
  %v1050 = vpack.c.bf16 %v1024, %v1023
  %v1051 = vpack.c.bf16 %v1026, %v1025
  %v1052 = vpack.c.bf16 %v1028, %v1027
  %v1053 = vpack.c.bf16 %v1030, %v1029
  %v1054 = vpack.c.bf16 %v1032, %v1031
  %v1055 = vpack.c.bf16 %v1034, %v1033
  %v1056 = vpack.c.bf16 %v1036, %v1035
  %v1057 = vpack.c.bf16 %v1038, %v1037
  %v1058 = vpack.c.bf16 %v1040, %v1039
  %v1059 = vpack.c.bf16 %v1042, %v1041
  %v1060 = vpack.c.bf16 %v1044, %v1043
  %s1061 = scalar_lea.vmem %s1, 32
  %v1062 = vld [vmem:[%s1061] sm:$0xf]
  %v1063 = vld [vmem:[%s1061 + $0x4] sm:$0xf]
  %v1064 = vld [vmem:[%s1061 + $0x8] sm:$0xf]
  %v1065 = vld [vmem:[%s1061 + $0xc] sm:$0xf]
  %v1070 = vunpack.c.l.b16 %v1062
  %v1071 = vunpack.c.l.b16 %v1063
  %v1072 = vunpack.c.l.b16 %v1064
  %v1073 = vunpack.c.l.b16 %v1065
  %v1074 = vpack.c.b16 %v1071, %v1070
  %v1075 = vpack.c.b16 %v1073, %v1072
  %v1079 = vsel %vm77, %v1045, 0
  %v1082 = vsel %vm77, %v1046, 0
  %v1085 = vsel %vm77, %v1047, 0
  %v1088 = vsel %vm77, %v1048, 0
  %v1091 = vsel %vm77, %v1049, 0
  %v1094 = vsel %vm77, %v1050, 0
  %v1097 = vsel %vm77, %v1051, 0
  %v1100 = vsel %vm77, %v1052, 0
  %v1103 = vsel %vm77, %v1053, 0
  %v1106 = vsel %vm77, %v1054, 0
  %v1109 = vsel %vm77, %v1055, 0
  %v1112 = vsel %vm77, %v1056, 0
  %v1115 = vsel %vm77, %v1057, 0
  %v1118 = vsel %vm77, %v1058, 0
  %v1121 = vsel %vm77, %v1059, 0
  %v1124 = vsel %vm77, %v1060, 0
  %1126 = vmatprep.subr.bf16.mxu0 0
  %1127 = vmatpush1.bf16.msra.mxu0 %v1074
  %1128 = vmatprep.subr.bf16.mxu0 0
  %1129 = vmatpush1.bf16.msra.mxu0 %v1075
  %1130 = vmatprep.subr.bf16.mxu0 0
  %1131 = vmatpush1.bf16.msra.mxu0 0
  %1132 = vmatprep.subr.bf16.mxu0 0
  %1133 = vmatpush1.bf16.msra.mxu0 0
  %1134 = vmatprep.subr.bf16.mxu0 0
  %1135 = vmatpush1.bf16.msra.mxu0 0
  %1136 = vmatprep.subr.bf16.mxu0 0
  %1137 = vmatpush1.bf16.msra.mxu0 0
  %1138 = vmatprep.subr.bf16.mxu0 0
  %1139 = vmatpush1.bf16.msra.mxu0 0
  %1140 = vmatprep.subr.bf16.mxu0 0
  %1141 = vmatpush1.bf16.msra.mxu0 0
  %1142 = vmatprep.subr.bf16.mxu0 0
  %1143 = vmatpush1.bf16.msra.mxu0 0
  %1144 = vmatprep.subr.bf16.mxu0 0
  %1145 = vmatpush1.bf16.msra.mxu0 0
  %1146 = vmatprep.subr.bf16.mxu0 0
  %1147 = vmatpush1.bf16.msra.mxu0 0
  %1148 = vmatprep.subr.bf16.mxu0 0
  %1149 = vmatpush1.bf16.msra.mxu0 0
  %1150 = vmatprep.subr.bf16.mxu0 0
  %1151 = vmatpush1.bf16.msra.mxu0 0
  %1152 = vmatprep.subr.bf16.mxu0 0
  %1153 = vmatpush1.bf16.msra.mxu0 0
  %1154 = vmatprep.subr.bf16.mxu0 0
  %1155 = vmatpush1.bf16.msra.mxu0 0
  %1156 = vmatprep.subr.bf16.mxu0 0
  %1157 = vmatpush1.bf16.msra.mxu0 0
  %1158 = vmatprep.mubr.bf16.mxu0 0
  %1159 = vmatmul.mubr.bf16.gmra.mrb[0].mxu0 %v1079
  %v1160 = vpop.f32.mrb[0].mxu0
  %v1161 = vadd.f32 0.0, %v1160
  %v1162 = vpop.f32.mrb[0].mxu0
  %v1163 = vpop.f32.mrb[0].mxu0
  %v1164 = vadd.f32 0.0, %v1163
  %v1165 = vpop.f32.mrb[0].mxu0
  %1166 = vmatprep.mubr.bf16.mxu0 0
  %1167 = vmatmul.mubr.bf16.gmra.mrb[0].mxu0 %v1082
  %v1168 = vpop.f32.mrb[0].mxu0
  %v1169 = vadd.f32 0.0, %v1168
  %v1170 = vpop.f32.mrb[0].mxu0
  %v1171 = vpop.f32.mrb[0].mxu0
  %v1172 = vadd.f32 0.0, %v1171
  %v1173 = vpop.f32.mrb[0].mxu0
  %1174 = vmatprep.mubr.bf16.mxu0 0
  %1175 = vmatmul.mubr.bf16.gmra.mrb[0].mxu0 %v1085
  %v1176 = vpop.f32.mrb[0].mxu0
  %v1177 = vadd.f32 0.0, %v1176
  %v1178 = vpop.f32.mrb[0].mxu0
  %v1179 = vpop.f32.mrb[0].mxu0
  %v1180 = vadd.f32 0.0, %v1179
  %v1181 = vpop.f32.mrb[0].mxu0
  %1182 = vmatprep.mubr.bf16.mxu0 0
  %1183 = vmatmul.mubr.bf16.gmra.mrb[0].mxu0 %v1088
  %v1184 = vpop.f32.mrb[0].mxu0
  %v1185 = vadd.f32 0.0, %v1184
  %v1186 = vpop.f32.mrb[0].mxu0
  %v1187 = vpop.f32.mrb[0].mxu0
  %v1188 = vadd.f32 0.0, %v1187
  %v1189 = vpop.f32.mrb[0].mxu0
  %1190 = vmatprep.mubr.bf16.mxu0 0
  %1191 = vmatmul.mubr.bf16.gmra.mrb[0].mxu0 %v1091
  %v1192 = vpop.f32.mrb[0].mxu0
  %v1193 = vadd.f32 0.0, %v1192
  %v1194 = vpop.f32.mrb[0].mxu0
  %v1195 = vpop.f32.mrb[0].mxu0
  %v1196 = vadd.f32 0.0, %v1195
  %v1197 = vpop.f32.mrb[0].mxu0
  %1198 = vmatprep.mubr.bf16.mxu0 0
  %1199 = vmatmul.mubr.bf16.gmra.mrb[0].mxu0 %v1094
  %v1200 = vpop.f32.mrb[0].mxu0
  %v1201 = vadd.f32 0.0, %v1200
  %v1202 = vpop.f32.mrb[0].mxu0
  %v1203 = vpop.f32.mrb[0].mxu0
  %v1204 = vadd.f32 0.0, %v1203
  %v1205 = vpop.f32.mrb[0].mxu0
  %1206 = vmatprep.mubr.bf16.mxu0 0
  %1207 = vmatmul.mubr.bf16.gmra.mrb[0].mxu0 %v1097
  %v1208 = vpop.f32.mrb[0].mxu0
  %v1209 = vadd.f32 0.0, %v1208
  %v1210 = vpop.f32.mrb[0].mxu0
  %v1211 = vpop.f32.mrb[0].mxu0
  %v1212 = vadd.f32 0.0, %v1211
  %v1213 = vpop.f32.mrb[0].mxu0
  %1214 = vmatprep.mubr.bf16.mxu0 0
  %1215 = vmatmul.mubr.bf16.gmra.mrb[0].mxu0 %v1100
  %v1216 = vpop.f32.mrb[0].mxu0
  %v1217 = vadd.f32 0.0, %v1216
  %v1218 = vpop.f32.mrb[0].mxu0
  %v1219 = vpop.f32.mrb[0].mxu0
  %v1220 = vadd.f32 0.0, %v1219
  %v1221 = vpop.f32.mrb[0].mxu0
  %1222 = vmatprep.mubr.bf16.mxu0 0
  %1223 = vmatmul.mubr.bf16.gmra.mrb[0].mxu0 %v1103
  %v1224 = vpop.f32.mrb[0].mxu0
  %v1225 = vadd.f32 0.0, %v1224
  %v1226 = vpop.f32.mrb[0].mxu0
  %v1227 = vpop.f32.mrb[0].mxu0
  %v1228 = vadd.f32 0.0, %v1227
  %v1229 = vpop.f32.mrb[0].mxu0
  %1230 = vmatprep.mubr.bf16.mxu0 0
  %1231 = vmatmul.mubr.bf16.gmra.mrb[0].mxu0 %v1106
  %v1232 = vpop.f32.mrb[0].mxu0
  %v1233 = vadd.f32 0.0, %v1232
  %v1234 = vpop.f32.mrb[0].mxu0
  %v1235 = vpop.f32.mrb[0].mxu0
  %v1236 = vadd.f32 0.0, %v1235
  %v1237 = vpop.f32.mrb[0].mxu0
  %1238 = vmatprep.mubr.bf16.mxu0 0
  %1239 = vmatmul.mubr.bf16.gmra.mrb[0].mxu0 %v1109
  %v1240 = vpop.f32.mrb[0].mxu0
  %v1241 = vadd.f32 0.0, %v1240
  %v1242 = vpop.f32.mrb[0].mxu0
  %v1243 = vpop.f32.mrb[0].mxu0
  %v1244 = vadd.f32 0.0, %v1243
  %v1245 = vpop.f32.mrb[0].mxu0
  %1246 = vmatprep.mubr.bf16.mxu0 0
  %1247 = vmatmul.mubr.bf16.gmra.mrb[0].mxu0 %v1112
  %v1248 = vpop.f32.mrb[0].mxu0
  %v1249 = vadd.f32 0.0, %v1248
  %v1250 = vpop.f32.mrb[0].mxu0
  %v1251 = vpop.f32.mrb[0].mxu0
  %v1252 = vadd.f32 0.0, %v1251
  %v1253 = vpop.f32.mrb[0].mxu0
  %1254 = vmatprep.mubr.bf16.mxu0 0
  %1255 = vmatmul.mubr.bf16.gmra.mrb[0].mxu0 %v1115
  %v1256 = vpop.f32.mrb[0].mxu0
  %v1257 = vadd.f32 0.0, %v1256
  %v1258 = vpop.f32.mrb[0].mxu0
  %v1259 = vpop.f32.mrb[0].mxu0
  %v1260 = vadd.f32 0.0, %v1259
  %v1261 = vpop.f32.mrb[0].mxu0
  %1262 = vmatprep.mubr.bf16.mxu0 0
  %1263 = vmatmul.mubr.bf16.gmra.mrb[0].mxu0 %v1118
  %v1264 = vpop.f32.mrb[0].mxu0
  %v1265 = vadd.f32 0.0, %v1264
  %v1266 = vpop.f32.mrb[0].mxu0
  %v1267 = vpop.f32.mrb[0].mxu0
  %v1268 = vadd.f32 0.0, %v1267
  %v1269 = vpop.f32.mrb[0].mxu0
  %1270 = vmatprep.mubr.bf16.mxu0 0
  %1271 = vmatmul.mubr.bf16.gmra.mrb[0].mxu0 %v1121
  %v1272 = vpop.f32.mrb[0].mxu0
  %v1273 = vadd.f32 0.0, %v1272
  %v1274 = vpop.f32.mrb[0].mxu0
  %v1275 = vpop.f32.mrb[0].mxu0
  %v1276 = vadd.f32 0.0, %v1275
  %v1277 = vpop.f32.mrb[0].mxu0
  %1278 = vmatprep.mubr.bf16.mxu0 0
  %1279 = vmatmul.mubr.bf16.gmra.mrb[0].mxu0 %v1124
  %v1280 = vpop.f32.mrb[0].mxu0
  %v1281 = vadd.f32 0.0, %v1280
  %v1282 = vpop.f32.mrb[0].mxu0
  %v1283 = vpop.f32.mrb[0].mxu0
  %v1284 = vadd.f32 0.0, %v1283
  %v1285 = vpop.f32.mrb[0].mxu0
  %1286 = vdwg.mxu0
  %s1287 = scalar_lea.vmem %s2, 32
  %v1288 = vld [vmem:[%s1287] sm:$0xf]
  %v1289 = vld [vmem:[%s1287 + $0x4] sm:$0xf]
  %v1290 = vld [vmem:[%s1287 + $0x8] sm:$0xf]
  %v1291 = vld [vmem:[%s1287 + $0xc] sm:$0xf]
  %v1296 = vunpack.c.l.b16 %v1288
  %v1297 = vunpack.c.l.b16 %v1289
  %v1298 = vunpack.c.l.b16 %v1290
  %v1299 = vunpack.c.l.b16 %v1291
  %v1300 = vpack.c.b16 %v1297, %v1296
  %v1301 = vpack.c.b16 %v1299, %v1298
  %1304 = vmatprep.subr.bf16.mxu0 0
  %1305 = vmatpush1.bf16.msra.mxu0 %v1300
  %1306 = vmatprep.subr.bf16.mxu0 0
  %1307 = vmatpush1.bf16.msra.mxu0 %v1301
  %1308 = vmatprep.subr.bf16.mxu0 0
  %1309 = vmatpush1.bf16.msra.mxu0 0
  %1310 = vmatprep.subr.bf16.mxu0 0
  %1311 = vmatpush1.bf16.msra.mxu0 0
  %1312 = vmatprep.subr.bf16.mxu0 0
  %1313 = vmatpush1.bf16.msra.mxu0 0
  %1314 = vmatprep.subr.bf16.mxu0 0
  %1315 = vmatpush1.bf16.msra.mxu0 0
  %1316 = vmatprep.subr.bf16.mxu0 0
  %1317 = vmatpush1.bf16.msra.mxu0 0
  %1318 = vmatprep.subr.bf16.mxu0 0
  %1319 = vmatpush1.bf16.msra.mxu0 0
  %1320 = vmatprep.subr.bf16.mxu0 0
  %1321 = vmatpush1.bf16.msra.mxu0 0
  %1322 = vmatprep.subr.bf16.mxu0 0
  %1323 = vmatpush1.bf16.msra.mxu0 0
  %1324 = vmatprep.subr.bf16.mxu0 0
  %1325 = vmatpush1.bf16.msra.mxu0 0
  %1326 = vmatprep.subr.bf16.mxu0 0
  %1327 = vmatpush1.bf16.msra.mxu0 0
  %1328 = vmatprep.subr.bf16.mxu0 0
  %1329 = vmatpush1.bf16.msra.mxu0 0
  %1330 = vmatprep.subr.bf16.mxu0 0
  %1331 = vmatpush1.bf16.msra.mxu0 0
  %1332 = vmatprep.subr.bf16.mxu0 0
  %1333 = vmatpush1.bf16.msra.mxu0 0
  %1334 = vmatprep.subr.bf16.mxu0 0
  %1335 = vmatpush1.bf16.msra.mxu0 0
  %1336 = vmatprep.mubr.bf16.mxu0 0
  %1337 = vmatmul.mubr.bf16.gmra.mrb[0].mxu0 %v1079
  %v1338 = vpop.f32.mrb[0].mxu0
  %v1339 = vadd.f32 0.0, %v1338
  %v1340 = vpop.f32.mrb[0].mxu0
  %v1341 = vpop.f32.mrb[0].mxu0
  %v1342 = vadd.f32 0.0, %v1341
  %v1343 = vpop.f32.mrb[0].mxu0
  %1344 = vmatprep.mubr.bf16.mxu0 0
  %1345 = vmatmul.mubr.bf16.gmra.mrb[0].mxu0 %v1082
  %v1346 = vpop.f32.mrb[0].mxu0
  %v1347 = vadd.f32 0.0, %v1346
  %v1348 = vpop.f32.mrb[0].mxu0
  %v1349 = vpop.f32.mrb[0].mxu0
  %v1350 = vadd.f32 0.0, %v1349
  %v1351 = vpop.f32.mrb[0].mxu0
  %1352 = vmatprep.mubr.bf16.mxu0 0
  %1353 = vmatmul.mubr.bf16.gmra.mrb[0].mxu0 %v1085
  %v1354 = vpop.f32.mrb[0].mxu0
  %v1355 = vadd.f32 0.0, %v1354
  %v1356 = vpop.f32.mrb[0].mxu0
  %v1357 = vpop.f32.mrb[0].mxu0
  %v1358 = vadd.f32 0.0, %v1357
  %v1359 = vpop.f32.mrb[0].mxu0
  %1360 = vmatprep.mubr.bf16.mxu0 0
  %1361 = vmatmul.mubr.bf16.gmra.mrb[0].mxu0 %v1088
  %v1362 = vpop.f32.mrb[0].mxu0
  %v1363 = vadd.f32 0.0, %v1362
  %v1364 = vpop.f32.mrb[0].mxu0
  %v1365 = vpop.f32.mrb[0].mxu0
  %v1366 = vadd.f32 0.0, %v1365
  %v1367 = vpop.f32.mrb[0].mxu0
  %1368 = vmatprep.mubr.bf16.mxu0 0
  %1369 = vmatmul.mubr.bf16.gmra.mrb[0].mxu0 %v1091
  %v1370 = vpop.f32.mrb[0].mxu0
  %v1371 = vadd.f32 0.0, %v1370
  %v1372 = vpop.f32.mrb[0].mxu0
  %v1373 = vpop.f32.mrb[0].mxu0
  %v1374 = vadd.f32 0.0, %v1373
  %v1375 = vpop.f32.mrb[0].mxu0
  %1376 = vmatprep.mubr.bf16.mxu0 0
  %1377 = vmatmul.mubr.bf16.gmra.mrb[0].mxu0 %v1094
  %v1378 = vpop.f32.mrb[0].mxu0
  %v1379 = vadd.f32 0.0, %v1378
  %v1380 = vpop.f32.mrb[0].mxu0
  %v1381 = vpop.f32.mrb[0].mxu0
  %v1382 = vadd.f32 0.0, %v1381
  %v1383 = vpop.f32.mrb[0].mxu0
  %1384 = vmatprep.mubr.bf16.mxu0 0
  %1385 = vmatmul.mubr.bf16.gmra.mrb[0].mxu0 %v1097
  %v1386 = vpop.f32.mrb[0].mxu0
  %v1387 = vadd.f32 0.0, %v1386
  %v1388 = vpop.f32.mrb[0].mxu0
  %v1389 = vpop.f32.mrb[0].mxu0
  %v1390 = vadd.f32 0.0, %v1389
  %v1391 = vpop.f32.mrb[0].mxu0
  %1392 = vmatprep.mubr.bf16.mxu0 0
  %1393 = vmatmul.mubr.bf16.gmra.mrb[0].mxu0 %v1100
  %v1394 = vpop.f32.mrb[0].mxu0
  %v1395 = vadd.f32 0.0, %v1394
  %v1396 = vpop.f32.mrb[0].mxu0
  %v1397 = vpop.f32.mrb[0].mxu0
  %v1398 = vadd.f32 0.0, %v1397
  %v1399 = vpop.f32.mrb[0].mxu0
  %1400 = vmatprep.mubr.bf16.mxu0 0
  %1401 = vmatmul.mubr.bf16.gmra.mrb[0].mxu0 %v1103
  %v1402 = vpop.f32.mrb[0].mxu0
  %v1403 = vadd.f32 0.0, %v1402
  %v1404 = vpop.f32.mrb[0].mxu0
  %v1405 = vpop.f32.mrb[0].mxu0
  %v1406 = vadd.f32 0.0, %v1405
  %v1407 = vpop.f32.mrb[0].mxu0
  %1408 = vmatprep.mubr.bf16.mxu0 0
  %1409 = vmatmul.mubr.bf16.gmra.mrb[0].mxu0 %v1106
  %v1410 = vpop.f32.mrb[0].mxu0
  %v1411 = vadd.f32 0.0, %v1410
  %v1412 = vpop.f32.mrb[0].mxu0
  %v1413 = vpop.f32.mrb[0].mxu0
  %v1414 = vadd.f32 0.0, %v1413
  %v1415 = vpop.f32.mrb[0].mxu0
  %1416 = vmatprep.mubr.bf16.mxu0 0
  %1417 = vmatmul.mubr.bf16.gmra.mrb[0].mxu0 %v1109
  %v1418 = vpop.f32.mrb[0].mxu0
  %v1419 = vadd.f32 0.0, %v1418
  %v1420 = vpop.f32.mrb[0].mxu0
  %v1421 = vpop.f32.mrb[0].mxu0
  %v1422 = vadd.f32 0.0, %v1421
  %v1423 = vpop.f32.mrb[0].mxu0
  %1424 = vmatprep.mubr.bf16.mxu0 0
  %1425 = vmatmul.mubr.bf16.gmra.mrb[0].mxu0 %v1112
  %v1426 = vpop.f32.mrb[0].mxu0
  %v1427 = vadd.f32 0.0, %v1426
  %v1428 = vpop.f32.mrb[0].mxu0
  %v1429 = vpop.f32.mrb[0].mxu0
  %v1430 = vadd.f32 0.0, %v1429
  %v1431 = vpop.f32.mrb[0].mxu0
  %1432 = vmatprep.mubr.bf16.mxu0 0
  %1433 = vmatmul.mubr.bf16.gmra.mrb[0].mxu0 %v1115
  %v1434 = vpop.f32.mrb[0].mxu0
  %v1435 = vadd.f32 0.0, %v1434
  %v1436 = vpop.f32.mrb[0].mxu0
  %v1437 = vpop.f32.mrb[0].mxu0
  %v1438 = vadd.f32 0.0, %v1437
  %v1439 = vpop.f32.mrb[0].mxu0
  %1440 = vmatprep.mubr.bf16.mxu0 0
  %1441 = vmatmul.mubr.bf16.gmra.mrb[0].mxu0 %v1118
  %v1442 = vpop.f32.mrb[0].mxu0
  %v1443 = vadd.f32 0.0, %v1442
  %v1444 = vpop.f32.mrb[0].mxu0
  %v1445 = vpop.f32.mrb[0].mxu0
  %v1446 = vadd.f32 0.0, %v1445
  %v1447 = vpop.f32.mrb[0].mxu0
  %1448 = vmatprep.mubr.bf16.mxu0 0
  %1449 = vmatmul.mubr.bf16.gmra.mrb[0].mxu0 %v1121
  %v1450 = vpop.f32.mrb[0].mxu0
  %v1451 = vadd.f32 0.0, %v1450
  %v1452 = vpop.f32.mrb[0].mxu0
  %v1453 = vpop.f32.mrb[0].mxu0
  %v1454 = vadd.f32 0.0, %v1453
  %v1455 = vpop.f32.mrb[0].mxu0
  %1456 = vmatprep.mubr.bf16.mxu0 0
  %1457 = vmatmul.mubr.bf16.gmra.mrb[0].mxu0 %v1124
  %v1458 = vpop.f32.mrb[0].mxu0
  %v1459 = vadd.f32 0.0, %v1458
  %v1460 = vpop.f32.mrb[0].mxu0
  %v1461 = vpop.f32.mrb[0].mxu0
  %v1462 = vadd.f32 0.0, %v1461
  %v1463 = vpop.f32.mrb[0].mxu0
  %1464 = vdwg.mxu0
  %v1465 = vadd.f32 %v714, %v1161
  %v1466 = vadd.f32 %v717, %v1164
  %v1467 = vadd.f32 %v722, %v1169
  %v1468 = vadd.f32 %v725, %v1172
  %v1469 = vadd.f32 %v730, %v1177
  %v1470 = vadd.f32 %v733, %v1180
  %v1471 = vadd.f32 %v738, %v1185
  %v1472 = vadd.f32 %v741, %v1188
  %v1473 = vadd.f32 %v746, %v1193
  %v1474 = vadd.f32 %v749, %v1196
  %v1475 = vadd.f32 %v754, %v1201
  %v1476 = vadd.f32 %v757, %v1204
  %v1477 = vadd.f32 %v762, %v1209
  %v1478 = vadd.f32 %v765, %v1212
  %v1479 = vadd.f32 %v770, %v1217
  %v1480 = vadd.f32 %v773, %v1220
  %v1481 = vadd.f32 %v778, %v1225
  %v1482 = vadd.f32 %v781, %v1228
  %v1483 = vadd.f32 %v786, %v1233
  %v1484 = vadd.f32 %v789, %v1236
  %v1485 = vadd.f32 %v794, %v1241
  %v1486 = vadd.f32 %v797, %v1244
  %v1487 = vadd.f32 %v802, %v1249
  %v1488 = vadd.f32 %v805, %v1252
  %v1489 = vadd.f32 %v810, %v1257
  %v1490 = vadd.f32 %v813, %v1260
  %v1491 = vadd.f32 %v818, %v1265
  %v1492 = vadd.f32 %v821, %v1268
  %v1493 = vadd.f32 %v826, %v1273
  %v1494 = vadd.f32 %v829, %v1276
  %v1495 = vadd.f32 %v834, %v1281
  %v1496 = vadd.f32 %v837, %v1284
  %v1497 = vadd.f32 %v887, %v1339
  %v1498 = vadd.f32 %v890, %v1342
  %v1499 = vadd.f32 %v895, %v1347
  %v1500 = vadd.f32 %v898, %v1350
  %v1501 = vadd.f32 %v903, %v1355
  %v1502 = vadd.f32 %v906, %v1358
  %v1503 = vadd.f32 %v911, %v1363
  %v1504 = vadd.f32 %v914, %v1366
  %v1505 = vadd.f32 %v919, %v1371
  %v1506 = vadd.f32 %v922, %v1374
  %v1507 = vadd.f32 %v927, %v1379
  %v1508 = vadd.f32 %v930, %v1382
  %v1509 = vadd.f32 %v935, %v1387
  %v1510 = vadd.f32 %v938, %v1390
  %v1511 = vadd.f32 %v943, %v1395
  %v1512 = vadd.f32 %v946, %v1398
  %v1513 = vadd.f32 %v951, %v1403
  %v1514 = vadd.f32 %v954, %v1406
  %v1515 = vadd.f32 %v959, %v1411
  %v1516 = vadd.f32 %v962, %v1414
  %v1517 = vadd.f32 %v967, %v1419
  %v1518 = vadd.f32 %v970, %v1422
  %v1519 = vadd.f32 %v975, %v1427
  %v1520 = vadd.f32 %v978, %v1430
  %v1521 = vadd.f32 %v983, %v1435
  %v1522 = vadd.f32 %v986, %v1438
  %v1523 = vadd.f32 %v991, %v1443
  %v1524 = vadd.f32 %v994, %v1446
  %v1525 = vadd.f32 %v999, %v1451
  %v1526 = vadd.f32 %v1002, %v1454
  %v1527 = vadd.f32 %v1007, %v1459
  %v1528 = vadd.f32 %v1010, %v1462
  %v1529 = vld [vmem:[#allocation2 + $0x3] sm:$0xff]
  %v1530 = vld [vmem:[#allocation2 + $0xb] sm:$0xff]
  %v1531 = vld [vmem:[#allocation2 + $0x13] sm:$0xff]
  %v1532 = vld [vmem:[#allocation2 + $0x1b] sm:$0xff]
  %v1533 = vld [vmem:[#allocation2 + $0x23] sm:$0xff]
  %v1534 = vld [vmem:[#allocation2 + $0x2b] sm:$0xff]
  %v1535 = vld [vmem:[#allocation2 + $0x33] sm:$0xff]
  %v1536 = vld [vmem:[#allocation2 + $0x3b] sm:$0xff]
  %v1537 = vld [vmem:[#allocation2 + $0x43] sm:$0xff]
  %v1538 = vld [vmem:[#allocation2 + $0x4b] sm:$0xff]
  %v1539 = vld [vmem:[#allocation2 + $0x53] sm:$0xff]
  %v1540 = vld [vmem:[#allocation2 + $0x5b] sm:$0xff]
  %v1541 = vld [vmem:[#allocation2 + $0x63] sm:$0xff]
  %v1542 = vld [vmem:[#allocation2 + $0x6b] sm:$0xff]
  %v1543 = vld [vmem:[#allocation2 + $0x73] sm:$0xff]
  %v1544 = vld [vmem:[#allocation2 + $0x7b] sm:$0xff]
  %v1545 = vld [vmem:[#allocation2 + $0x83] sm:$0xff]
  %v1546 = vld [vmem:[#allocation2 + $0x8b] sm:$0xff]
  %v1547 = vld [vmem:[#allocation2 + $0x93] sm:$0xff]
  %v1548 = vld [vmem:[#allocation2 + $0x9b] sm:$0xff]
  %v1549 = vld [vmem:[#allocation2 + $0xa3] sm:$0xff]
  %v1550 = vld [vmem:[#allocation2 + $0xab] sm:$0xff]
  %v1551 = vld [vmem:[#allocation2 + $0xb3] sm:$0xff]
  %v1552 = vld [vmem:[#allocation2 + $0xbb] sm:$0xff]
  %v1553 = vld [vmem:[#allocation2 + $0xc3] sm:$0xff]
  %v1554 = vld [vmem:[#allocation2 + $0xcb] sm:$0xff]
  %v1555 = vld [vmem:[#allocation2 + $0xd3] sm:$0xff]
  %v1556 = vld [vmem:[#allocation2 + $0xdb] sm:$0xff]
  %v1557 = vld [vmem:[#allocation2 + $0xe3] sm:$0xff]
  %v1558 = vld [vmem:[#allocation2 + $0xeb] sm:$0xff]
  %v1559 = vld [vmem:[#allocation2 + $0xf3] sm:$0xff]
  %v1560 = vld [vmem:[#allocation2 + $0xfb] sm:$0xff]
  %v1561 = vpack.c.bf16 %v1530, %v1529
  %v1562 = vpack.c.bf16 %v1532, %v1531
  %v1563 = vpack.c.bf16 %v1534, %v1533
  %v1564 = vpack.c.bf16 %v1536, %v1535
  %v1565 = vpack.c.bf16 %v1538, %v1537
  %v1566 = vpack.c.bf16 %v1540, %v1539
  %v1567 = vpack.c.bf16 %v1542, %v1541
  %v1568 = vpack.c.bf16 %v1544, %v1543
  %v1569 = vpack.c.bf16 %v1546, %v1545
  %v1570 = vpack.c.bf16 %v1548, %v1547
  %v1571 = vpack.c.bf16 %v1550, %v1549
  %v1572 = vpack.c.bf16 %v1552, %v1551
  %v1573 = vpack.c.bf16 %v1554, %v1553
  %v1574 = vpack.c.bf16 %v1556, %v1555
  %v1575 = vpack.c.bf16 %v1558, %v1557
  %v1576 = vpack.c.bf16 %v1560, %v1559
  %s1577 = scalar_lea.vmem %s1, 48
  %v1578 = vld [vmem:[%s1577] sm:$0xf]
  %v1579 = vld [vmem:[%s1577 + $0x4] sm:$0xf]
  %v1580 = vld [vmem:[%s1577 + $0x8] sm:$0xf]
  %v1581 = vld [vmem:[%s1577 + $0xc] sm:$0xf]
  %v1586 = vunpack.c.l.b16 %v1578
  %v1587 = vunpack.c.l.b16 %v1579
  %v1588 = vunpack.c.l.b16 %v1580
  %v1589 = vunpack.c.l.b16 %v1581
  %v1590 = vpack.c.b16 %v1587, %v1586
  %v1591 = vpack.c.b16 %v1589, %v1588
  %v1595 = vsel %vm77, %v1561, 0
  %v1598 = vsel %vm77, %v1562, 0
  %v1601 = vsel %vm77, %v1563, 0
  %v1604 = vsel %vm77, %v1564, 0
  %v1607 = vsel %vm77, %v1565, 0
  %v1610 = vsel %vm77, %v1566, 0
  %v1613 = vsel %vm77, %v1567, 0
  %v1616 = vsel %vm77, %v1568, 0
  %v1619 = vsel %vm77, %v1569, 0
  %v1622 = vsel %vm77, %v1570, 0
  %v1625 = vsel %vm77, %v1571, 0
  %v1628 = vsel %vm77, %v1572, 0
  %v1631 = vsel %vm77, %v1573, 0
  %v1634 = vsel %vm77, %v1574, 0
  %v1637 = vsel %vm77, %v1575, 0
  %v1640 = vsel %vm77, %v1576, 0
  %1642 = vmatprep.subr.bf16.mxu0 0
  %1643 = vmatpush1.bf16.msra.mxu0 %v1590
  %1644 = vmatprep.subr.bf16.mxu0 0
  %1645 = vmatpush1.bf16.msra.mxu0 %v1591
  %1646 = vmatprep.subr.bf16.mxu0 0
  %1647 = vmatpush1.bf16.msra.mxu0 0
  %1648 = vmatprep.subr.bf16.mxu0 0
  %1649 = vmatpush1.bf16.msra.mxu0 0
  %1650 = vmatprep.subr.bf16.mxu0 0
  %1651 = vmatpush1.bf16.msra.mxu0 0
  %1652 = vmatprep.subr.bf16.mxu0 0
  %1653 = vmatpush1.bf16.msra.mxu0 0
  %1654 = vmatprep.subr.bf16.mxu0 0
  %1655 = vmatpush1.bf16.msra.mxu0 0
  %1656 = vmatprep.subr.bf16.mxu0 0
  %1657 = vmatpush1.bf16.msra.mxu0 0
  %1658 = vmatprep.subr.bf16.mxu0 0
  %1659 = vmatpush1.bf16.msra.mxu0 0
  %1660 = vmatprep.subr.bf16.mxu0 0
  %1661 = vmatpush1.bf16.msra.mxu0 0
  %1662 = vmatprep.subr.bf16.mxu0 0
  %1663 = vmatpush1.bf16.msra.mxu0 0
  %1664 = vmatprep.subr.bf16.mxu0 0
  %1665 = vmatpush1.bf16.msra.mxu0 0
  %1666 = vmatprep.subr.bf16.mxu0 0
  %1667 = vmatpush1.bf16.msra.mxu0 0
  %1668 = vmatprep.subr.bf16.mxu0 0
  %1669 = vmatpush1.bf16.msra.mxu0 0
  %1670 = vmatprep.subr.bf16.mxu0 0
  %1671 = vmatpush1.bf16.msra.mxu0 0
  %1672 = vmatprep.subr.bf16.mxu0 0
  %1673 = vmatpush1.bf16.msra.mxu0 0
  %1674 = vmatprep.mubr.bf16.mxu0 0
  %1675 = vmatmul.mubr.bf16.gmra.mrb[0].mxu0 %v1595
  %v1676 = vpop.f32.mrb[0].mxu0
  %v1677 = vadd.f32 0.0, %v1676
  %v1678 = vpop.f32.mrb[0].mxu0
  %v1679 = vpop.f32.mrb[0].mxu0
  %v1680 = vadd.f32 0.0, %v1679
  %v1681 = vpop.f32.mrb[0].mxu0
  %1682 = vmatprep.mubr.bf16.mxu0 0
  %1683 = vmatmul.mubr.bf16.gmra.mrb[0].mxu0 %v1598
  %v1684 = vpop.f32.mrb[0].mxu0
  %v1685 = vadd.f32 0.0, %v1684
  %v1686 = vpop.f32.mrb[0].mxu0
  %v1687 = vpop.f32.mrb[0].mxu0
  %v1688 = vadd.f32 0.0, %v1687
  %v1689 = vpop.f32.mrb[0].mxu0
  %1690 = vmatprep.mubr.bf16.mxu0 0
  %1691 = vmatmul.mubr.bf16.gmra.mrb[0].mxu0 %v1601
  %v1692 = vpop.f32.mrb[0].mxu0
  %v1693 = vadd.f32 0.0, %v1692
  %v1694 = vpop.f32.mrb[0].mxu0
  %v1695 = vpop.f32.mrb[0].mxu0
  %v1696 = vadd.f32 0.0, %v1695
  %v1697 = vpop.f32.mrb[0].mxu0
  %1698 = vmatprep.mubr.bf16.mxu0 0
  %1699 = vmatmul.mubr.bf16.gmra.mrb[0].mxu0 %v1604
  %v1700 = vpop.f32.mrb[0].mxu0
  %v1701 = vadd.f32 0.0, %v1700
  %v1702 = vpop.f32.mrb[0].mxu0
  %v1703 = vpop.f32.mrb[0].mxu0
  %v1704 = vadd.f32 0.0, %v1703
  %v1705 = vpop.f32.mrb[0].mxu0
  %1706 = vmatprep.mubr.bf16.mxu0 0
  %1707 = vmatmul.mubr.bf16.gmra.mrb[0].mxu0 %v1607
  %v1708 = vpop.f32.mrb[0].mxu0
  %v1709 = vadd.f32 0.0, %v1708
  %v1710 = vpop.f32.mrb[0].mxu0
  %v1711 = vpop.f32.mrb[0].mxu0
  %v1712 = vadd.f32 0.0, %v1711
  %v1713 = vpop.f32.mrb[0].mxu0
  %1714 = vmatprep.mubr.bf16.mxu0 0
  %1715 = vmatmul.mubr.bf16.gmra.mrb[0].mxu0 %v1610
  %v1716 = vpop.f32.mrb[0].mxu0
  %v1717 = vadd.f32 0.0, %v1716
  %v1718 = vpop.f32.mrb[0].mxu0
  %v1719 = vpop.f32.mrb[0].mxu0
  %v1720 = vadd.f32 0.0, %v1719
  %v1721 = vpop.f32.mrb[0].mxu0
  %1722 = vmatprep.mubr.bf16.mxu0 0
  %1723 = vmatmul.mubr.bf16.gmra.mrb[0].mxu0 %v1613
  %v1724 = vpop.f32.mrb[0].mxu0
  %v1725 = vadd.f32 0.0, %v1724
  %v1726 = vpop.f32.mrb[0].mxu0
  %v1727 = vpop.f32.mrb[0].mxu0
  %v1728 = vadd.f32 0.0, %v1727
  %v1729 = vpop.f32.mrb[0].mxu0
  %1730 = vmatprep.mubr.bf16.mxu0 0
  %1731 = vmatmul.mubr.bf16.gmra.mrb[0].mxu0 %v1616
  %v1732 = vpop.f32.mrb[0].mxu0
  %v1733 = vadd.f32 0.0, %v1732
  %v1734 = vpop.f32.mrb[0].mxu0
  %v1735 = vpop.f32.mrb[0].mxu0
  %v1736 = vadd.f32 0.0, %v1735
  %v1737 = vpop.f32.mrb[0].mxu0
  %1738 = vmatprep.mubr.bf16.mxu0 0
  %1739 = vmatmul.mubr.bf16.gmra.mrb[0].mxu0 %v1619
  %v1740 = vpop.f32.mrb[0].mxu0
  %v1741 = vadd.f32 0.0, %v1740
  %v1742 = vpop.f32.mrb[0].mxu0
  %v1743 = vpop.f32.mrb[0].mxu0
  %v1744 = vadd.f32 0.0, %v1743
  %v1745 = vpop.f32.mrb[0].mxu0
  %1746 = vmatprep.mubr.bf16.mxu0 0
  %1747 = vmatmul.mubr.bf16.gmra.mrb[0].mxu0 %v1622
  %v1748 = vpop.f32.mrb[0].mxu0
  %v1749 = vadd.f32 0.0, %v1748
  %v1750 = vpop.f32.mrb[0].mxu0
  %v1751 = vpop.f32.mrb[0].mxu0
  %v1752 = vadd.f32 0.0, %v1751
  %v1753 = vpop.f32.mrb[0].mxu0
  %1754 = vmatprep.mubr.bf16.mxu0 0
  %1755 = vmatmul.mubr.bf16.gmra.mrb[0].mxu0 %v1625
  %v1756 = vpop.f32.mrb[0].mxu0
  %v1757 = vadd.f32 0.0, %v1756
  %v1758 = vpop.f32.mrb[0].mxu0
  %v1759 = vpop.f32.mrb[0].mxu0
  %v1760 = vadd.f32 0.0, %v1759
  %v1761 = vpop.f32.mrb[0].mxu0
  %1762 = vmatprep.mubr.bf16.mxu0 0
  %1763 = vmatmul.mubr.bf16.gmra.mrb[0].mxu0 %v1628
  %v1764 = vpop.f32.mrb[0].mxu0
  %v1765 = vadd.f32 0.0, %v1764
  %v1766 = vpop.f32.mrb[0].mxu0
  %v1767 = vpop.f32.mrb[0].mxu0
  %v1768 = vadd.f32 0.0, %v1767
  %v1769 = vpop.f32.mrb[0].mxu0
  %1770 = vmatprep.mubr.bf16.mxu0 0
  %1771 = vmatmul.mubr.bf16.gmra.mrb[0].mxu0 %v1631
  %v1772 = vpop.f32.mrb[0].mxu0
  %v1773 = vadd.f32 0.0, %v1772
  %v1774 = vpop.f32.mrb[0].mxu0
  %v1775 = vpop.f32.mrb[0].mxu0
  %v1776 = vadd.f32 0.0, %v1775
  %v1777 = vpop.f32.mrb[0].mxu0
  %1778 = vmatprep.mubr.bf16.mxu0 0
  %1779 = vmatmul.mubr.bf16.gmra.mrb[0].mxu0 %v1634
  %v1780 = vpop.f32.mrb[0].mxu0
  %v1781 = vadd.f32 0.0, %v1780
  %v1782 = vpop.f32.mrb[0].mxu0
  %v1783 = vpop.f32.mrb[0].mxu0
  %v1784 = vadd.f32 0.0, %v1783
  %v1785 = vpop.f32.mrb[0].mxu0
  %1786 = vmatprep.mubr.bf16.mxu0 0
  %1787 = vmatmul.mubr.bf16.gmra.mrb[0].mxu0 %v1637
  %v1788 = vpop.f32.mrb[0].mxu0
  %v1789 = vadd.f32 0.0, %v1788
  %v1790 = vpop.f32.mrb[0].mxu0
  %v1791 = vpop.f32.mrb[0].mxu0
  %v1792 = vadd.f32 0.0, %v1791
  %v1793 = vpop.f32.mrb[0].mxu0
  %1794 = vmatprep.mubr.bf16.mxu0 0
  %1795 = vmatmul.mubr.bf16.gmra.mrb[0].mxu0 %v1640
  %v1796 = vpop.f32.mrb[0].mxu0
  %v1797 = vadd.f32 0.0, %v1796
  %v1798 = vpop.f32.mrb[0].mxu0
  %v1799 = vpop.f32.mrb[0].mxu0
  %v1800 = vadd.f32 0.0, %v1799
  %v1801 = vpop.f32.mrb[0].mxu0
  %1802 = vdwg.mxu0
  %s1803 = scalar_lea.vmem %s2, 48
  %v1804 = vld [vmem:[%s1803] sm:$0xf]
  %v1805 = vld [vmem:[%s1803 + $0x4] sm:$0xf]
  %v1806 = vld [vmem:[%s1803 + $0x8] sm:$0xf]
  %v1807 = vld [vmem:[%s1803 + $0xc] sm:$0xf]
  %v1812 = vunpack.c.l.b16 %v1804
  %v1813 = vunpack.c.l.b16 %v1805
  %v1814 = vunpack.c.l.b16 %v1806
  %v1815 = vunpack.c.l.b16 %v1807
  %v1816 = vpack.c.b16 %v1813, %v1812
  %v1817 = vpack.c.b16 %v1815, %v1814
  %1820 = vmatprep.subr.bf16.mxu0 0
  %1821 = vmatpush1.bf16.msra.mxu0 %v1816
  %1822 = vmatprep.subr.bf16.mxu0 0
  %1823 = vmatpush1.bf16.msra.mxu0 %v1817
  %1824 = vmatprep.subr.bf16.mxu0 0
  %1825 = vmatpush1.bf16.msra.mxu0 0
  %1826 = vmatprep.subr.bf16.mxu0 0
  %1827 = vmatpush1.bf16.msra.mxu0 0
  %1828 = vmatprep.subr.bf16.mxu0 0
  %1829 = vmatpush1.bf16.msra.mxu0 0
  %1830 = vmatprep.subr.bf16.mxu0 0
  %1831 = vmatpush1.bf16.msra.mxu0 0
  %1832 = vmatprep.subr.bf16.mxu0 0
  %1833 = vmatpush1.bf16.msra.mxu0 0
  %1834 = vmatprep.subr.bf16.mxu0 0
  %1835 = vmatpush1.bf16.msra.mxu0 0
  %1836 = vmatprep.subr.bf16.mxu0 0
  %1837 = vmatpush1.bf16.msra.mxu0 0
  %1838 = vmatprep.subr.bf16.mxu0 0
  %1839 = vmatpush1.bf16.msra.mxu0 0
  %1840 = vmatprep.subr.bf16.mxu0 0
  %1841 = vmatpush1.bf16.msra.mxu0 0
  %1842 = vmatprep.subr.bf16.mxu0 0
  %1843 = vmatpush1.bf16.msra.mxu0 0
  %1844 = vmatprep.subr.bf16.mxu0 0
  %1845 = vmatpush1.bf16.msra.mxu0 0
  %1846 = vmatprep.subr.bf16.mxu0 0
  %1847 = vmatpush1.bf16.msra.mxu0 0
  %1848 = vmatprep.subr.bf16.mxu0 0
  %1849 = vmatpush1.bf16.msra.mxu0 0
  %1850 = vmatprep.subr.bf16.mxu0 0
  %1851 = vmatpush1.bf16.msra.mxu0 0
  %1852 = vmatprep.mubr.bf16.mxu0 0
  %1853 = vmatmul.mubr.bf16.gmra.mrb[0].mxu0 %v1595
  %v1854 = vpop.f32.mrb[0].mxu0
  %v1855 = vadd.f32 0.0, %v1854
  %v1856 = vpop.f32.mrb[0].mxu0
  %v1857 = vpop.f32.mrb[0].mxu0
  %v1858 = vadd.f32 0.0, %v1857
  %v1859 = vpop.f32.mrb[0].mxu0
  %1860 = vmatprep.mubr.bf16.mxu0 0
  %1861 = vmatmul.mubr.bf16.gmra.mrb[0].mxu0 %v1598
  %v1862 = vpop.f32.mrb[0].mxu0
  %v1863 = vadd.f32 0.0, %v1862
  %v1864 = vpop.f32.mrb[0].mxu0
  %v1865 = vpop.f32.mrb[0].mxu0
  %v1866 = vadd.f32 0.0, %v1865
  %v1867 = vpop.f32.mrb[0].mxu0
  %1868 = vmatprep.mubr.bf16.mxu0 0
  %1869 = vmatmul.mubr.bf16.gmra.mrb[0].mxu0 %v1601
  %v1870 = vpop.f32.mrb[0].mxu0
  %v1871 = vadd.f32 0.0, %v1870
  %v1872 = vpop.f32.mrb[0].mxu0
  %v1873 = vpop.f32.mrb[0].mxu0
  %v1874 = vadd.f32 0.0, %v1873
  %v1875 = vpop.f32.mrb[0].mxu0
  %1876 = vmatprep.mubr.bf16.mxu0 0
  %1877 = vmatmul.mubr.bf16.gmra.mrb[0].mxu0 %v1604
  %v1878 = vpop.f32.mrb[0].mxu0
  %v1879 = vadd.f32 0.0, %v1878
  %v1880 = vpop.f32.mrb[0].mxu0
  %v1881 = vpop.f32.mrb[0].mxu0
  %v1882 = vadd.f32 0.0, %v1881
  %v1883 = vpop.f32.mrb[0].mxu0
  %1884 = vmatprep.mubr.bf16.mxu0 0
  %1885 = vmatmul.mubr.bf16.gmra.mrb[0].mxu0 %v1607
  %v1886 = vpop.f32.mrb[0].mxu0
  %v1887 = vadd.f32 0.0, %v1886
  %v1888 = vpop.f32.mrb[0].mxu0
  %v1889 = vpop.f32.mrb[0].mxu0
  %v1890 = vadd.f32 0.0, %v1889
  %v1891 = vpop.f32.mrb[0].mxu0
  %1892 = vmatprep.mubr.bf16.mxu0 0
  %1893 = vmatmul.mubr.bf16.gmra.mrb[0].mxu0 %v1610
  %v1894 = vpop.f32.mrb[0].mxu0
  %v1895 = vadd.f32 0.0, %v1894
  %v1896 = vpop.f32.mrb[0].mxu0
  %v1897 = vpop.f32.mrb[0].mxu0
  %v1898 = vadd.f32 0.0, %v1897
  %v1899 = vpop.f32.mrb[0].mxu0
  %1900 = vmatprep.mubr.bf16.mxu0 0
  %1901 = vmatmul.mubr.bf16.gmra.mrb[0].mxu0 %v1613
  %v1902 = vpop.f32.mrb[0].mxu0
  %v1903 = vadd.f32 0.0, %v1902
  %v1904 = vpop.f32.mrb[0].mxu0
  %v1905 = vpop.f32.mrb[0].mxu0
  %v1906 = vadd.f32 0.0, %v1905
  %v1907 = vpop.f32.mrb[0].mxu0
  %1908 = vmatprep.mubr.bf16.mxu0 0
  %1909 = vmatmul.mubr.bf16.gmra.mrb[0].mxu0 %v1616
  %v1910 = vpop.f32.mrb[0].mxu0
  %v1911 = vadd.f32 0.0, %v1910
  %v1912 = vpop.f32.mrb[0].mxu0
  %v1913 = vpop.f32.mrb[0].mxu0
  %v1914 = vadd.f32 0.0, %v1913
  %v1915 = vpop.f32.mrb[0].mxu0
  %1916 = vmatprep.mubr.bf16.mxu0 0
  %1917 = vmatmul.mubr.bf16.gmra.mrb[0].mxu0 %v1619
  %v1918 = vpop.f32.mrb[0].mxu0
  %v1919 = vadd.f32 0.0, %v1918
  %v1920 = vpop.f32.mrb[0].mxu0
  %v1921 = vpop.f32.mrb[0].mxu0
  %v1922 = vadd.f32 0.0, %v1921
  %v1923 = vpop.f32.mrb[0].mxu0
  %1924 = vmatprep.mubr.bf16.mxu0 0
  %1925 = vmatmul.mubr.bf16.gmra.mrb[0].mxu0 %v1622
  %v1926 = vpop.f32.mrb[0].mxu0
  %v1927 = vadd.f32 0.0, %v1926
  %v1928 = vpop.f32.mrb[0].mxu0
  %v1929 = vpop.f32.mrb[0].mxu0
  %v1930 = vadd.f32 0.0, %v1929
  %v1931 = vpop.f32.mrb[0].mxu0
  %1932 = vmatprep.mubr.bf16.mxu0 0
  %1933 = vmatmul.mubr.bf16.gmra.mrb[0].mxu0 %v1625
  %v1934 = vpop.f32.mrb[0].mxu0
  %v1935 = vadd.f32 0.0, %v1934
  %v1936 = vpop.f32.mrb[0].mxu0
  %v1937 = vpop.f32.mrb[0].mxu0
  %v1938 = vadd.f32 0.0, %v1937
  %v1939 = vpop.f32.mrb[0].mxu0
  %1940 = vmatprep.mubr.bf16.mxu0 0
  %1941 = vmatmul.mubr.bf16.gmra.mrb[0].mxu0 %v1628
  %v1942 = vpop.f32.mrb[0].mxu0
  %v1943 = vadd.f32 0.0, %v1942
  %v1944 = vpop.f32.mrb[0].mxu0
  %v1945 = vpop.f32.mrb[0].mxu0
  %v1946 = vadd.f32 0.0, %v1945
  %v1947 = vpop.f32.mrb[0].mxu0
  %1948 = vmatprep.mubr.bf16.mxu0 0
  %1949 = vmatmul.mubr.bf16.gmra.mrb[0].mxu0 %v1631
  %v1950 = vpop.f32.mrb[0].mxu0
  %v1951 = vadd.f32 0.0, %v1950
  %v1952 = vpop.f32.mrb[0].mxu0
  %v1953 = vpop.f32.mrb[0].mxu0
  %v1954 = vadd.f32 0.0, %v1953
  %v1955 = vpop.f32.mrb[0].mxu0
  %1956 = vmatprep.mubr.bf16.mxu0 0
  %1957 = vmatmul.mubr.bf16.gmra.mrb[0].mxu0 %v1634
  %v1958 = vpop.f32.mrb[0].mxu0
  %v1959 = vadd.f32 0.0, %v1958
  %v1960 = vpop.f32.mrb[0].mxu0
  %v1961 = vpop.f32.mrb[0].mxu0
  %v1962 = vadd.f32 0.0, %v1961
  %v1963 = vpop.f32.mrb[0].mxu0
  %1964 = vmatprep.mubr.bf16.mxu0 0
  %1965 = vmatmul.mubr.bf16.gmra.mrb[0].mxu0 %v1637
  %v1966 = vpop.f32.mrb[0].mxu0
  %v1967 = vadd.f32 0.0, %v1966
  %v1968 = vpop.f32.mrb[0].mxu0
  %v1969 = vpop.f32.mrb[0].mxu0
  %v1970 = vadd.f32 0.0, %v1969
  %v1971 = vpop.f32.mrb[0].mxu0
  %1972 = vmatprep.mubr.bf16.mxu0 0
  %1973 = vmatmul.mubr.bf16.gmra.mrb[0].mxu0 %v1640
  %v1974 = vpop.f32.mrb[0].mxu0
  %v1975 = vadd.f32 0.0, %v1974
  %v1976 = vpop.f32.mrb[0].mxu0
  %v1977 = vpop.f32.mrb[0].mxu0
  %v1978 = vadd.f32 0.0, %v1977
  %v1979 = vpop.f32.mrb[0].mxu0
  %1980 = vdwg.mxu0
  %v1981 = vadd.f32 %v1465, %v1677
  %v1982 = vadd.f32 %v1466, %v1680
  %v1983 = vadd.f32 %v1467, %v1685
  %v1984 = vadd.f32 %v1468, %v1688
  %v1985 = vadd.f32 %v1469, %v1693
  %v1986 = vadd.f32 %v1470, %v1696
  %v1987 = vadd.f32 %v1471, %v1701
  %v1988 = vadd.f32 %v1472, %v1704
  %v1989 = vadd.f32 %v1473, %v1709
  %v1990 = vadd.f32 %v1474, %v1712
  %v1991 = vadd.f32 %v1475, %v1717
  %v1992 = vadd.f32 %v1476, %v1720
  %v1993 = vadd.f32 %v1477, %v1725
  %v1994 = vadd.f32 %v1478, %v1728
  %v1995 = vadd.f32 %v1479, %v1733
  %v1996 = vadd.f32 %v1480, %v1736
  %v1997 = vadd.f32 %v1481, %v1741
  %v1998 = vadd.f32 %v1482, %v1744
  %v1999 = vadd.f32 %v1483, %v1749
  %v2000 = vadd.f32 %v1484, %v1752
  %v2001 = vadd.f32 %v1485, %v1757
  %v2002 = vadd.f32 %v1486, %v1760
  %v2003 = vadd.f32 %v1487, %v1765
  %v2004 = vadd.f32 %v1488, %v1768
  %v2005 = vadd.f32 %v1489, %v1773
  %v2006 = vadd.f32 %v1490, %v1776
  %v2007 = vadd.f32 %v1491, %v1781
  %v2008 = vadd.f32 %v1492, %v1784
  %v2009 = vadd.f32 %v1493, %v1789
  %v2010 = vadd.f32 %v1494, %v1792
  %v2011 = vadd.f32 %v1495, %v1797
  %v2012 = vadd.f32 %v1496, %v1800
  %v2013 = vadd.f32 %v1497, %v1855
  %v2014 = vadd.f32 %v1498, %v1858
  %v2015 = vadd.f32 %v1499, %v1863
  %v2016 = vadd.f32 %v1500, %v1866
  %v2017 = vadd.f32 %v1501, %v1871
  %v2018 = vadd.f32 %v1502, %v1874
  %v2019 = vadd.f32 %v1503, %v1879
  %v2020 = vadd.f32 %v1504, %v1882
  %v2021 = vadd.f32 %v1505, %v1887
  %v2022 = vadd.f32 %v1506, %v1890
  %v2023 = vadd.f32 %v1507, %v1895
  %v2024 = vadd.f32 %v1508, %v1898
  %v2025 = vadd.f32 %v1509, %v1903
  %v2026 = vadd.f32 %v1510, %v1906
  %v2027 = vadd.f32 %v1511, %v1911
  %v2028 = vadd.f32 %v1512, %v1914
  %v2029 = vadd.f32 %v1513, %v1919
  %v2030 = vadd.f32 %v1514, %v1922
  %v2031 = vadd.f32 %v1515, %v1927
  %v2032 = vadd.f32 %v1516, %v1930
  %v2033 = vadd.f32 %v1517, %v1935
  %v2034 = vadd.f32 %v1518, %v1938
  %v2035 = vadd.f32 %v1519, %v1943
  %v2036 = vadd.f32 %v1520, %v1946
  %v2037 = vadd.f32 %v1521, %v1951
  %v2038 = vadd.f32 %v1522, %v1954
  %v2039 = vadd.f32 %v1523, %v1959
  %v2040 = vadd.f32 %v1524, %v1962
  %v2041 = vadd.f32 %v1525, %v1967
  %v2042 = vadd.f32 %v1526, %v1970
  %v2043 = vadd.f32 %v1527, %v1975
  %v2044 = vadd.f32 %v1528, %v1978
  %v2045 = vld [vmem:[#allocation2 + $0x4] sm:$0xff]
  %v2046 = vld [vmem:[#allocation2 + $0xc] sm:$0xff]
  %v2047 = vld [vmem:[#allocation2 + $0x14] sm:$0xff]
  %v2048 = vld [vmem:[#allocation2 + $0x1c] sm:$0xff]
  %v2049 = vld [vmem:[#allocation2 + $0x24] sm:$0xff]
  %v2050 = vld [vmem:[#allocation2 + $0x2c] sm:$0xff]
  %v2051 = vld [vmem:[#allocation2 + $0x34] sm:$0xff]
  %v2052 = vld [vmem:[#allocation2 + $0x3c] sm:$0xff]
  %v2053 = vld [vmem:[#allocation2 + $0x44] sm:$0xff]
  %v2054 = vld [vmem:[#allocation2 + $0x4c] sm:$0xff]
  %v2055 = vld [vmem:[#allocation2 + $0x54] sm:$0xff]
  %v2056 = vld [vmem:[#allocation2 + $0x5c] sm:$0xff]
  %v2057 = vld [vmem:[#allocation2 + $0x64] sm:$0xff]
  %v2058 = vld [vmem:[#allocation2 + $0x6c] sm:$0xff]
  %v2059 = vld [vmem:[#allocation2 + $0x74] sm:$0xff]
  %v2060 = vld [vmem:[#allocation2 + $0x7c] sm:$0xff]
  %v2061 = vld [vmem:[#allocation2 + $0x84] sm:$0xff]
  %v2062 = vld [vmem:[#allocation2 + $0x8c] sm:$0xff]
  %v2063 = vld [vmem:[#allocation2 + $0x94] sm:$0xff]
  %v2064 = vld [vmem:[#allocation2 + $0x9c] sm:$0xff]
  %v2065 = vld [vmem:[#allocation2 + $0xa4] sm:$0xff]
  %v2066 = vld [vmem:[#allocation2 + $0xac] sm:$0xff]
  %v2067 = vld [vmem:[#allocation2 + $0xb4] sm:$0xff]
  %v2068 = vld [vmem:[#allocation2 + $0xbc] sm:$0xff]
  %v2069 = vld [vmem:[#allocation2 + $0xc4] sm:$0xff]
  %v2070 = vld [vmem:[#allocation2 + $0xcc] sm:$0xff]
  %v2071 = vld [vmem:[#allocation2 + $0xd4] sm:$0xff]
  %v2072 = vld [vmem:[#allocation2 + $0xdc] sm:$0xff]
  %v2073 = vld [vmem:[#allocation2 + $0xe4] sm:$0xff]
  %v2074 = vld [vmem:[#allocation2 + $0xec] sm:$0xff]
  %v2075 = vld [vmem:[#allocation2 + $0xf4] sm:$0xff]
  %v2076 = vld [vmem:[#allocation2 + $0xfc] sm:$0xff]
  %v2077 = vpack.c.bf16 %v2046, %v2045
  %v2078 = vpack.c.bf16 %v2048, %v2047
  %v2079 = vpack.c.bf16 %v2050, %v2049
  %v2080 = vpack.c.bf16 %v2052, %v2051
  %v2081 = vpack.c.bf16 %v2054, %v2053
  %v2082 = vpack.c.bf16 %v2056, %v2055
  %v2083 = vpack.c.bf16 %v2058, %v2057
  %v2084 = vpack.c.bf16 %v2060, %v2059
  %v2085 = vpack.c.bf16 %v2062, %v2061
  %v2086 = vpack.c.bf16 %v2064, %v2063
  %v2087 = vpack.c.bf16 %v2066, %v2065
  %v2088 = vpack.c.bf16 %v2068, %v2067
  %v2089 = vpack.c.bf16 %v2070, %v2069
  %v2090 = vpack.c.bf16 %v2072, %v2071
  %v2091 = vpack.c.bf16 %v2074, %v2073
  %v2092 = vpack.c.bf16 %v2076, %v2075
  %s2093 = scalar_lea.vmem %s1, 64
  %v2094 = vld [vmem:[%s2093] sm:$0xf]
  %v2095 = vld [vmem:[%s2093 + $0x4] sm:$0xf]
  %v2096 = vld [vmem:[%s2093 + $0x8] sm:$0xf]
  %v2097 = vld [vmem:[%s2093 + $0xc] sm:$0xf]
  %v2102 = vunpack.c.l.b16 %v2094
  %v2103 = vunpack.c.l.b16 %v2095
  %v2104 = vunpack.c.l.b16 %v2096
  %v2105 = vunpack.c.l.b16 %v2097
  %v2106 = vpack.c.b16 %v2103, %v2102
  %v2107 = vpack.c.b16 %v2105, %v2104
  %v2111 = vsel %vm77, %v2077, 0
  %v2114 = vsel %vm77, %v2078, 0
  %v2117 = vsel %vm77, %v2079, 0
  %v2120 = vsel %vm77, %v2080, 0
  %v2123 = vsel %vm77, %v2081, 0
  %v2126 = vsel %vm77, %v2082, 0
  %v2129 = vsel %vm77, %v2083, 0
  %v2132 = vsel %vm77, %v2084, 0
  %v2135 = vsel %vm77, %v2085, 0
  %v2138 = vsel %vm77, %v2086, 0
  %v2141 = vsel %vm77, %v2087, 0
  %v2144 = vsel %vm77, %v2088, 0
  %v2147 = vsel %vm77, %v2089, 0
  %v2150 = vsel %vm77, %v2090, 0
  %v2153 = vsel %vm77, %v2091, 0
  %v2156 = vsel %vm77, %v2092, 0
  %2158 = vmatprep.subr.bf16.mxu0 0
  %2159 = vmatpush1.bf16.msra.mxu0 %v2106
  %2160 = vmatprep.subr.bf16.mxu0 0
  %2161 = vmatpush1.bf16.msra.mxu0 %v2107
  %2162 = vmatprep.subr.bf16.mxu0 0
  %2163 = vmatpush1.bf16.msra.mxu0 0
  %2164 = vmatprep.subr.bf16.mxu0 0
  %2165 = vmatpush1.bf16.msra.mxu0 0
  %2166 = vmatprep.subr.bf16.mxu0 0
  %2167 = vmatpush1.bf16.msra.mxu0 0
  %2168 = vmatprep.subr.bf16.mxu0 0
  %2169 = vmatpush1.bf16.msra.mxu0 0
  %2170 = vmatprep.subr.bf16.mxu0 0
  %2171 = vmatpush1.bf16.msra.mxu0 0
  %2172 = vmatprep.subr.bf16.mxu0 0
  %2173 = vmatpush1.bf16.msra.mxu0 0
  %2174 = vmatprep.subr.bf16.mxu0 0
  %2175 = vmatpush1.bf16.msra.mxu0 0
  %2176 = vmatprep.subr.bf16.mxu0 0
  %2177 = vmatpush1.bf16.msra.mxu0 0
  %2178 = vmatprep.subr.bf16.mxu0 0
  %2179 = vmatpush1.bf16.msra.mxu0 0
  %2180 = vmatprep.subr.bf16.mxu0 0
  %2181 = vmatpush1.bf16.msra.mxu0 0
  %2182 = vmatprep.subr.bf16.mxu0 0
  %2183 = vmatpush1.bf16.msra.mxu0 0
  %2184 = vmatprep.subr.bf16.mxu0 0
  %2185 = vmatpush1.bf16.msra.mxu0 0
  %2186 = vmatprep.subr.bf16.mxu0 0
  %2187 = vmatpush1.bf16.msra.mxu0 0
  %2188 = vmatprep.subr.bf16.mxu0 0
  %2189 = vmatpush1.bf16.msra.mxu0 0
  %2190 = vmatprep.mubr.bf16.mxu0 0
  %2191 = vmatmul.mubr.bf16.gmra.mrb[0].mxu0 %v2111
  %v2192 = vpop.f32.mrb[0].mxu0
  %v2193 = vadd.f32 0.0, %v2192
  %v2194 = vpop.f32.mrb[0].mxu0
  %v2195 = vpop.f32.mrb[0].mxu0
  %v2196 = vadd.f32 0.0, %v2195
  %v2197 = vpop.f32.mrb[0].mxu0
  %2198 = vmatprep.mubr.bf16.mxu0 0
  %2199 = vmatmul.mubr.bf16.gmra.mrb[0].mxu0 %v2114
  %v2200 = vpop.f32.mrb[0].mxu0
  %v2201 = vadd.f32 0.0, %v2200
  %v2202 = vpop.f32.mrb[0].mxu0
  %v2203 = vpop.f32.mrb[0].mxu0
  %v2204 = vadd.f32 0.0, %v2203
  %v2205 = vpop.f32.mrb[0].mxu0
  %2206 = vmatprep.mubr.bf16.mxu0 0
  %2207 = vmatmul.mubr.bf16.gmra.mrb[0].mxu0 %v2117
  %v2208 = vpop.f32.mrb[0].mxu0
  %v2209 = vadd.f32 0.0, %v2208
  %v2210 = vpop.f32.mrb[0].mxu0
  %v2211 = vpop.f32.mrb[0].mxu0
  %v2212 = vadd.f32 0.0, %v2211
  %v2213 = vpop.f32.mrb[0].mxu0
  %2214 = vmatprep.mubr.bf16.mxu0 0
  %2215 = vmatmul.mubr.bf16.gmra.mrb[0].mxu0 %v2120
  %v2216 = vpop.f32.mrb[0].mxu0
  %v2217 = vadd.f32 0.0, %v2216
  %v2218 = vpop.f32.mrb[0].mxu0
  %v2219 = vpop.f32.mrb[0].mxu0
  %v2220 = vadd.f32 0.0, %v2219
  %v2221 = vpop.f32.mrb[0].mxu0
  %2222 = vmatprep.mubr.bf16.mxu0 0
  %2223 = vmatmul.mubr.bf16.gmra.mrb[0].mxu0 %v2123
  %v2224 = vpop.f32.mrb[0].mxu0
  %v2225 = vadd.f32 0.0, %v2224
  %v2226 = vpop.f32.mrb[0].mxu0
  %v2227 = vpop.f32.mrb[0].mxu0
  %v2228 = vadd.f32 0.0, %v2227
  %v2229 = vpop.f32.mrb[0].mxu0
  %2230 = vmatprep.mubr.bf16.mxu0 0
  %2231 = vmatmul.mubr.bf16.gmra.mrb[0].mxu0 %v2126
  %v2232 = vpop.f32.mrb[0].mxu0
  %v2233 = vadd.f32 0.0, %v2232
  %v2234 = vpop.f32.mrb[0].mxu0
  %v2235 = vpop.f32.mrb[0].mxu0
  %v2236 = vadd.f32 0.0, %v2235
  %v2237 = vpop.f32.mrb[0].mxu0
  %2238 = vmatprep.mubr.bf16.mxu0 0
  %2239 = vmatmul.mubr.bf16.gmra.mrb[0].mxu0 %v2129
  %v2240 = vpop.f32.mrb[0].mxu0
  %v2241 = vadd.f32 0.0, %v2240
  %v2242 = vpop.f32.mrb[0].mxu0
  %v2243 = vpop.f32.mrb[0].mxu0
  %v2244 = vadd.f32 0.0, %v2243
  %v2245 = vpop.f32.mrb[0].mxu0
  %2246 = vmatprep.mubr.bf16.mxu0 0
  %2247 = vmatmul.mubr.bf16.gmra.mrb[0].mxu0 %v2132
  %v2248 = vpop.f32.mrb[0].mxu0
  %v2249 = vadd.f32 0.0, %v2248
  %v2250 = vpop.f32.mrb[0].mxu0
  %v2251 = vpop.f32.mrb[0].mxu0
  %v2252 = vadd.f32 0.0, %v2251
  %v2253 = vpop.f32.mrb[0].mxu0
  %2254 = vmatprep.mubr.bf16.mxu0 0
  %2255 = vmatmul.mubr.bf16.gmra.mrb[0].mxu0 %v2135
  %v2256 = vpop.f32.mrb[0].mxu0
  %v2257 = vadd.f32 0.0, %v2256
  %v2258 = vpop.f32.mrb[0].mxu0
  %v2259 = vpop.f32.mrb[0].mxu0
  %v2260 = vadd.f32 0.0, %v2259
  %v2261 = vpop.f32.mrb[0].mxu0
  %2262 = vmatprep.mubr.bf16.mxu0 0
  %2263 = vmatmul.mubr.bf16.gmra.mrb[0].mxu0 %v2138
  %v2264 = vpop.f32.mrb[0].mxu0
  %v2265 = vadd.f32 0.0, %v2264
  %v2266 = vpop.f32.mrb[0].mxu0
  %v2267 = vpop.f32.mrb[0].mxu0
  %v2268 = vadd.f32 0.0, %v2267
  %v2269 = vpop.f32.mrb[0].mxu0
  %2270 = vmatprep.mubr.bf16.mxu0 0
  %2271 = vmatmul.mubr.bf16.gmra.mrb[0].mxu0 %v2141
  %v2272 = vpop.f32.mrb[0].mxu0
  %v2273 = vadd.f32 0.0, %v2272
  %v2274 = vpop.f32.mrb[0].mxu0
  %v2275 = vpop.f32.mrb[0].mxu0
  %v2276 = vadd.f32 0.0, %v2275
  %v2277 = vpop.f32.mrb[0].mxu0
  %2278 = vmatprep.mubr.bf16.mxu0 0
  %2279 = vmatmul.mubr.bf16.gmra.mrb[0].mxu0 %v2144
  %v2280 = vpop.f32.mrb[0].mxu0
  %v2281 = vadd.f32 0.0, %v2280
  %v2282 = vpop.f32.mrb[0].mxu0
  %v2283 = vpop.f32.mrb[0].mxu0
  %v2284 = vadd.f32 0.0, %v2283
  %v2285 = vpop.f32.mrb[0].mxu0
  %2286 = vmatprep.mubr.bf16.mxu0 0
  %2287 = vmatmul.mubr.bf16.gmra.mrb[0].mxu0 %v2147
  %v2288 = vpop.f32.mrb[0].mxu0
  %v2289 = vadd.f32 0.0, %v2288
  %v2290 = vpop.f32.mrb[0].mxu0
  %v2291 = vpop.f32.mrb[0].mxu0
  %v2292 = vadd.f32 0.0, %v2291
  %v2293 = vpop.f32.mrb[0].mxu0
  %2294 = vmatprep.mubr.bf16.mxu0 0
  %2295 = vmatmul.mubr.bf16.gmra.mrb[0].mxu0 %v2150
  %v2296 = vpop.f32.mrb[0].mxu0
  %v2297 = vadd.f32 0.0, %v2296
  %v2298 = vpop.f32.mrb[0].mxu0
  %v2299 = vpop.f32.mrb[0].mxu0
  %v2300 = vadd.f32 0.0, %v2299
  %v2301 = vpop.f32.mrb[0].mxu0
  %2302 = vmatprep.mubr.bf16.mxu0 0
  %2303 = vmatmul.mubr.bf16.gmra.mrb[0].mxu0 %v2153
  %v2304 = vpop.f32.mrb[0].mxu0
  %v2305 = vadd.f32 0.0, %v2304
  %v2306 = vpop.f32.mrb[0].mxu0
  %v2307 = vpop.f32.mrb[0].mxu0
  %v2308 = vadd.f32 0.0, %v2307
  %v2309 = vpop.f32.mrb[0].mxu0
  %2310 = vmatprep.mubr.bf16.mxu0 0
  %2311 = vmatmul.mubr.bf16.gmra.mrb[0].mxu0 %v2156
  %v2312 = vpop.f32.mrb[0].mxu0
  %v2313 = vadd.f32 0.0, %v2312
  %v2314 = vpop.f32.mrb[0].mxu0
  %v2315 = vpop.f32.mrb[0].mxu0
  %v2316 = vadd.f32 0.0, %v2315
  %v2317 = vpop.f32.mrb[0].mxu0
  %2318 = vdwg.mxu0
  %s2319 = scalar_lea.vmem %s2, 64
  %v2320 = vld [vmem:[%s2319] sm:$0xf]
  %v2321 = vld [vmem:[%s2319 + $0x4] sm:$0xf]
  %v2322 = vld [vmem:[%s2319 + $0x8] sm:$0xf]
  %v2323 = vld [vmem:[%s2319 + $0xc] sm:$0xf]
  %v2328 = vunpack.c.l.b16 %v2320
  %v2329 = vunpack.c.l.b16 %v2321
  %v2330 = vunpack.c.l.b16 %v2322
  %v2331 = vunpack.c.l.b16 %v2323
  %v2332 = vpack.c.b16 %v2329, %v2328
  %v2333 = vpack.c.b16 %v2331, %v2330
  %2336 = vmatprep.subr.bf16.mxu0 0
  %2337 = vmatpush1.bf16.msra.mxu0 %v2332
  %2338 = vmatprep.subr.bf16.mxu0 0
  %2339 = vmatpush1.bf16.msra.mxu0 %v2333
  %2340 = vmatprep.subr.bf16.mxu0 0
  %2341 = vmatpush1.bf16.msra.mxu0 0
  %2342 = vmatprep.subr.bf16.mxu0 0
  %2343 = vmatpush1.bf16.msra.mxu0 0
  %2344 = vmatprep.subr.bf16.mxu0 0
  %2345 = vmatpush1.bf16.msra.mxu0 0
  %2346 = vmatprep.subr.bf16.mxu0 0
  %2347 = vmatpush1.bf16.msra.mxu0 0
  %2348 = vmatprep.subr.bf16.mxu0 0
  %2349 = vmatpush1.bf16.msra.mxu0 0
  %2350 = vmatprep.subr.bf16.mxu0 0
  %2351 = vmatpush1.bf16.msra.mxu0 0
  %2352 = vmatprep.subr.bf16.mxu0 0
  %2353 = vmatpush1.bf16.msra.mxu0 0
  %2354 = vmatprep.subr.bf16.mxu0 0
  %2355 = vmatpush1.bf16.msra.mxu0 0
  %2356 = vmatprep.subr.bf16.mxu0 0
  %2357 = vmatpush1.bf16.msra.mxu0 0
  %2358 = vmatprep.subr.bf16.mxu0 0
  %2359 = vmatpush1.bf16.msra.mxu0 0
  %2360 = vmatprep.subr.bf16.mxu0 0
  %2361 = vmatpush1.bf16.msra.mxu0 0
  %2362 = vmatprep.subr.bf16.mxu0 0
  %2363 = vmatpush1.bf16.msra.mxu0 0
  %2364 = vmatprep.subr.bf16.mxu0 0
  %2365 = vmatpush1.bf16.msra.mxu0 0
  %2366 = vmatprep.subr.bf16.mxu0 0
  %2367 = vmatpush1.bf16.msra.mxu0 0
  %2368 = vmatprep.mubr.bf16.mxu0 0
  %2369 = vmatmul.mubr.bf16.gmra.mrb[0].mxu0 %v2111
  %v2370 = vpop.f32.mrb[0].mxu0
  %v2371 = vadd.f32 0.0, %v2370
  %v2372 = vpop.f32.mrb[0].mxu0
  %v2373 = vpop.f32.mrb[0].mxu0
  %v2374 = vadd.f32 0.0, %v2373
  %v2375 = vpop.f32.mrb[0].mxu0
  %2376 = vmatprep.mubr.bf16.mxu0 0
  %2377 = vmatmul.mubr.bf16.gmra.mrb[0].mxu0 %v2114
  %v2378 = vpop.f32.mrb[0].mxu0
  %v2379 = vadd.f32 0.0, %v2378
  %v2380 = vpop.f32.mrb[0].mxu0
  %v2381 = vpop.f32.mrb[0].mxu0
  %v2382 = vadd.f32 0.0, %v2381
  %v2383 = vpop.f32.mrb[0].mxu0
  %2384 = vmatprep.mubr.bf16.mxu0 0
  %2385 = vmatmul.mubr.bf16.gmra.mrb[0].mxu0 %v2117
  %v2386 = vpop.f32.mrb[0].mxu0
  %v2387 = vadd.f32 0.0, %v2386
  %v2388 = vpop.f32.mrb[0].mxu0
  %v2389 = vpop.f32.mrb[0].mxu0
  %v2390 = vadd.f32 0.0, %v2389
  %v2391 = vpop.f32.mrb[0].mxu0
  %2392 = vmatprep.mubr.bf16.mxu0 0
  %2393 = vmatmul.mubr.bf16.gmra.mrb[0].mxu0 %v2120
  %v2394 = vpop.f32.mrb[0].mxu0
  %v2395 = vadd.f32 0.0, %v2394
  %v2396 = vpop.f32.mrb[0].mxu0
  %v2397 = vpop.f32.mrb[0].mxu0
  %v2398 = vadd.f32 0.0, %v2397
  %v2399 = vpop.f32.mrb[0].mxu0
  %2400 = vmatprep.mubr.bf16.mxu0 0
  %2401 = vmatmul.mubr.bf16.gmra.mrb[0].mxu0 %v2123
  %v2402 = vpop.f32.mrb[0].mxu0
  %v2403 = vadd.f32 0.0, %v2402
  %v2404 = vpop.f32.mrb[0].mxu0
  %v2405 = vpop.f32.mrb[0].mxu0
  %v2406 = vadd.f32 0.0, %v2405
  %v2407 = vpop.f32.mrb[0].mxu0
  %2408 = vmatprep.mubr.bf16.mxu0 0
  %2409 = vmatmul.mubr.bf16.gmra.mrb[0].mxu0 %v2126
  %v2410 = vpop.f32.mrb[0].mxu0
  %v2411 = vadd.f32 0.0, %v2410
  %v2412 = vpop.f32.mrb[0].mxu0
  %v2413 = vpop.f32.mrb[0].mxu0
  %v2414 = vadd.f32 0.0, %v2413
  %v2415 = vpop.f32.mrb[0].mxu0
  %2416 = vmatprep.mubr.bf16.mxu0 0
  %2417 = vmatmul.mubr.bf16.gmra.mrb[0].mxu0 %v2129
  %v2418 = vpop.f32.mrb[0].mxu0
  %v2419 = vadd.f32 0.0, %v2418
  %v2420 = vpop.f32.mrb[0].mxu0
  %v2421 = vpop.f32.mrb[0].mxu0
  %v2422 = vadd.f32 0.0, %v2421
  %v2423 = vpop.f32.mrb[0].mxu0
  %2424 = vmatprep.mubr.bf16.mxu0 0
  %2425 = vmatmul.mubr.bf16.gmra.mrb[0].mxu0 %v2132
  %v2426 = vpop.f32.mrb[0].mxu0
  %v2427 = vadd.f32 0.0, %v2426
  %v2428 = vpop.f32.mrb[0].mxu0
  %v2429 = vpop.f32.mrb[0].mxu0
  %v2430 = vadd.f32 0.0, %v2429
  %v2431 = vpop.f32.mrb[0].mxu0
  %2432 = vmatprep.mubr.bf16.mxu0 0
  %2433 = vmatmul.mubr.bf16.gmra.mrb[0].mxu0 %v2135
  %v2434 = vpop.f32.mrb[0].mxu0
  %v2435 = vadd.f32 0.0, %v2434
  %v2436 = vpop.f32.mrb[0].mxu0
  %v2437 = vpop.f32.mrb[0].mxu0
  %v2438 = vadd.f32 0.0, %v2437
  %v2439 = vpop.f32.mrb[0].mxu0
  %2440 = vmatprep.mubr.bf16.mxu0 0
  %2441 = vmatmul.mubr.bf16.gmra.mrb[0].mxu0 %v2138
  %v2442 = vpop.f32.mrb[0].mxu0
  %v2443 = vadd.f32 0.0, %v2442
  %v2444 = vpop.f32.mrb[0].mxu0
  %v2445 = vpop.f32.mrb[0].mxu0
  %v2446 = vadd.f32 0.0, %v2445
  %v2447 = vpop.f32.mrb[0].mxu0
  %2448 = vmatprep.mubr.bf16.mxu0 0
  %2449 = vmatmul.mubr.bf16.gmra.mrb[0].mxu0 %v2141
  %v2450 = vpop.f32.mrb[0].mxu0
  %v2451 = vadd.f32 0.0, %v2450
  %v2452 = vpop.f32.mrb[0].mxu0
  %v2453 = vpop.f32.mrb[0].mxu0
  %v2454 = vadd.f32 0.0, %v2453
  %v2455 = vpop.f32.mrb[0].mxu0
  %2456 = vmatprep.mubr.bf16.mxu0 0
  %2457 = vmatmul.mubr.bf16.gmra.mrb[0].mxu0 %v2144
  %v2458 = vpop.f32.mrb[0].mxu0
  %v2459 = vadd.f32 0.0, %v2458
  %v2460 = vpop.f32.mrb[0].mxu0
  %v2461 = vpop.f32.mrb[0].mxu0
  %v2462 = vadd.f32 0.0, %v2461
  %v2463 = vpop.f32.mrb[0].mxu0
  %2464 = vmatprep.mubr.bf16.mxu0 0
  %2465 = vmatmul.mubr.bf16.gmra.mrb[0].mxu0 %v2147
  %v2466 = vpop.f32.mrb[0].mxu0
  %v2467 = vadd.f32 0.0, %v2466
  %v2468 = vpop.f32.mrb[0].mxu0
  %v2469 = vpop.f32.mrb[0].mxu0
  %v2470 = vadd.f32 0.0, %v2469
  %v2471 = vpop.f32.mrb[0].mxu0
  %2472 = vmatprep.mubr.bf16.mxu0 0
  %2473 = vmatmul.mubr.bf16.gmra.mrb[0].mxu0 %v2150
  %v2474 = vpop.f32.mrb[0].mxu0
  %v2475 = vadd.f32 0.0, %v2474
  %v2476 = vpop.f32.mrb[0].mxu0
  %v2477 = vpop.f32.mrb[0].mxu0
  %v2478 = vadd.f32 0.0, %v2477
  %v2479 = vpop.f32.mrb[0].mxu0
  %2480 = vmatprep.mubr.bf16.mxu0 0
  %2481 = vmatmul.mubr.bf16.gmra.mrb[0].mxu0 %v2153
  %v2482 = vpop.f32.mrb[0].mxu0
  %v2483 = vadd.f32 0.0, %v2482
  %v2484 = vpop.f32.mrb[0].mxu0
  %v2485 = vpop.f32.mrb[0].mxu0
  %v2486 = vadd.f32 0.0, %v2485
  %v2487 = vpop.f32.mrb[0].mxu0
  %2488 = vmatprep.mubr.bf16.mxu0 0
  %2489 = vmatmul.mubr.bf16.gmra.mrb[0].mxu0 %v2156
  %v2490 = vpop.f32.mrb[0].mxu0
  %v2491 = vadd.f32 0.0, %v2490
  %v2492 = vpop.f32.mrb[0].mxu0
  %v2493 = vpop.f32.mrb[0].mxu0
  %v2494 = vadd.f32 0.0, %v2493
  %v2495 = vpop.f32.mrb[0].mxu0
  %2496 = vdwg.mxu0
  %v2497 = vadd.f32 %v1981, %v2193
  %v2498 = vadd.f32 %v1982, %v2196
  %v2499 = vadd.f32 %v1983, %v2201
  %v2500 = vadd.f32 %v1984, %v2204
  %v2501 = vadd.f32 %v1985, %v2209
  %v2502 = vadd.f32 %v1986, %v2212
  %v2503 = vadd.f32 %v1987, %v2217
  %v2504 = vadd.f32 %v1988, %v2220
  %v2505 = vadd.f32 %v1989, %v2225
  %v2506 = vadd.f32 %v1990, %v2228
  %v2507 = vadd.f32 %v1991, %v2233
  %v2508 = vadd.f32 %v1992, %v2236
  %v2509 = vadd.f32 %v1993, %v2241
  %v2510 = vadd.f32 %v1994, %v2244
  %v2511 = vadd.f32 %v1995, %v2249
  %v2512 = vadd.f32 %v1996, %v2252
  %v2513 = vadd.f32 %v1997, %v2257
  %v2514 = vadd.f32 %v1998, %v2260
  %v2515 = vadd.f32 %v1999, %v2265
  %v2516 = vadd.f32 %v2000, %v2268
  %v2517 = vadd.f32 %v2001, %v2273
  %v2518 = vadd.f32 %v2002, %v2276
  %v2519 = vadd.f32 %v2003, %v2281
  %v2520 = vadd.f32 %v2004, %v2284
  %v2521 = vadd.f32 %v2005, %v2289
  %v2522 = vadd.f32 %v2006, %v2292
  %v2523 = vadd.f32 %v2007, %v2297
  %v2524 = vadd.f32 %v2008, %v2300
  %v2525 = vadd.f32 %v2009, %v2305
  %v2526 = vadd.f32 %v2010, %v2308
  %v2527 = vadd.f32 %v2011, %v2313
  %v2528 = vadd.f32 %v2012, %v2316
  %v2529 = vadd.f32 %v2013, %v2371
  %v2530 = vadd.f32 %v2014, %v2374
  %v2531 = vadd.f32 %v2015, %v2379
  %v2532 = vadd.f32 %v2016, %v2382
  %v2533 = vadd.f32 %v2017, %v2387
  %v2534 = vadd.f32 %v2018, %v2390
  %v2535 = vadd.f32 %v2019, %v2395
  %v2536 = vadd.f32 %v2020, %v2398
  %v2537 = vadd.f32 %v2021, %v2403
  %v2538 = vadd.f32 %v2022, %v2406
  %v2539 = vadd.f32 %v2023, %v2411
  %v2540 = vadd.f32 %v2024, %v2414
  %v2541 = vadd.f32 %v2025, %v2419
  %v2542 = vadd.f32 %v2026, %v2422
  %v2543 = vadd.f32 %v2027, %v2427
  %v2544 = vadd.f32 %v2028, %v2430
  %v2545 = vadd.f32 %v2029, %v2435
  %v2546 = vadd.f32 %v2030, %v2438
  %v2547 = vadd.f32 %v2031, %v2443
  %v2548 = vadd.f32 %v2032, %v2446
  %v2549 = vadd.f32 %v2033, %v2451
  %v2550 = vadd.f32 %v2034, %v2454
  %v2551 = vadd.f32 %v2035, %v2459
  %v2552 = vadd.f32 %v2036, %v2462
  %v2553 = vadd.f32 %v2037, %v2467
  %v2554 = vadd.f32 %v2038, %v2470
  %v2555 = vadd.f32 %v2039, %v2475
  %v2556 = vadd.f32 %v2040, %v2478
  %v2557 = vadd.f32 %v2041, %v2483
  %v2558 = vadd.f32 %v2042, %v2486
  %v2559 = vadd.f32 %v2043, %v2491
  %v2560 = vadd.f32 %v2044, %v2494
  %v2561 = vmax.f32 %v2497, %v2529
  %v2562 = vmax.f32 %v2498, %v2530
  %v2563 = vmax.f32 %v2499, %v2531
  %v2564 = vmax.f32 %v2500, %v2532
  %v2565 = vmax.f32 %v2501, %v2533
  %v2566 = vmax.f32 %v2502, %v2534
  %v2567 = vmax.f32 %v2503, %v2535
  %v2568 = vmax.f32 %v2504, %v2536
  %v2569 = vmax.f32 %v2505, %v2537
  %v2570 = vmax.f32 %v2506, %v2538
  %v2571 = vmax.f32 %v2507, %v2539
  %v2572 = vmax.f32 %v2508, %v2540
  %v2573 = vmax.f32 %v2509, %v2541
  %v2574 = vmax.f32 %v2510, %v2542
  %v2575 = vmax.f32 %v2511, %v2543
  %v2576 = vmax.f32 %v2512, %v2544
  %v2577 = vmax.f32 %v2513, %v2545
  %v2578 = vmax.f32 %v2514, %v2546
  %v2579 = vmax.f32 %v2515, %v2547
  %v2580 = vmax.f32 %v2516, %v2548
  %v2581 = vmax.f32 %v2517, %v2549
  %v2582 = vmax.f32 %v2518, %v2550
  %v2583 = vmax.f32 %v2519, %v2551
  %v2584 = vmax.f32 %v2520, %v2552
  %v2585 = vmax.f32 %v2521, %v2553
  %v2586 = vmax.f32 %v2522, %v2554
  %v2587 = vmax.f32 %v2523, %v2555
  %v2588 = vmax.f32 %v2524, %v2556
  %v2589 = vmax.f32 %v2525, %v2557
  %v2590 = vmax.f32 %v2526, %v2558
  %v2591 = vmax.f32 %v2527, %v2559
  %v2592 = vmax.f32 %v2528, %v2560
  %v2593 = vld [vmem:[%s3] sm:$0x1]
  %v2595 = vlaneseq
  %v2596 = vshrl.u32 %v2595, 7
  %v2597 = vsub.s32 0, %v2596
  %v2598 = vrot.slane %v2593, %v2597
  %v2600 = vadd.f32 %v2561, %v2598
  %v2601 = vadd.f32 %v2562, %v2598
  %v2602 = vadd.f32 %v2563, %v2598
  %v2603 = vadd.f32 %v2564, %v2598
  %v2604 = vadd.f32 %v2565, %v2598
  %v2605 = vadd.f32 %v2566, %v2598
  %v2606 = vadd.f32 %v2567, %v2598
  %v2607 = vadd.f32 %v2568, %v2598
  %v2608 = vadd.f32 %v2569, %v2598
  %v2609 = vadd.f32 %v2570, %v2598
  %v2610 = vadd.f32 %v2571, %v2598
  %v2611 = vadd.f32 %v2572, %v2598
  %v2612 = vadd.f32 %v2573, %v2598
  %v2613 = vadd.f32 %v2574, %v2598
  %v2614 = vadd.f32 %v2575, %v2598
  %v2615 = vadd.f32 %v2576, %v2598
  %v2616 = vadd.f32 %v2577, %v2598
  %v2617 = vadd.f32 %v2578, %v2598
  %v2618 = vadd.f32 %v2579, %v2598
  %v2619 = vadd.f32 %v2580, %v2598
  %v2620 = vadd.f32 %v2581, %v2598
  %v2621 = vadd.f32 %v2582, %v2598
  %v2622 = vadd.f32 %v2583, %v2598
  %v2623 = vadd.f32 %v2584, %v2598
  %v2624 = vadd.f32 %v2585, %v2598
  %v2625 = vadd.f32 %v2586, %v2598
  %v2626 = vadd.f32 %v2587, %v2598
  %v2627 = vadd.f32 %v2588, %v2598
  %v2628 = vadd.f32 %v2589, %v2598
  %v2629 = vadd.f32 %v2590, %v2598
  %v2630 = vadd.f32 %v2591, %v2598
  %v2631 = vadd.f32 %v2592, %v2598
  %v2632 = vmax.f32 %v2600, 0.0
  %v2633 = vmax.f32 %v2601, 0.0
  %v2634 = vmax.f32 %v2602, 0.0
  %v2635 = vmax.f32 %v2603, 0.0
  %v2636 = vmax.f32 %v2604, 0.0
  %v2637 = vmax.f32 %v2605, 0.0
  %v2638 = vmax.f32 %v2606, 0.0
  %v2639 = vmax.f32 %v2607, 0.0
  %v2640 = vmax.f32 %v2608, 0.0
  %v2641 = vmax.f32 %v2609, 0.0
  %v2642 = vmax.f32 %v2610, 0.0
  %v2643 = vmax.f32 %v2611, 0.0
  %v2644 = vmax.f32 %v2612, 0.0
  %v2645 = vmax.f32 %v2613, 0.0
  %v2646 = vmax.f32 %v2614, 0.0
  %v2647 = vmax.f32 %v2615, 0.0
  %v2648 = vmax.f32 %v2616, 0.0
  %v2649 = vmax.f32 %v2617, 0.0
  %v2650 = vmax.f32 %v2618, 0.0
  %v2651 = vmax.f32 %v2619, 0.0
  %v2652 = vmax.f32 %v2620, 0.0
  %v2653 = vmax.f32 %v2621, 0.0
  %v2654 = vmax.f32 %v2622, 0.0
  %v2655 = vmax.f32 %v2623, 0.0
  %v2656 = vmax.f32 %v2624, 0.0
  %v2657 = vmax.f32 %v2625, 0.0
  %v2658 = vmax.f32 %v2626, 0.0
  %v2659 = vmax.f32 %v2627, 0.0
  %v2660 = vmax.f32 %v2628, 0.0
  %v2661 = vmax.f32 %v2629, 0.0
  %v2662 = vmax.f32 %v2630, 0.0
  %v2663 = vmax.f32 %v2631, 0.0
  %vm2664 = vcmask 687104
  %2665 = vst.msk [vmem:[#allocation3] sm:$0xff] %vm2664, %v2632
  %2666 = vst.msk [vmem:[#allocation3 + $0x8] sm:$0xff] %vm2664, %v2633
  %2667 = vst.msk [vmem:[#allocation3 + $0x10] sm:$0xff] %vm2664, %v2634
  %2668 = vst.msk [vmem:[#allocation3 + $0x18] sm:$0xff] %vm2664, %v2635
  %2669 = vst.msk [vmem:[#allocation3 + $0x20] sm:$0xff] %vm2664, %v2636
  %2670 = vst.msk [vmem:[#allocation3 + $0x28] sm:$0xff] %vm2664, %v2637
  %2671 = vst.msk [vmem:[#allocation3 + $0x30] sm:$0xff] %vm2664, %v2638
  %2672 = vst.msk [vmem:[#allocation3 + $0x38] sm:$0xff] %vm2664, %v2639
  %2673 = vst.msk [vmem:[#allocation3 + $0x40] sm:$0xff] %vm2664, %v2640
  %2674 = vst.msk [vmem:[#allocation3 + $0x48] sm:$0xff] %vm2664, %v2641
  %2675 = vst.msk [vmem:[#allocation3 + $0x50] sm:$0xff] %vm2664, %v2642
  %2676 = vst.msk [vmem:[#allocation3 + $0x58] sm:$0xff] %vm2664, %v2643
  %2677 = vst.msk [vmem:[#allocation3 + $0x60] sm:$0xff] %vm2664, %v2644
  %2678 = vst.msk [vmem:[#allocation3 + $0x68] sm:$0xff] %vm2664, %v2645
  %2679 = vst.msk [vmem:[#allocation3 + $0x70] sm:$0xff] %vm2664, %v2646
  %2680 = vst.msk [vmem:[#allocation3 + $0x78] sm:$0xff] %vm2664, %v2647
  %2681 = vst.msk [vmem:[#allocation3 + $0x80] sm:$0xff] %vm2664, %v2648
  %2682 = vst.msk [vmem:[#allocation3 + $0x88] sm:$0xff] %vm2664, %v2649
  %2683 = vst.msk [vmem:[#allocation3 + $0x90] sm:$0xff] %vm2664, %v2650
  %2684 = vst.msk [vmem:[#allocation3 + $0x98] sm:$0xff] %vm2664, %v2651
  %2685 = vst.msk [vmem:[#allocation3 + $0xa0] sm:$0xff] %vm2664, %v2652
  %2686 = vst.msk [vmem:[#allocation3 + $0xa8] sm:$0xff] %vm2664, %v2653
  %2687 = vst.msk [vmem:[#allocation3 + $0xb0] sm:$0xff] %vm2664, %v2654
  %2688 = vst.msk [vmem:[#allocation3 + $0xb8] sm:$0xff] %vm2664, %v2655
  %2689 = vst.msk [vmem:[#allocation3 + $0xc0] sm:$0xff] %vm2664, %v2656
  %2690 = vst.msk [vmem:[#allocation3 + $0xc8] sm:$0xff] %vm2664, %v2657
  %2691 = vst.msk [vmem:[#allocation3 + $0xd0] sm:$0xff] %vm2664, %v2658
  %2692 = vst.msk [vmem:[#allocation3 + $0xd8] sm:$0xff] %vm2664, %v2659
  %2693 = vst.msk [vmem:[#allocation3 + $0xe0] sm:$0xff] %vm2664, %v2660
  %2694 = vst.msk [vmem:[#allocation3 + $0xe8] sm:$0xff] %vm2664, %v2661
  %2695 = vst.msk [vmem:[#allocation3 + $0xf0] sm:$0xff] %vm2664, %v2662
  %2696 = vst.msk [vmem:[#allocation3 + $0xf8] sm:$0xff] %vm2664, %v2663
  %v2697 = vld [vmem:[#allocation3] ss:$2 sm:$0xff]
  %s2698 = scalar_lea.vmem [#allocation3], 16
  %v2699 = vld [vmem:[%s2698] ss:$2 sm:$0xff]
  %s2700 = scalar_lea.vmem [#allocation3], 32
  %v2701 = vld [vmem:[%s2700] ss:$2 sm:$0xff]
  %s2702 = scalar_lea.vmem [#allocation3], 48
  %v2703 = vld [vmem:[%s2702] ss:$2 sm:$0xff]
  %s2704 = scalar_lea.vmem [#allocation3], 64
  %v2705 = vld [vmem:[%s2704] ss:$2 sm:$0xff]
  %s2706 = scalar_lea.vmem [#allocation3], 80
  %v2707 = vld [vmem:[%s2706] ss:$2 sm:$0xff]
  %s2708 = scalar_lea.vmem [#allocation3], 96
  %v2709 = vld [vmem:[%s2708] ss:$2 sm:$0xff]
  %s2710 = scalar_lea.vmem [#allocation3], 112
  %v2711 = vld [vmem:[%s2710] ss:$2 sm:$0xff]
  %s2712 = scalar_lea.vmem [#allocation3], 128
  %v2713 = vld [vmem:[%s2712] ss:$2 sm:$0xff]
  %s2714 = scalar_lea.vmem [#allocation3], 144
  %v2715 = vld [vmem:[%s2714] ss:$2 sm:$0xff]
  %s2716 = scalar_lea.vmem [#allocation3], 160
  %v2717 = vld [vmem:[%s2716] ss:$2 sm:$0xff]
  %s2718 = scalar_lea.vmem [#allocation3], 176
  %v2719 = vld [vmem:[%s2718] ss:$2 sm:$0xff]
  %s2720 = scalar_lea.vmem [#allocation3], 192
  %v2721 = vld [vmem:[%s2720] ss:$2 sm:$0xff]
  %s2722 = scalar_lea.vmem [#allocation3], 208
  %v2723 = vld [vmem:[%s2722] ss:$2 sm:$0xff]
  %s2724 = scalar_lea.vmem [#allocation3], 224
  %v2725 = vld [vmem:[%s2724] ss:$2 sm:$0xff]
  %s2726 = scalar_lea.vmem [#allocation3], 240
  %v2727 = vld [vmem:[%s2726] ss:$2 sm:$0xff]
  %s2728 = scalar_lea.vmem [#allocation3], 1
  %v2729 = vld [vmem:[%s2728] ss:$2 sm:$0xff]
  %s2730 = scalar_lea.vmem [#allocation3], 17
  %v2731 = vld [vmem:[%s2730] ss:$2 sm:$0xff]
  %s2732 = scalar_lea.vmem [#allocation3], 33
  %v2733 = vld [vmem:[%s2732] ss:$2 sm:$0xff]
  %s2734 = scalar_lea.vmem [#allocation3], 49
  %v2735 = vld [vmem:[%s2734] ss:$2 sm:$0xff]
  %s2736 = scalar_lea.vmem [#allocation3], 65
  %v2737 = vld [vmem:[%s2736] ss:$2 sm:$0xff]
  %s2738 = scalar_lea.vmem [#allocation3], 81
  %v2739 = vld [vmem:[%s2738] ss:$2 sm:$0xff]
  %s2740 = scalar_lea.vmem [#allocation3], 97
  %v2741 = vld [vmem:[%s2740] ss:$2 sm:$0xff]
  %s2742 = scalar_lea.vmem [#allocation3], 113
  %v2743 = vld [vmem:[%s2742] ss:$2 sm:$0xff]
  %s2744 = scalar_lea.vmem [#allocation3], 129
  %v2745 = vld [vmem:[%s2744] ss:$2 sm:$0xff]
  %s2746 = scalar_lea.vmem [#allocation3], 145
  %v2747 = vld [vmem:[%s2746] ss:$2 sm:$0xff]
  %s2748 = scalar_lea.vmem [#allocation3], 161
  %v2749 = vld [vmem:[%s2748] ss:$2 sm:$0xff]
  %s2750 = scalar_lea.vmem [#allocation3], 177
  %v2751 = vld [vmem:[%s2750] ss:$2 sm:$0xff]
  %s2752 = scalar_lea.vmem [#allocation3], 193
  %v2753 = vld [vmem:[%s2752] ss:$2 sm:$0xff]
  %s2754 = scalar_lea.vmem [#allocation3], 209
  %v2755 = vld [vmem:[%s2754] ss:$2 sm:$0xff]
  %s2756 = scalar_lea.vmem [#allocation3], 225
  %v2757 = vld [vmem:[%s2756] ss:$2 sm:$0xff]
  %s2758 = scalar_lea.vmem [#allocation3], 241
  %v2759 = vld [vmem:[%s2758] ss:$2 sm:$0xff]
  %v2760 = vmax.f32 %v2697, %v2729
  %v2761 = vmax.f32 %v2699, %v2731
  %v2762 = vmax.f32 %v2701, %v2733
  %v2763 = vmax.f32 %v2703, %v2735
  %v2764 = vmax.f32 %v2705, %v2737
  %v2765 = vmax.f32 %v2707, %v2739
  %v2766 = vmax.f32 %v2709, %v2741
  %v2767 = vmax.f32 %v2711, %v2743
  %v2768 = vmax.f32 %v2713, %v2745
  %v2769 = vmax.f32 %v2715, %v2747
  %v2770 = vmax.f32 %v2717, %v2749
  %v2771 = vmax.f32 %v2719, %v2751
  %v2772 = vmax.f32 %v2721, %v2753
  %v2773 = vmax.f32 %v2723, %v2755
  %v2774 = vmax.f32 %v2725, %v2757
  %v2775 = vmax.f32 %v2727, %v2759
  %2776 = vst.msk [vmem:[#allocation4] sm:$0xff] %vm2664, %v2760
  %2777 = vst.msk [vmem:[#allocation4 + $0x8] sm:$0xff] %vm2664, %v2761
  %2778 = vst.msk [vmem:[#allocation4 + $0x10] sm:$0xff] %vm2664, %v2762
  %2779 = vst.msk [vmem:[#allocation4 + $0x18] sm:$0xff] %vm2664, %v2763
  %2780 = vst.msk [vmem:[#allocation4 + $0x20] sm:$0xff] %vm2664, %v2764
  %2781 = vst.msk [vmem:[#allocation4 + $0x28] sm:$0xff] %vm2664, %v2765
  %2782 = vst.msk [vmem:[#allocation4 + $0x30] sm:$0xff] %vm2664, %v2766
  %2783 = vst.msk [vmem:[#allocation4 + $0x38] sm:$0xff] %vm2664, %v2767
  %2784 = vst.msk [vmem:[#allocation4 + $0x40] sm:$0xff] %vm2664, %v2768
  %2785 = vst.msk [vmem:[#allocation4 + $0x48] sm:$0xff] %vm2664, %v2769
  %2786 = vst.msk [vmem:[#allocation4 + $0x50] sm:$0xff] %vm2664, %v2770
  %2787 = vst.msk [vmem:[#allocation4 + $0x58] sm:$0xff] %vm2664, %v2771
  %2788 = vst.msk [vmem:[#allocation4 + $0x60] sm:$0xff] %vm2664, %v2772
  %2789 = vst.msk [vmem:[#allocation4 + $0x68] sm:$0xff] %vm2664, %v2773
  %2790 = vst.msk [vmem:[#allocation4 + $0x70] sm:$0xff] %vm2664, %v2774
  %2791 = vst.msk [vmem:[#allocation4 + $0x78] sm:$0xff] %vm2664, %v2775
  %2792 = vst.msk [vmem:[#allocation4 + $0x80] sm:$0xff] %vm2664, 0.0
  %v2793 = vld [vmem:[#allocation4] sm:$0xff]
  %v2794 = vld [vmem:[#allocation4 + $0x8] sm:$0xff]
  %v2795 = vld [vmem:[#allocation4 + $0x10] sm:$0xff]
  %v2796 = vld [vmem:[#allocation4 + $0x18] sm:$0xff]
  %v2797 = vld [vmem:[#allocation4 + $0x20] sm:$0xff]
  %v2798 = vld [vmem:[#allocation4 + $0x28] sm:$0xff]
  %v2799 = vld [vmem:[#allocation4 + $0x30] sm:$0xff]
  %v2800 = vld [vmem:[#allocation4 + $0x38] sm:$0xff]
  %v2801 = vld [vmem:[#allocation4 + $0x40] sm:$0xff]
  %v2802 = vld [vmem:[#allocation4 + $0x48] sm:$0xff]
  %v2803 = vld [vmem:[#allocation4 + $0x50] sm:$0xff]
  %v2804 = vld [vmem:[#allocation4 + $0x58] sm:$0xff]
  %v2805 = vld [vmem:[#allocation4 + $0x60] sm:$0xff]
  %v2806 = vld [vmem:[#allocation4 + $0x68] sm:$0xff]
  %v2807 = vld [vmem:[#allocation4 + $0x70] sm:$0xff]
  %v2808 = vld [vmem:[#allocation4 + $0x78] sm:$0xff]
  %v2809 = vpack.c.bf16 %v2794, %v2793
  %v2810 = vpack.c.bf16 %v2796, %v2795
  %v2811 = vpack.c.bf16 %v2798, %v2797
  %v2812 = vpack.c.bf16 %v2800, %v2799
  %v2813 = vpack.c.bf16 %v2802, %v2801
  %v2814 = vpack.c.bf16 %v2804, %v2803
  %v2815 = vpack.c.bf16 %v2806, %v2805
  %v2816 = vpack.c.bf16 %v2808, %v2807
  %v2817 = vld [vmem:[%s4] sm:$0xf]
  %v2818 = vld [vmem:[%s4 + $0x4] sm:$0xf]
  %v2819 = vld [vmem:[%s4 + $0x8] sm:$0xf]
  %v2820 = vld [vmem:[%s4 + $0xc] sm:$0xf]
  %v2821 = vld [vmem:[%s4 + $0x10] sm:$0xf]
  %v2822 = vld [vmem:[%s4 + $0x14] sm:$0xf]
  %v2823 = vld [vmem:[%s4 + $0x18] sm:$0xf]
  %v2824 = vld [vmem:[%s4 + $0x1c] sm:$0xf]
  %v2825 = vld [vmem:[%s4 + $0x20] sm:$0xf]
  %v2826 = vld [vmem:[%s4 + $0x24] sm:$0xf]
  %v2827 = vld [vmem:[%s4 + $0x28] sm:$0x3]
  %v2828 = vld [vmem:[%s5] sm:$0xf]
  %v2829 = vld [vmem:[%s5 + $0x4] sm:$0xf]
  %v2830 = vld [vmem:[%s5 + $0x8] sm:$0xf]
  %v2831 = vld [vmem:[%s5 + $0xc] sm:$0xf]
  %v2832 = vld [vmem:[%s5 + $0x10] sm:$0xf]
  %v2833 = vld [vmem:[%s5 + $0x14] sm:$0xf]
  %v2834 = vld [vmem:[%s5 + $0x18] sm:$0xf]
  %v2835 = vld [vmem:[%s5 + $0x1c] sm:$0xf]
  %v2836 = vld [vmem:[%s5 + $0x20] sm:$0xf]
  %v2837 = vld [vmem:[%s5 + $0x24] sm:$0xf]
  %v2838 = vld [vmem:[%s5 + $0x28] sm:$0x3]
  %v2839 = vld [vmem:[#allocation4 + $0x1] sm:$0xff]
  %v2840 = vld [vmem:[#allocation4 + $0x9] sm:$0xff]
  %v2841 = vld [vmem:[#allocation4 + $0x11] sm:$0xff]
  %v2842 = vld [vmem:[#allocation4 + $0x19] sm:$0xff]
  %v2843 = vld [vmem:[#allocation4 + $0x21] sm:$0xff]
  %v2844 = vld [vmem:[#allocation4 + $0x29] sm:$0xff]
  %v2845 = vld [vmem:[#allocation4 + $0x31] sm:$0xff]
  %v2846 = vld [vmem:[#allocation4 + $0x39] sm:$0xff]
  %v2847 = vld [vmem:[#allocation4 + $0x41] sm:$0xff]
  %v2848 = vld [vmem:[#allocation4 + $0x49] sm:$0xff]
  %v2849 = vld [vmem:[#allocation4 + $0x51] sm:$0xff]
  %v2850 = vld [vmem:[#allocation4 + $0x59] sm:$0xff]
  %v2851 = vld [vmem:[#allocation4 + $0x61] sm:$0xff]
  %v2852 = vld [vmem:[#allocation4 + $0x69] sm:$0xff]
  %v2853 = vld [vmem:[#allocation4 + $0x71] sm:$0xff]
  %v2854 = vld [vmem:[#allocation4 + $0x79] sm:$0xff]
  %v2855 = vpack.c.bf16 %v2840, %v2839
  %v2856 = vpack.c.bf16 %v2842, %v2841
  %v2857 = vpack.c.bf16 %v2844, %v2843
  %v2858 = vpack.c.bf16 %v2846, %v2845
  %v2859 = vpack.c.bf16 %v2848, %v2847
  %v2860 = vpack.c.bf16 %v2850, %v2849
  %v2861 = vpack.c.bf16 %v2852, %v2851
  %v2862 = vpack.c.bf16 %v2854, %v2853
  %s2863 = scalar_lea.vmem %s4, 44
  %v2864 = vld [vmem:[%s2863] sm:$0xf]
  %v2865 = vld [vmem:[%s2863 + $0x4] sm:$0xf]
  %v2866 = vld [vmem:[%s2863 + $0x8] sm:$0xf]
  %v2867 = vld [vmem:[%s2863 + $0xc] sm:$0xf]
  %v2868 = vld [vmem:[%s2863 + $0x10] sm:$0xf]
  %v2869 = vld [vmem:[%s2863 + $0x14] sm:$0xf]
  %v2870 = vld [vmem:[%s2863 + $0x18] sm:$0xf]
  %v2871 = vld [vmem:[%s2863 + $0x1c] sm:$0xf]
  %v2872 = vld [vmem:[%s2863 + $0x20] sm:$0xf]
  %v2873 = vld [vmem:[%s2863 + $0x24] sm:$0xf]
  %v2874 = vld [vmem:[%s2863 + $0x28] sm:$0x3]
  %v2886 = vunpack.c.l.b16 %v2864
  %v2887 = vunpack.c.l.b16 %v2865
  %v2888 = vunpack.c.l.b16 %v2866
  %v2889 = vunpack.c.l.b16 %v2867
  %v2890 = vunpack.c.l.b16 %v2868
  %v2891 = vunpack.c.l.b16 %v2869
  %v2892 = vunpack.c.l.b16 %v2870
  %v2893 = vunpack.c.l.b16 %v2871
  %v2894 = vunpack.c.l.b16 %v2872
  %v2895 = vunpack.c.l.b16 %v2873
  %v2896 = vunpack.c.l.b16 %v2874
  %v2897 = vpack.c.b16 %v2887, %v2886
  %v2898 = vpack.c.b16 %v2889, %v2888
  %v2899 = vpack.c.b16 %v2891, %v2890
  %v2900 = vpack.c.b16 %v2893, %v2892
  %v2901 = vpack.c.b16 %v2895, %v2894
  %v2902 = vpack.c.b16 %v2896, %v2896
  %v2909 = vsel %vm2664, %v2855, 0
  %v2912 = vsel %vm2664, %v2856, 0
  %v2915 = vsel %vm2664, %v2857, 0
  %v2918 = vsel %vm2664, %v2858, 0
  %v2921 = vsel %vm2664, %v2859, 0
  %v2924 = vsel %vm2664, %v2860, 0
  %v2927 = vsel %vm2664, %v2861, 0
  %v2930 = vsel %vm2664, %v2862, 0
  %vm2932 = vcmask 1041408
  %v2934 = vsel %vm2932, %v2902, 0
  %2936 = vmatprep.subr.bf16.mxu0 0
  %2937 = vmatpush1.bf16.msra.mxu0 %v2897
  %2938 = vmatprep.subr.bf16.mxu0 0
  %2939 = vmatpush1.bf16.msra.mxu0 %v2898
  %2940 = vmatprep.subr.bf16.mxu0 0
  %2941 = vmatpush1.bf16.msra.mxu0 %v2899
  %2942 = vmatprep.subr.bf16.mxu0 0
  %2943 = vmatpush1.bf16.msra.mxu0 %v2900
  %2944 = vmatprep.subr.bf16.mxu0 0
  %2945 = vmatpush1.bf16.msra.mxu0 %v2901
  %2946 = vmatprep.subr.bf16.mxu0 0
  %2947 = vmatpush1.bf16.msra.mxu0 %v2934
  %2948 = vmatprep.subr.bf16.mxu0 0
  %2949 = vmatpush1.bf16.msra.mxu0 0
  %2950 = vmatprep.subr.bf16.mxu0 0
  %2951 = vmatpush1.bf16.msra.mxu0 0
  %2952 = vmatprep.subr.bf16.mxu0 0
  %2953 = vmatpush1.bf16.msra.mxu0 0
  %2954 = vmatprep.subr.bf16.mxu0 0
  %2955 = vmatpush1.bf16.msra.mxu0 0
  %2956 = vmatprep.subr.bf16.mxu0 0
  %2957 = vmatpush1.bf16.msra.mxu0 0
  %2958 = vmatprep.subr.bf16.mxu0 0
  %2959 = vmatpush1.bf16.msra.mxu0 0
  %2960 = vmatprep.subr.bf16.mxu0 0
  %2961 = vmatpush1.bf16.msra.mxu0 0
  %2962 = vmatprep.subr.bf16.mxu0 0
  %2963 = vmatpush1.bf16.msra.mxu0 0
  %2964 = vmatprep.subr.bf16.mxu0 0
  %2965 = vmatpush1.bf16.msra.mxu0 0
  %2966 = vmatprep.subr.bf16.mxu0 0
  %2967 = vmatpush1.bf16.msra.mxu0 0
  %2968 = vmatprep.mubr.bf16.mxu0 0
  %2969 = vmatmul.mubr.bf16.gmra.mrb[0].mxu0 %v2909
  %v2970 = vpop.f32.mrb[0].mxu0
  %v2971 = vadd.f32 0.0, %v2970
  %v2972 = vpop.f32.mrb[0].mxu0
  %v2973 = vpop.f32.mrb[0].mxu0
  %v2974 = vadd.f32 0.0, %v2973
  %v2975 = vpop.f32.mrb[0].mxu0
  %2976 = vmatprep.mubr.bf16.mxu0 0
  %2977 = vmatmul.mubr.bf16.gmra.mrb[0].mxu0 %v2912
  %v2978 = vpop.f32.mrb[0].mxu0
  %v2979 = vadd.f32 0.0, %v2978
  %v2980 = vpop.f32.mrb[0].mxu0
  %v2981 = vpop.f32.mrb[0].mxu0
  %v2982 = vadd.f32 0.0, %v2981
  %v2983 = vpop.f32.mrb[0].mxu0
  %2984 = vmatprep.mubr.bf16.mxu0 0
  %2985 = vmatmul.mubr.bf16.gmra.mrb[0].mxu0 %v2915
  %v2986 = vpop.f32.mrb[0].mxu0
  %v2987 = vadd.f32 0.0, %v2986
  %v2988 = vpop.f32.mrb[0].mxu0
  %v2989 = vpop.f32.mrb[0].mxu0
  %v2990 = vadd.f32 0.0, %v2989
  %v2991 = vpop.f32.mrb[0].mxu0
  %2992 = vmatprep.mubr.bf16.mxu0 0
  %2993 = vmatmul.mubr.bf16.gmra.mrb[0].mxu0 %v2918
  %v2994 = vpop.f32.mrb[0].mxu0
  %v2995 = vadd.f32 0.0, %v2994
  %v2996 = vpop.f32.mrb[0].mxu0
  %v2997 = vpop.f32.mrb[0].mxu0
  %v2998 = vadd.f32 0.0, %v2997
  %v2999 = vpop.f32.mrb[0].mxu0
  %3000 = vmatprep.mubr.bf16.mxu0 0
  %3001 = vmatmul.mubr.bf16.gmra.mrb[0].mxu0 %v2921
  %v3002 = vpop.f32.mrb[0].mxu0
  %v3003 = vadd.f32 0.0, %v3002
  %v3004 = vpop.f32.mrb[0].mxu0
  %v3005 = vpop.f32.mrb[0].mxu0
  %v3006 = vadd.f32 0.0, %v3005
  %v3007 = vpop.f32.mrb[0].mxu0
  %3008 = vmatprep.mubr.bf16.mxu0 0
  %3009 = vmatmul.mubr.bf16.gmra.mrb[0].mxu0 %v2924
  %v3010 = vpop.f32.mrb[0].mxu0
  %v3011 = vadd.f32 0.0, %v3010
  %v3012 = vpop.f32.mrb[0].mxu0
  %v3013 = vpop.f32.mrb[0].mxu0
  %v3014 = vadd.f32 0.0, %v3013
  %v3015 = vpop.f32.mrb[0].mxu0
  %3016 = vmatprep.mubr.bf16.mxu0 0
  %3017 = vmatmul.mubr.bf16.gmra.mrb[0].mxu0 %v2927
  %v3018 = vpop.f32.mrb[0].mxu0
  %v3019 = vadd.f32 0.0, %v3018
  %v3020 = vpop.f32.mrb[0].mxu0
  %v3021 = vpop.f32.mrb[0].mxu0
  %v3022 = vadd.f32 0.0, %v3021
  %v3023 = vpop.f32.mrb[0].mxu0
  %3024 = vmatprep.mubr.bf16.mxu0 0
  %3025 = vmatmul.mubr.bf16.gmra.mrb[0].mxu0 %v2930
  %v3026 = vpop.f32.mrb[0].mxu0
  %v3027 = vadd.f32 0.0, %v3026
  %v3028 = vpop.f32.mrb[0].mxu0
  %v3029 = vpop.f32.mrb[0].mxu0
  %v3030 = vadd.f32 0.0, %v3029
  %v3031 = vpop.f32.mrb[0].mxu0
  %3032 = vdwg.mxu0
  %s3033 = scalar_lea.vmem %s5, 44
  %v3034 = vld [vmem:[%s3033] sm:$0xf]
  %v3035 = vld [vmem:[%s3033 + $0x4] sm:$0xf]
  %v3036 = vld [vmem:[%s3033 + $0x8] sm:$0xf]
  %v3037 = vld [vmem:[%s3033 + $0xc] sm:$0xf]
  %v3038 = vld [vmem:[%s3033 + $0x10] sm:$0xf]
  %v3039 = vld [vmem:[%s3033 + $0x14] sm:$0xf]
  %v3040 = vld [vmem:[%s3033 + $0x18] sm:$0xf]
  %v3041 = vld [vmem:[%s3033 + $0x1c] sm:$0xf]
  %v3042 = vld [vmem:[%s3033 + $0x20] sm:$0xf]
  %v3043 = vld [vmem:[%s3033 + $0x24] sm:$0xf]
  %v3044 = vld [vmem:[%s3033 + $0x28] sm:$0x3]
  %v3056 = vunpack.c.l.b16 %v3034
  %v3057 = vunpack.c.l.b16 %v3035
  %v3058 = vunpack.c.l.b16 %v3036
  %v3059 = vunpack.c.l.b16 %v3037
  %v3060 = vunpack.c.l.b16 %v3038
  %v3061 = vunpack.c.l.b16 %v3039
  %v3062 = vunpack.c.l.b16 %v3040
  %v3063 = vunpack.c.l.b16 %v3041
  %v3064 = vunpack.c.l.b16 %v3042
  %v3065 = vunpack.c.l.b16 %v3043
  %v3066 = vunpack.c.l.b16 %v3044
  %v3067 = vpack.c.b16 %v3057, %v3056
  %v3068 = vpack.c.b16 %v3059, %v3058
  %v3069 = vpack.c.b16 %v3061, %v3060
  %v3070 = vpack.c.b16 %v3063, %v3062
  %v3071 = vpack.c.b16 %v3065, %v3064
  %v3072 = vpack.c.b16 %v3066, %v3066
  %v3079 = vsel %vm2932, %v3072, 0
  %3081 = vmatprep.subr.bf16.mxu0 0
  %3082 = vmatpush1.bf16.msra.mxu0 %v3067
  %3083 = vmatprep.subr.bf16.mxu0 0
  %3084 = vmatpush1.bf16.msra.mxu0 %v3068
  %3085 = vmatprep.subr.bf16.mxu0 0
  %3086 = vmatpush1.bf16.msra.mxu0 %v3069
  %3087 = vmatprep.subr.bf16.mxu0 0
  %3088 = vmatpush1.bf16.msra.mxu0 %v3070
  %3089 = vmatprep.subr.bf16.mxu0 0
  %3090 = vmatpush1.bf16.msra.mxu0 %v3071
  %3091 = vmatprep.subr.bf16.mxu0 0
  %3092 = vmatpush1.bf16.msra.mxu0 %v3079
  %3093 = vmatprep.subr.bf16.mxu0 0
  %3094 = vmatpush1.bf16.msra.mxu0 0
  %3095 = vmatprep.subr.bf16.mxu0 0
  %3096 = vmatpush1.bf16.msra.mxu0 0
  %3097 = vmatprep.subr.bf16.mxu0 0
  %3098 = vmatpush1.bf16.msra.mxu0 0
  %3099 = vmatprep.subr.bf16.mxu0 0
  %3100 = vmatpush1.bf16.msra.mxu0 0
  %3101 = vmatprep.subr.bf16.mxu0 0
  %3102 = vmatpush1.bf16.msra.mxu0 0
  %3103 = vmatprep.subr.bf16.mxu0 0
  %3104 = vmatpush1.bf16.msra.mxu0 0
  %3105 = vmatprep.subr.bf16.mxu0 0
  %3106 = vmatpush1.bf16.msra.mxu0 0
  %3107 = vmatprep.subr.bf16.mxu0 0
  %3108 = vmatpush1.bf16.msra.mxu0 0
  %3109 = vmatprep.subr.bf16.mxu0 0
  %3110 = vmatpush1.bf16.msra.mxu0 0
  %3111 = vmatprep.subr.bf16.mxu0 0
  %3112 = vmatpush1.bf16.msra.mxu0 0
  %3113 = vmatprep.mubr.bf16.mxu0 0
  %3114 = vmatmul.mubr.bf16.gmra.mrb[0].mxu0 %v2909
  %v3115 = vpop.f32.mrb[0].mxu0
  %v3116 = vadd.f32 0.0, %v3115
  %v3117 = vpop.f32.mrb[0].mxu0
  %v3118 = vpop.f32.mrb[0].mxu0
  %v3119 = vadd.f32 0.0, %v3118
  %v3120 = vpop.f32.mrb[0].mxu0
  %3121 = vmatprep.mubr.bf16.mxu0 0
  %3122 = vmatmul.mubr.bf16.gmra.mrb[0].mxu0 %v2912
  %v3123 = vpop.f32.mrb[0].mxu0
  %v3124 = vadd.f32 0.0, %v3123
  %v3125 = vpop.f32.mrb[0].mxu0
  %v3126 = vpop.f32.mrb[0].mxu0
  %v3127 = vadd.f32 0.0, %v3126
  %v3128 = vpop.f32.mrb[0].mxu0
  %3129 = vmatprep.mubr.bf16.mxu0 0
  %3130 = vmatmul.mubr.bf16.gmra.mrb[0].mxu0 %v2915
  %v3131 = vpop.f32.mrb[0].mxu0
  %v3132 = vadd.f32 0.0, %v3131
  %v3133 = vpop.f32.mrb[0].mxu0
  %v3134 = vpop.f32.mrb[0].mxu0
  %v3135 = vadd.f32 0.0, %v3134
  %v3136 = vpop.f32.mrb[0].mxu0
  %3137 = vmatprep.mubr.bf16.mxu0 0
  %3138 = vmatmul.mubr.bf16.gmra.mrb[0].mxu0 %v2918
  %v3139 = vpop.f32.mrb[0].mxu0
  %v3140 = vadd.f32 0.0, %v3139
  %v3141 = vpop.f32.mrb[0].mxu0
  %v3142 = vpop.f32.mrb[0].mxu0
  %v3143 = vadd.f32 0.0, %v3142
  %v3144 = vpop.f32.mrb[0].mxu0
  %3145 = vmatprep.mubr.bf16.mxu0 0
  %3146 = vmatmul.mubr.bf16.gmra.mrb[0].mxu0 %v2921
  %v3147 = vpop.f32.mrb[0].mxu0
  %v3148 = vadd.f32 0.0, %v3147
  %v3149 = vpop.f32.mrb[0].mxu0
  %v3150 = vpop.f32.mrb[0].mxu0
  %v3151 = vadd.f32 0.0, %v3150
  %v3152 = vpop.f32.mrb[0].mxu0
  %3153 = vmatprep.mubr.bf16.mxu0 0
  %3154 = vmatmul.mubr.bf16.gmra.mrb[0].mxu0 %v2924
  %v3155 = vpop.f32.mrb[0].mxu0
  %v3156 = vadd.f32 0.0, %v3155
  %v3157 = vpop.f32.mrb[0].mxu0
  %v3158 = vpop.f32.mrb[0].mxu0
  %v3159 = vadd.f32 0.0, %v3158
  %v3160 = vpop.f32.mrb[0].mxu0
  %3161 = vmatprep.mubr.bf16.mxu0 0
  %3162 = vmatmul.mubr.bf16.gmra.mrb[0].mxu0 %v2927
  %v3163 = vpop.f32.mrb[0].mxu0
  %v3164 = vadd.f32 0.0, %v3163
  %v3165 = vpop.f32.mrb[0].mxu0
  %v3166 = vpop.f32.mrb[0].mxu0
  %v3167 = vadd.f32 0.0, %v3166
  %v3168 = vpop.f32.mrb[0].mxu0
  %3169 = vmatprep.mubr.bf16.mxu0 0
  %3170 = vmatmul.mubr.bf16.gmra.mrb[0].mxu0 %v2930
  %v3171 = vpop.f32.mrb[0].mxu0
  %v3172 = vadd.f32 0.0, %v3171
  %v3173 = vpop.f32.mrb[0].mxu0
  %v3174 = vpop.f32.mrb[0].mxu0
  %v3175 = vadd.f32 0.0, %v3174
  %v3176 = vpop.f32.mrb[0].mxu0
  %3177 = vdwg.mxu0
  %v3189 = vunpack.c.l.b16 %v2817
  %v3190 = vunpack.c.l.b16 %v2818
  %v3191 = vunpack.c.l.b16 %v2819
  %v3192 = vunpack.c.l.b16 %v2820
  %v3193 = vunpack.c.l.b16 %v2821
  %v3194 = vunpack.c.l.b16 %v2822
  %v3195 = vunpack.c.l.b16 %v2823
  %v3196 = vunpack.c.l.b16 %v2824
  %v3197 = vunpack.c.l.b16 %v2825
  %v3198 = vunpack.c.l.b16 %v2826
  %v3199 = vunpack.c.l.b16 %v2827
  %v3200 = vpack.c.b16 %v3190, %v3189
  %v3201 = vpack.c.b16 %v3192, %v3191
  %v3202 = vpack.c.b16 %v3194, %v3193
  %v3203 = vpack.c.b16 %v3196, %v3195
  %v3204 = vpack.c.b16 %v3198, %v3197
  %v3205 = vpack.c.b16 %v3199, %v3199
  %v3212 = vsel %vm2664, %v2809, 0
  %v3215 = vsel %vm2664, %v2810, 0
  %v3218 = vsel %vm2664, %v2811, 0
  %v3221 = vsel %vm2664, %v2812, 0
  %v3224 = vsel %vm2664, %v2813, 0
  %v3227 = vsel %vm2664, %v2814, 0
  %v3230 = vsel %vm2664, %v2815, 0
  %v3233 = vsel %vm2664, %v2816, 0
  %v3236 = vsel %vm2932, %v3205, 0
  %3238 = vmatprep.subr.bf16.mxu0 0
  %3239 = vmatpush1.bf16.msra.mxu0 %v3200
  %3240 = vmatprep.subr.bf16.mxu0 0
  %3241 = vmatpush1.bf16.msra.mxu0 %v3201
  %3242 = vmatprep.subr.bf16.mxu0 0
  %3243 = vmatpush1.bf16.msra.mxu0 %v3202
  %3244 = vmatprep.subr.bf16.mxu0 0
  %3245 = vmatpush1.bf16.msra.mxu0 %v3203
  %3246 = vmatprep.subr.bf16.mxu0 0
  %3247 = vmatpush1.bf16.msra.mxu0 %v3204
  %3248 = vmatprep.subr.bf16.mxu0 0
  %3249 = vmatpush1.bf16.msra.mxu0 %v3236
  %3250 = vmatprep.subr.bf16.mxu0 0
  %3251 = vmatpush1.bf16.msra.mxu0 0
  %3252 = vmatprep.subr.bf16.mxu0 0
  %3253 = vmatpush1.bf16.msra.mxu0 0
  %3254 = vmatprep.subr.bf16.mxu0 0
  %3255 = vmatpush1.bf16.msra.mxu0 0
  %3256 = vmatprep.subr.bf16.mxu0 0
  %3257 = vmatpush1.bf16.msra.mxu0 0
  %3258 = vmatprep.subr.bf16.mxu0 0
  %3259 = vmatpush1.bf16.msra.mxu0 0
  %3260 = vmatprep.subr.bf16.mxu0 0
  %3261 = vmatpush1.bf16.msra.mxu0 0
  %3262 = vmatprep.subr.bf16.mxu0 0
  %3263 = vmatpush1.bf16.msra.mxu0 0
  %3264 = vmatprep.subr.bf16.mxu0 0
  %3265 = vmatpush1.bf16.msra.mxu0 0
  %3266 = vmatprep.subr.bf16.mxu0 0
  %3267 = vmatpush1.bf16.msra.mxu0 0
  %3268 = vmatprep.subr.bf16.mxu0 0
  %3269 = vmatpush1.bf16.msra.mxu0 0
  %3270 = vmatprep.mubr.bf16.mxu0 0
  %3271 = vmatmul.mubr.bf16.gmra.mrb[0].mxu0 %v3212
  %v3272 = vpop.f32.mrb[0].mxu0
  %v3273 = vadd.f32 %v2971, %v3272
  %v3274 = vpop.f32.mrb[0].mxu0
  %v3275 = vpop.f32.mrb[0].mxu0
  %v3276 = vadd.f32 %v2974, %v3275
  %v3277 = vpop.f32.mrb[0].mxu0
  %3278 = vmatprep.mubr.bf16.mxu0 0
  %3279 = vmatmul.mubr.bf16.gmra.mrb[0].mxu0 %v3215
  %v3280 = vpop.f32.mrb[0].mxu0
  %v3281 = vadd.f32 %v2979, %v3280
  %v3282 = vpop.f32.mrb[0].mxu0
  %v3283 = vpop.f32.mrb[0].mxu0
  %v3284 = vadd.f32 %v2982, %v3283
  %v3285 = vpop.f32.mrb[0].mxu0
  %3286 = vmatprep.mubr.bf16.mxu0 0
  %3287 = vmatmul.mubr.bf16.gmra.mrb[0].mxu0 %v3218
  %v3288 = vpop.f32.mrb[0].mxu0
  %v3289 = vadd.f32 %v2987, %v3288
  %v3290 = vpop.f32.mrb[0].mxu0
  %v3291 = vpop.f32.mrb[0].mxu0
  %v3292 = vadd.f32 %v2990, %v3291
  %v3293 = vpop.f32.mrb[0].mxu0
  %3294 = vmatprep.mubr.bf16.mxu0 0
  %3295 = vmatmul.mubr.bf16.gmra.mrb[0].mxu0 %v3221
  %v3296 = vpop.f32.mrb[0].mxu0
  %v3297 = vadd.f32 %v2995, %v3296
  %v3298 = vpop.f32.mrb[0].mxu0
  %v3299 = vpop.f32.mrb[0].mxu0
  %v3300 = vadd.f32 %v2998, %v3299
  %v3301 = vpop.f32.mrb[0].mxu0
  %3302 = vmatprep.mubr.bf16.mxu0 0
  %3303 = vmatmul.mubr.bf16.gmra.mrb[0].mxu0 %v3224
  %v3304 = vpop.f32.mrb[0].mxu0
  %v3305 = vadd.f32 %v3003, %v3304
  %v3306 = vpop.f32.mrb[0].mxu0
  %v3307 = vpop.f32.mrb[0].mxu0
  %v3308 = vadd.f32 %v3006, %v3307
  %v3309 = vpop.f32.mrb[0].mxu0
  %3310 = vmatprep.mubr.bf16.mxu0 0
  %3311 = vmatmul.mubr.bf16.gmra.mrb[0].mxu0 %v3227
  %v3312 = vpop.f32.mrb[0].mxu0
  %v3313 = vadd.f32 %v3011, %v3312
  %v3314 = vpop.f32.mrb[0].mxu0
  %v3315 = vpop.f32.mrb[0].mxu0
  %v3316 = vadd.f32 %v3014, %v3315
  %v3317 = vpop.f32.mrb[0].mxu0
  %3318 = vmatprep.mubr.bf16.mxu0 0
  %3319 = vmatmul.mubr.bf16.gmra.mrb[0].mxu0 %v3230
  %v3320 = vpop.f32.mrb[0].mxu0
  %v3321 = vadd.f32 %v3019, %v3320
  %v3322 = vpop.f32.mrb[0].mxu0
  %v3323 = vpop.f32.mrb[0].mxu0
  %v3324 = vadd.f32 %v3022, %v3323
  %v3325 = vpop.f32.mrb[0].mxu0
  %3326 = vmatprep.mubr.bf16.mxu0 0
  %3327 = vmatmul.mubr.bf16.gmra.mrb[0].mxu0 %v3233
  %v3328 = vpop.f32.mrb[0].mxu0
  %v3329 = vadd.f32 %v3027, %v3328
  %v3330 = vpop.f32.mrb[0].mxu0
  %v3331 = vpop.f32.mrb[0].mxu0
  %v3332 = vadd.f32 %v3030, %v3331
  %v3333 = vpop.f32.mrb[0].mxu0
  %3334 = vdwg.mxu0
  %v3346 = vunpack.c.l.b16 %v2828
  %v3347 = vunpack.c.l.b16 %v2829
  %v3348 = vunpack.c.l.b16 %v2830
  %v3349 = vunpack.c.l.b16 %v2831
  %v3350 = vunpack.c.l.b16 %v2832
  %v3351 = vunpack.c.l.b16 %v2833
  %v3352 = vunpack.c.l.b16 %v2834
  %v3353 = vunpack.c.l.b16 %v2835
  %v3354 = vunpack.c.l.b16 %v2836
  %v3355 = vunpack.c.l.b16 %v2837
  %v3356 = vunpack.c.l.b16 %v2838
  %v3357 = vpack.c.b16 %v3347, %v3346
  %v3358 = vpack.c.b16 %v3349, %v3348
  %v3359 = vpack.c.b16 %v3351, %v3350
  %v3360 = vpack.c.b16 %v3353, %v3352
  %v3361 = vpack.c.b16 %v3355, %v3354
  %v3362 = vpack.c.b16 %v3356, %v3356
  %v3369 = vsel %vm2932, %v3362, 0
  %3371 = vmatprep.subr.bf16.mxu0 0
  %3372 = vmatpush1.bf16.msra.mxu0 %v3357
  %3373 = vmatprep.subr.bf16.mxu0 0
  %3374 = vmatpush1.bf16.msra.mxu0 %v3358
  %3375 = vmatprep.subr.bf16.mxu0 0
  %3376 = vmatpush1.bf16.msra.mxu0 %v3359
  %3377 = vmatprep.subr.bf16.mxu0 0
  %3378 = vmatpush1.bf16.msra.mxu0 %v3360
  %3379 = vmatprep.subr.bf16.mxu0 0
  %3380 = vmatpush1.bf16.msra.mxu0 %v3361
  %3381 = vmatprep.subr.bf16.mxu0 0
  %3382 = vmatpush1.bf16.msra.mxu0 %v3369
  %3383 = vmatprep.subr.bf16.mxu0 0
  %3384 = vmatpush1.bf16.msra.mxu0 0
  %3385 = vmatprep.subr.bf16.mxu0 0
  %3386 = vmatpush1.bf16.msra.mxu0 0
  %3387 = vmatprep.subr.bf16.mxu0 0
  %3388 = vmatpush1.bf16.msra.mxu0 0
  %3389 = vmatprep.subr.bf16.mxu0 0
  %3390 = vmatpush1.bf16.msra.mxu0 0
  %3391 = vmatprep.subr.bf16.mxu0 0
  %3392 = vmatpush1.bf16.msra.mxu0 0
  %3393 = vmatprep.subr.bf16.mxu0 0
  %3394 = vmatpush1.bf16.msra.mxu0 0
  %3395 = vmatprep.subr.bf16.mxu0 0
  %3396 = vmatpush1.bf16.msra.mxu0 0
  %3397 = vmatprep.subr.bf16.mxu0 0
  %3398 = vmatpush1.bf16.msra.mxu0 0
  %3399 = vmatprep.subr.bf16.mxu0 0
  %3400 = vmatpush1.bf16.msra.mxu0 0
  %3401 = vmatprep.subr.bf16.mxu0 0
  %3402 = vmatpush1.bf16.msra.mxu0 0
  %3403 = vmatprep.mubr.bf16.mxu0 0
  %3404 = vmatmul.mubr.bf16.gmra.mrb[0].mxu0 %v3212
  %v3405 = vpop.f32.mrb[0].mxu0
  %v3406 = vadd.f32 %v3116, %v3405
  %v3407 = vpop.f32.mrb[0].mxu0
  %v3408 = vpop.f32.mrb[0].mxu0
  %v3409 = vadd.f32 %v3119, %v3408
  %v3410 = vpop.f32.mrb[0].mxu0
  %3411 = vmatprep.mubr.bf16.mxu0 0
  %3412 = vmatmul.mubr.bf16.gmra.mrb[0].mxu0 %v3215
  %v3413 = vpop.f32.mrb[0].mxu0
  %v3414 = vadd.f32 %v3124, %v3413
  %v3415 = vpop.f32.mrb[0].mxu0
  %v3416 = vpop.f32.mrb[0].mxu0
  %v3417 = vadd.f32 %v3127, %v3416
  %v3418 = vpop.f32.mrb[0].mxu0
  %3419 = vmatprep.mubr.bf16.mxu0 0
  %3420 = vmatmul.mubr.bf16.gmra.mrb[0].mxu0 %v3218
  %v3421 = vpop.f32.mrb[0].mxu0
  %v3422 = vadd.f32 %v3132, %v3421
  %v3423 = vpop.f32.mrb[0].mxu0
  %v3424 = vpop.f32.mrb[0].mxu0
  %v3425 = vadd.f32 %v3135, %v3424
  %v3426 = vpop.f32.mrb[0].mxu0
  %3427 = vmatprep.mubr.bf16.mxu0 0
  %3428 = vmatmul.mubr.bf16.gmra.mrb[0].mxu0 %v3221
  %v3429 = vpop.f32.mrb[0].mxu0
  %v3430 = vadd.f32 %v3140, %v3429
  %v3431 = vpop.f32.mrb[0].mxu0
  %v3432 = vpop.f32.mrb[0].mxu0
  %v3433 = vadd.f32 %v3143, %v3432
  %v3434 = vpop.f32.mrb[0].mxu0
  %3435 = vmatprep.mubr.bf16.mxu0 0
  %3436 = vmatmul.mubr.bf16.gmra.mrb[0].mxu0 %v3224
  %v3437 = vpop.f32.mrb[0].mxu0
  %v3438 = vadd.f32 %v3148, %v3437
  %v3439 = vpop.f32.mrb[0].mxu0
  %v3440 = vpop.f32.mrb[0].mxu0
  %v3441 = vadd.f32 %v3151, %v3440
  %v3442 = vpop.f32.mrb[0].mxu0
  %3443 = vmatprep.mubr.bf16.mxu0 0
  %3444 = vmatmul.mubr.bf16.gmra.mrb[0].mxu0 %v3227
  %v3445 = vpop.f32.mrb[0].mxu0
  %v3446 = vadd.f32 %v3156, %v3445
  %v3447 = vpop.f32.mrb[0].mxu0
  %v3448 = vpop.f32.mrb[0].mxu0
  %v3449 = vadd.f32 %v3159, %v3448
  %v3450 = vpop.f32.mrb[0].mxu0
  %3451 = vmatprep.mubr.bf16.mxu0 0
  %3452 = vmatmul.mubr.bf16.gmra.mrb[0].mxu0 %v3230
  %v3453 = vpop.f32.mrb[0].mxu0
  %v3454 = vadd.f32 %v3164, %v3453
  %v3455 = vpop.f32.mrb[0].mxu0
  %v3456 = vpop.f32.mrb[0].mxu0
  %v3457 = vadd.f32 %v3167, %v3456
  %v3458 = vpop.f32.mrb[0].mxu0
  %3459 = vmatprep.mubr.bf16.mxu0 0
  %3460 = vmatmul.mubr.bf16.gmra.mrb[0].mxu0 %v3233
  %v3461 = vpop.f32.mrb[0].mxu0
  %v3462 = vadd.f32 %v3172, %v3461
  %v3463 = vpop.f32.mrb[0].mxu0
  %v3464 = vpop.f32.mrb[0].mxu0
  %v3465 = vadd.f32 %v3175, %v3464
  %v3466 = vpop.f32.mrb[0].mxu0
  %3467 = vdwg.mxu0
  %v3468 = vld [vmem:[#allocation4 + $0x2] sm:$0xff]
  %v3469 = vld [vmem:[#allocation4 + $0xa] sm:$0xff]
  %v3470 = vld [vmem:[#allocation4 + $0x12] sm:$0xff]
  %v3471 = vld [vmem:[#allocation4 + $0x1a] sm:$0xff]
  %v3472 = vld [vmem:[#allocation4 + $0x22] sm:$0xff]
  %v3473 = vld [vmem:[#allocation4 + $0x2a] sm:$0xff]
  %v3474 = vld [vmem:[#allocation4 + $0x32] sm:$0xff]
  %v3475 = vld [vmem:[#allocation4 + $0x3a] sm:$0xff]
  %v3476 = vld [vmem:[#allocation4 + $0x42] sm:$0xff]
  %v3477 = vld [vmem:[#allocation4 + $0x4a] sm:$0xff]
  %v3478 = vld [vmem:[#allocation4 + $0x52] sm:$0xff]
  %v3479 = vld [vmem:[#allocation4 + $0x5a] sm:$0xff]
  %v3480 = vld [vmem:[#allocation4 + $0x62] sm:$0xff]
  %v3481 = vld [vmem:[#allocation4 + $0x6a] sm:$0xff]
  %v3482 = vld [vmem:[#allocation4 + $0x72] sm:$0xff]
  %v3483 = vld [vmem:[#allocation4 + $0x7a] sm:$0xff]
  %v3484 = vpack.c.bf16 %v3469, %v3468
  %v3485 = vpack.c.bf16 %v3471, %v3470
  %v3486 = vpack.c.bf16 %v3473, %v3472
  %v3487 = vpack.c.bf16 %v3475, %v3474
  %v3488 = vpack.c.bf16 %v3477, %v3476
  %v3489 = vpack.c.bf16 %v3479, %v3478
  %v3490 = vpack.c.bf16 %v3481, %v3480
  %v3491 = vpack.c.bf16 %v3483, %v3482
  %s3492 = scalar_lea.vmem %s4, 88
  %v3493 = vld [vmem:[%s3492] sm:$0xf]
  %v3494 = vld [vmem:[%s3492 + $0x4] sm:$0xf]
  %v3495 = vld [vmem:[%s3492 + $0x8] sm:$0xf]
  %v3496 = vld [vmem:[%s3492 + $0xc] sm:$0xf]
  %v3497 = vld [vmem:[%s3492 + $0x10] sm:$0xf]
  %v3498 = vld [vmem:[%s3492 + $0x14] sm:$0xf]
  %v3499 = vld [vmem:[%s3492 + $0x18] sm:$0xf]
  %v3500 = vld [vmem:[%s3492 + $0x1c] sm:$0xf]
  %v3501 = vld [vmem:[%s3492 + $0x20] sm:$0xf]
  %v3502 = vld [vmem:[%s3492 + $0x24] sm:$0xf]
  %v3503 = vld [vmem:[%s3492 + $0x28] sm:$0x3]
  %v3515 = vunpack.c.l.b16 %v3493
  %v3516 = vunpack.c.l.b16 %v3494
  %v3517 = vunpack.c.l.b16 %v3495
  %v3518 = vunpack.c.l.b16 %v3496
  %v3519 = vunpack.c.l.b16 %v3497
  %v3520 = vunpack.c.l.b16 %v3498
  %v3521 = vunpack.c.l.b16 %v3499
  %v3522 = vunpack.c.l.b16 %v3500
  %v3523 = vunpack.c.l.b16 %v3501
  %v3524 = vunpack.c.l.b16 %v3502
  %v3525 = vunpack.c.l.b16 %v3503
  %v3526 = vpack.c.b16 %v3516, %v3515
  %v3527 = vpack.c.b16 %v3518, %v3517
  %v3528 = vpack.c.b16 %v3520, %v3519
  %v3529 = vpack.c.b16 %v3522, %v3521
  %v3530 = vpack.c.b16 %v3524, %v3523
  %v3531 = vpack.c.b16 %v3525, %v3525
  %v3538 = vsel %vm2664, %v3484, 0
  %v3541 = vsel %vm2664, %v3485, 0
  %v3544 = vsel %vm2664, %v3486, 0
  %v3547 = vsel %vm2664, %v3487, 0
  %v3550 = vsel %vm2664, %v3488, 0
  %v3553 = vsel %vm2664, %v3489, 0
  %v3556 = vsel %vm2664, %v3490, 0
  %v3559 = vsel %vm2664, %v3491, 0
  %v3562 = vsel %vm2932, %v3531, 0
  %3564 = vmatprep.subr.bf16.mxu0 0
  %3565 = vmatpush1.bf16.msra.mxu0 %v3526
  %3566 = vmatprep.subr.bf16.mxu0 0
  %3567 = vmatpush1.bf16.msra.mxu0 %v3527
  %3568 = vmatprep.subr.bf16.mxu0 0
  %3569 = vmatpush1.bf16.msra.mxu0 %v3528
  %3570 = vmatprep.subr.bf16.mxu0 0
  %3571 = vmatpush1.bf16.msra.mxu0 %v3529
  %3572 = vmatprep.subr.bf16.mxu0 0
  %3573 = vmatpush1.bf16.msra.mxu0 %v3530
  %3574 = vmatprep.subr.bf16.mxu0 0
  %3575 = vmatpush1.bf16.msra.mxu0 %v3562
  %3576 = vmatprep.subr.bf16.mxu0 0
  %3577 = vmatpush1.bf16.msra.mxu0 0
  %3578 = vmatprep.subr.bf16.mxu0 0
  %3579 = vmatpush1.bf16.msra.mxu0 0
  %3580 = vmatprep.subr.bf16.mxu0 0
  %3581 = vmatpush1.bf16.msra.mxu0 0
  %3582 = vmatprep.subr.bf16.mxu0 0
  %3583 = vmatpush1.bf16.msra.mxu0 0
  %3584 = vmatprep.subr.bf16.mxu0 0
  %3585 = vmatpush1.bf16.msra.mxu0 0
  %3586 = vmatprep.subr.bf16.mxu0 0
  %3587 = vmatpush1.bf16.msra.mxu0 0
  %3588 = vmatprep.subr.bf16.mxu0 0
  %3589 = vmatpush1.bf16.msra.mxu0 0
  %3590 = vmatprep.subr.bf16.mxu0 0
  %3591 = vmatpush1.bf16.msra.mxu0 0
  %3592 = vmatprep.subr.bf16.mxu0 0
  %3593 = vmatpush1.bf16.msra.mxu0 0
  %3594 = vmatprep.subr.bf16.mxu0 0
  %3595 = vmatpush1.bf16.msra.mxu0 0
  %3596 = vmatprep.mubr.bf16.mxu0 0
  %3597 = vmatmul.mubr.bf16.gmra.mrb[0].mxu0 %v3538
  %v3598 = vpop.f32.mrb[0].mxu0
  %v3599 = vadd.f32 0.0, %v3598
  %v3600 = vpop.f32.mrb[0].mxu0
  %v3601 = vpop.f32.mrb[0].mxu0
  %v3602 = vadd.f32 0.0, %v3601
  %v3603 = vpop.f32.mrb[0].mxu0
  %3604 = vmatprep.mubr.bf16.mxu0 0
  %3605 = vmatmul.mubr.bf16.gmra.mrb[0].mxu0 %v3541
  %v3606 = vpop.f32.mrb[0].mxu0
  %v3607 = vadd.f32 0.0, %v3606
  %v3608 = vpop.f32.mrb[0].mxu0
  %v3609 = vpop.f32.mrb[0].mxu0
  %v3610 = vadd.f32 0.0, %v3609
  %v3611 = vpop.f32.mrb[0].mxu0
  %3612 = vmatprep.mubr.bf16.mxu0 0
  %3613 = vmatmul.mubr.bf16.gmra.mrb[0].mxu0 %v3544
  %v3614 = vpop.f32.mrb[0].mxu0
  %v3615 = vadd.f32 0.0, %v3614
  %v3616 = vpop.f32.mrb[0].mxu0
  %v3617 = vpop.f32.mrb[0].mxu0
  %v3618 = vadd.f32 0.0, %v3617
  %v3619 = vpop.f32.mrb[0].mxu0
  %3620 = vmatprep.mubr.bf16.mxu0 0
  %3621 = vmatmul.mubr.bf16.gmra.mrb[0].mxu0 %v3547
  %v3622 = vpop.f32.mrb[0].mxu0
  %v3623 = vadd.f32 0.0, %v3622
  %v3624 = vpop.f32.mrb[0].mxu0
  %v3625 = vpop.f32.mrb[0].mxu0
  %v3626 = vadd.f32 0.0, %v3625
  %v3627 = vpop.f32.mrb[0].mxu0
  %3628 = vmatprep.mubr.bf16.mxu0 0
  %3629 = vmatmul.mubr.bf16.gmra.mrb[0].mxu0 %v3550
  %v3630 = vpop.f32.mrb[0].mxu0
  %v3631 = vadd.f32 0.0, %v3630
  %v3632 = vpop.f32.mrb[0].mxu0
  %v3633 = vpop.f32.mrb[0].mxu0
  %v3634 = vadd.f32 0.0, %v3633
  %v3635 = vpop.f32.mrb[0].mxu0
  %3636 = vmatprep.mubr.bf16.mxu0 0
  %3637 = vmatmul.mubr.bf16.gmra.mrb[0].mxu0 %v3553
  %v3638 = vpop.f32.mrb[0].mxu0
  %v3639 = vadd.f32 0.0, %v3638
  %v3640 = vpop.f32.mrb[0].mxu0
  %v3641 = vpop.f32.mrb[0].mxu0
  %v3642 = vadd.f32 0.0, %v3641
  %v3643 = vpop.f32.mrb[0].mxu0
  %3644 = vmatprep.mubr.bf16.mxu0 0
  %3645 = vmatmul.mubr.bf16.gmra.mrb[0].mxu0 %v3556
  %v3646 = vpop.f32.mrb[0].mxu0
  %v3647 = vadd.f32 0.0, %v3646
  %v3648 = vpop.f32.mrb[0].mxu0
  %v3649 = vpop.f32.mrb[0].mxu0
  %v3650 = vadd.f32 0.0, %v3649
  %v3651 = vpop.f32.mrb[0].mxu0
  %3652 = vmatprep.mubr.bf16.mxu0 0
  %3653 = vmatmul.mubr.bf16.gmra.mrb[0].mxu0 %v3559
  %v3654 = vpop.f32.mrb[0].mxu0
  %v3655 = vadd.f32 0.0, %v3654
  %v3656 = vpop.f32.mrb[0].mxu0
  %v3657 = vpop.f32.mrb[0].mxu0
  %v3658 = vadd.f32 0.0, %v3657
  %v3659 = vpop.f32.mrb[0].mxu0
  %3660 = vdwg.mxu0
  %s3661 = scalar_lea.vmem %s5, 88
  %v3662 = vld [vmem:[%s3661] sm:$0xf]
  %v3663 = vld [vmem:[%s3661 + $0x4] sm:$0xf]
  %v3664 = vld [vmem:[%s3661 + $0x8] sm:$0xf]
  %v3665 = vld [vmem:[%s3661 + $0xc] sm:$0xf]
  %v3666 = vld [vmem:[%s3661 + $0x10] sm:$0xf]
  %v3667 = vld [vmem:[%s3661 + $0x14] sm:$0xf]
  %v3668 = vld [vmem:[%s3661 + $0x18] sm:$0xf]
  %v3669 = vld [vmem:[%s3661 + $0x1c] sm:$0xf]
  %v3670 = vld [vmem:[%s3661 + $0x20] sm:$0xf]
  %v3671 = vld [vmem:[%s3661 + $0x24] sm:$0xf]
  %v3672 = vld [vmem:[%s3661 + $0x28] sm:$0x3]
  %v3684 = vunpack.c.l.b16 %v3662
  %v3685 = vunpack.c.l.b16 %v3663
  %v3686 = vunpack.c.l.b16 %v3664
  %v3687 = vunpack.c.l.b16 %v3665
  %v3688 = vunpack.c.l.b16 %v3666
  %v3689 = vunpack.c.l.b16 %v3667
  %v3690 = vunpack.c.l.b16 %v3668
  %v3691 = vunpack.c.l.b16 %v3669
  %v3692 = vunpack.c.l.b16 %v3670
  %v3693 = vunpack.c.l.b16 %v3671
  %v3694 = vunpack.c.l.b16 %v3672
  %v3695 = vpack.c.b16 %v3685, %v3684
  %v3696 = vpack.c.b16 %v3687, %v3686
  %v3697 = vpack.c.b16 %v3689, %v3688
  %v3698 = vpack.c.b16 %v3691, %v3690
  %v3699 = vpack.c.b16 %v3693, %v3692
  %v3700 = vpack.c.b16 %v3694, %v3694
  %v3707 = vsel %vm2932, %v3700, 0
  %3709 = vmatprep.subr.bf16.mxu0 0
  %3710 = vmatpush1.bf16.msra.mxu0 %v3695
  %3711 = vmatprep.subr.bf16.mxu0 0
  %3712 = vmatpush1.bf16.msra.mxu0 %v3696
  %3713 = vmatprep.subr.bf16.mxu0 0
  %3714 = vmatpush1.bf16.msra.mxu0 %v3697
  %3715 = vmatprep.subr.bf16.mxu0 0
  %3716 = vmatpush1.bf16.msra.mxu0 %v3698
  %3717 = vmatprep.subr.bf16.mxu0 0
  %3718 = vmatpush1.bf16.msra.mxu0 %v3699
  %3719 = vmatprep.subr.bf16.mxu0 0
  %3720 = vmatpush1.bf16.msra.mxu0 %v3707
  %3721 = vmatprep.subr.bf16.mxu0 0
  %3722 = vmatpush1.bf16.msra.mxu0 0
  %3723 = vmatprep.subr.bf16.mxu0 0
  %3724 = vmatpush1.bf16.msra.mxu0 0
  %3725 = vmatprep.subr.bf16.mxu0 0
  %3726 = vmatpush1.bf16.msra.mxu0 0
  %3727 = vmatprep.subr.bf16.mxu0 0
  %3728 = vmatpush1.bf16.msra.mxu0 0
  %3729 = vmatprep.subr.bf16.mxu0 0
  %3730 = vmatpush1.bf16.msra.mxu0 0
  %3731 = vmatprep.subr.bf16.mxu0 0
  %3732 = vmatpush1.bf16.msra.mxu0 0
  %3733 = vmatprep.subr.bf16.mxu0 0
  %3734 = vmatpush1.bf16.msra.mxu0 0
  %3735 = vmatprep.subr.bf16.mxu0 0
  %3736 = vmatpush1.bf16.msra.mxu0 0
  %3737 = vmatprep.subr.bf16.mxu0 0
  %3738 = vmatpush1.bf16.msra.mxu0 0
  %3739 = vmatprep.subr.bf16.mxu0 0
  %3740 = vmatpush1.bf16.msra.mxu0 0
  %3741 = vmatprep.mubr.bf16.mxu0 0
  %3742 = vmatmul.mubr.bf16.gmra.mrb[0].mxu0 %v3538
  %v3743 = vpop.f32.mrb[0].mxu0
  %v3744 = vadd.f32 0.0, %v3743
  %v3745 = vpop.f32.mrb[0].mxu0
  %v3746 = vpop.f32.mrb[0].mxu0
  %v3747 = vadd.f32 0.0, %v3746
  %v3748 = vpop.f32.mrb[0].mxu0
  %3749 = vmatprep.mubr.bf16.mxu0 0
  %3750 = vmatmul.mubr.bf16.gmra.mrb[0].mxu0 %v3541
  %v3751 = vpop.f32.mrb[0].mxu0
  %v3752 = vadd.f32 0.0, %v3751
  %v3753 = vpop.f32.mrb[0].mxu0
  %v3754 = vpop.f32.mrb[0].mxu0
  %v3755 = vadd.f32 0.0, %v3754
  %v3756 = vpop.f32.mrb[0].mxu0
  %3757 = vmatprep.mubr.bf16.mxu0 0
  %3758 = vmatmul.mubr.bf16.gmra.mrb[0].mxu0 %v3544
  %v3759 = vpop.f32.mrb[0].mxu0
  %v3760 = vadd.f32 0.0, %v3759
  %v3761 = vpop.f32.mrb[0].mxu0
  %v3762 = vpop.f32.mrb[0].mxu0
  %v3763 = vadd.f32 0.0, %v3762
  %v3764 = vpop.f32.mrb[0].mxu0
  %3765 = vmatprep.mubr.bf16.mxu0 0
  %3766 = vmatmul.mubr.bf16.gmra.mrb[0].mxu0 %v3547
  %v3767 = vpop.f32.mrb[0].mxu0
  %v3768 = vadd.f32 0.0, %v3767
  %v3769 = vpop.f32.mrb[0].mxu0
  %v3770 = vpop.f32.mrb[0].mxu0
  %v3771 = vadd.f32 0.0, %v3770
  %v3772 = vpop.f32.mrb[0].mxu0
  %3773 = vmatprep.mubr.bf16.mxu0 0
  %3774 = vmatmul.mubr.bf16.gmra.mrb[0].mxu0 %v3550
  %v3775 = vpop.f32.mrb[0].mxu0
  %v3776 = vadd.f32 0.0, %v3775
  %v3777 = vpop.f32.mrb[0].mxu0
  %v3778 = vpop.f32.mrb[0].mxu0
  %v3779 = vadd.f32 0.0, %v3778
  %v3780 = vpop.f32.mrb[0].mxu0
  %3781 = vmatprep.mubr.bf16.mxu0 0
  %3782 = vmatmul.mubr.bf16.gmra.mrb[0].mxu0 %v3553
  %v3783 = vpop.f32.mrb[0].mxu0
  %v3784 = vadd.f32 0.0, %v3783
  %v3785 = vpop.f32.mrb[0].mxu0
  %v3786 = vpop.f32.mrb[0].mxu0
  %v3787 = vadd.f32 0.0, %v3786
  %v3788 = vpop.f32.mrb[0].mxu0
  %3789 = vmatprep.mubr.bf16.mxu0 0
  %3790 = vmatmul.mubr.bf16.gmra.mrb[0].mxu0 %v3556
  %v3791 = vpop.f32.mrb[0].mxu0
  %v3792 = vadd.f32 0.0, %v3791
  %v3793 = vpop.f32.mrb[0].mxu0
  %v3794 = vpop.f32.mrb[0].mxu0
  %v3795 = vadd.f32 0.0, %v3794
  %v3796 = vpop.f32.mrb[0].mxu0
  %3797 = vmatprep.mubr.bf16.mxu0 0
  %3798 = vmatmul.mubr.bf16.gmra.mrb[0].mxu0 %v3559
  %v3799 = vpop.f32.mrb[0].mxu0
  %v3800 = vadd.f32 0.0, %v3799
  %v3801 = vpop.f32.mrb[0].mxu0
  %v3802 = vpop.f32.mrb[0].mxu0
  %v3803 = vadd.f32 0.0, %v3802
  %v3804 = vpop.f32.mrb[0].mxu0
  %3805 = vdwg.mxu0
  %v3806 = vadd.f32 %v3273, %v3599
  %v3807 = vadd.f32 %v3276, %v3602
  %v3808 = vadd.f32 %v3281, %v3607
  %v3809 = vadd.f32 %v3284, %v3610
  %v3810 = vadd.f32 %v3289, %v3615
  %v3811 = vadd.f32 %v3292, %v3618
  %v3812 = vadd.f32 %v3297, %v3623
  %v3813 = vadd.f32 %v3300, %v3626
  %v3814 = vadd.f32 %v3305, %v3631
  %v3815 = vadd.f32 %v3308, %v3634
  %v3816 = vadd.f32 %v3313, %v3639
  %v3817 = vadd.f32 %v3316, %v3642
  %v3818 = vadd.f32 %v3321, %v3647
  %v3819 = vadd.f32 %v3324, %v3650
  %v3820 = vadd.f32 %v3329, %v3655
  %v3821 = vadd.f32 %v3332, %v3658
  %v3822 = vadd.f32 %v3406, %v3744
  %v3823 = vadd.f32 %v3409, %v3747
  %v3824 = vadd.f32 %v3414, %v3752
  %v3825 = vadd.f32 %v3417, %v3755
  %v3826 = vadd.f32 %v3422, %v3760
  %v3827 = vadd.f32 %v3425, %v3763
  %v3828 = vadd.f32 %v3430, %v3768
  %v3829 = vadd.f32 %v3433, %v3771
  %v3830 = vadd.f32 %v3438, %v3776
  %v3831 = vadd.f32 %v3441, %v3779
  %v3832 = vadd.f32 %v3446, %v3784
  %v3833 = vadd.f32 %v3449, %v3787
  %v3834 = vadd.f32 %v3454, %v3792
  %v3835 = vadd.f32 %v3457, %v3795
  %v3836 = vadd.f32 %v3462, %v3800
  %v3837 = vadd.f32 %v3465, %v3803
  %v3838 = vld [vmem:[#allocation4 + $0x3] sm:$0xff]
  %v3839 = vld [vmem:[#allocation4 + $0xb] sm:$0xff]
  %v3840 = vld [vmem:[#allocation4 + $0x13] sm:$0xff]
  %v3841 = vld [vmem:[#allocation4 + $0x1b] sm:$0xff]
  %v3842 = vld [vmem:[#allocation4 + $0x23] sm:$0xff]
  %v3843 = vld [vmem:[#allocation4 + $0x2b] sm:$0xff]
  %v3844 = vld [vmem:[#allocation4 + $0x33] sm:$0xff]
  %v3845 = vld [vmem:[#allocation4 + $0x3b] sm:$0xff]
  %v3846 = vld [vmem:[#allocation4 + $0x43] sm:$0xff]
  %v3847 = vld [vmem:[#allocation4 + $0x4b] sm:$0xff]
  %v3848 = vld [vmem:[#allocation4 + $0x53] sm:$0xff]
  %v3849 = vld [vmem:[#allocation4 + $0x5b] sm:$0xff]
  %v3850 = vld [vmem:[#allocation4 + $0x63] sm:$0xff]
  %v3851 = vld [vmem:[#allocation4 + $0x6b] sm:$0xff]
  %v3852 = vld [vmem:[#allocation4 + $0x73] sm:$0xff]
  %v3853 = vld [vmem:[#allocation4 + $0x7b] sm:$0xff]
  %v3854 = vpack.c.bf16 %v3839, %v3838
  %v3855 = vpack.c.bf16 %v3841, %v3840
  %v3856 = vpack.c.bf16 %v3843, %v3842
  %v3857 = vpack.c.bf16 %v3845, %v3844
  %v3858 = vpack.c.bf16 %v3847, %v3846
  %v3859 = vpack.c.bf16 %v3849, %v3848
  %v3860 = vpack.c.bf16 %v3851, %v3850
  %v3861 = vpack.c.bf16 %v3853, %v3852
  %s3862 = scalar_lea.vmem %s4, 132
  %v3863 = vld [vmem:[%s3862] sm:$0xf]
  %v3864 = vld [vmem:[%s3862 + $0x4] sm:$0xf]
  %v3865 = vld [vmem:[%s3862 + $0x8] sm:$0xf]
  %v3866 = vld [vmem:[%s3862 + $0xc] sm:$0xf]
  %v3867 = vld [vmem:[%s3862 + $0x10] sm:$0xf]
  %v3868 = vld [vmem:[%s3862 + $0x14] sm:$0xf]
  %v3869 = vld [vmem:[%s3862 + $0x18] sm:$0xf]
  %v3870 = vld [vmem:[%s3862 + $0x1c] sm:$0xf]
  %v3871 = vld [vmem:[%s3862 + $0x20] sm:$0xf]
  %v3872 = vld [vmem:[%s3862 + $0x24] sm:$0xf]
  %v3873 = vld [vmem:[%s3862 + $0x28] sm:$0x3]
  %v3885 = vunpack.c.l.b16 %v3863
  %v3886 = vunpack.c.l.b16 %v3864
  %v3887 = vunpack.c.l.b16 %v3865
  %v3888 = vunpack.c.l.b16 %v3866
  %v3889 = vunpack.c.l.b16 %v3867
  %v3890 = vunpack.c.l.b16 %v3868
  %v3891 = vunpack.c.l.b16 %v3869
  %v3892 = vunpack.c.l.b16 %v3870
  %v3893 = vunpack.c.l.b16 %v3871
  %v3894 = vunpack.c.l.b16 %v3872
  %v3895 = vunpack.c.l.b16 %v3873
  %v3896 = vpack.c.b16 %v3886, %v3885
  %v3897 = vpack.c.b16 %v3888, %v3887
  %v3898 = vpack.c.b16 %v3890, %v3889
  %v3899 = vpack.c.b16 %v3892, %v3891
  %v3900 = vpack.c.b16 %v3894, %v3893
  %v3901 = vpack.c.b16 %v3895, %v3895
  %v3908 = vsel %vm2664, %v3854, 0
  %v3911 = vsel %vm2664, %v3855, 0
  %v3914 = vsel %vm2664, %v3856, 0
  %v3917 = vsel %vm2664, %v3857, 0
  %v3920 = vsel %vm2664, %v3858, 0
  %v3923 = vsel %vm2664, %v3859, 0
  %v3926 = vsel %vm2664, %v3860, 0
  %v3929 = vsel %vm2664, %v3861, 0
  %v3932 = vsel %vm2932, %v3901, 0
  %3934 = vmatprep.subr.bf16.mxu0 0
  %3935 = vmatpush1.bf16.msra.mxu0 %v3896
  %3936 = vmatprep.subr.bf16.mxu0 0
  %3937 = vmatpush1.bf16.msra.mxu0 %v3897
  %3938 = vmatprep.subr.bf16.mxu0 0
  %3939 = vmatpush1.bf16.msra.mxu0 %v3898
  %3940 = vmatprep.subr.bf16.mxu0 0
  %3941 = vmatpush1.bf16.msra.mxu0 %v3899
  %3942 = vmatprep.subr.bf16.mxu0 0
  %3943 = vmatpush1.bf16.msra.mxu0 %v3900
  %3944 = vmatprep.subr.bf16.mxu0 0
  %3945 = vmatpush1.bf16.msra.mxu0 %v3932
  %3946 = vmatprep.subr.bf16.mxu0 0
  %3947 = vmatpush1.bf16.msra.mxu0 0
  %3948 = vmatprep.subr.bf16.mxu0 0
  %3949 = vmatpush1.bf16.msra.mxu0 0
  %3950 = vmatprep.subr.bf16.mxu0 0
  %3951 = vmatpush1.bf16.msra.mxu0 0
  %3952 = vmatprep.subr.bf16.mxu0 0
  %3953 = vmatpush1.bf16.msra.mxu0 0
  %3954 = vmatprep.subr.bf16.mxu0 0
  %3955 = vmatpush1.bf16.msra.mxu0 0
  %3956 = vmatprep.subr.bf16.mxu0 0
  %3957 = vmatpush1.bf16.msra.mxu0 0
  %3958 = vmatprep.subr.bf16.mxu0 0
  %3959 = vmatpush1.bf16.msra.mxu0 0
  %3960 = vmatprep.subr.bf16.mxu0 0
  %3961 = vmatpush1.bf16.msra.mxu0 0
  %3962 = vmatprep.subr.bf16.mxu0 0
  %3963 = vmatpush1.bf16.msra.mxu0 0
  %3964 = vmatprep.subr.bf16.mxu0 0
  %3965 = vmatpush1.bf16.msra.mxu0 0
  %3966 = vmatprep.mubr.bf16.mxu0 0
  %3967 = vmatmul.mubr.bf16.gmra.mrb[0].mxu0 %v3908
  %v3968 = vpop.f32.mrb[0].mxu0
  %v3969 = vadd.f32 0.0, %v3968
  %v3970 = vpop.f32.mrb[0].mxu0
  %v3971 = vpop.f32.mrb[0].mxu0
  %v3972 = vadd.f32 0.0, %v3971
  %v3973 = vpop.f32.mrb[0].mxu0
  %3974 = vmatprep.mubr.bf16.mxu0 0
  %3975 = vmatmul.mubr.bf16.gmra.mrb[0].mxu0 %v3911
  %v3976 = vpop.f32.mrb[0].mxu0
  %v3977 = vadd.f32 0.0, %v3976
  %v3978 = vpop.f32.mrb[0].mxu0
  %v3979 = vpop.f32.mrb[0].mxu0
  %v3980 = vadd.f32 0.0, %v3979
  %v3981 = vpop.f32.mrb[0].mxu0
  %3982 = vmatprep.mubr.bf16.mxu0 0
  %3983 = vmatmul.mubr.bf16.gmra.mrb[0].mxu0 %v3914
  %v3984 = vpop.f32.mrb[0].mxu0
  %v3985 = vadd.f32 0.0, %v3984
  %v3986 = vpop.f32.mrb[0].mxu0
  %v3987 = vpop.f32.mrb[0].mxu0
  %v3988 = vadd.f32 0.0, %v3987
  %v3989 = vpop.f32.mrb[0].mxu0
  %3990 = vmatprep.mubr.bf16.mxu0 0
  %3991 = vmatmul.mubr.bf16.gmra.mrb[0].mxu0 %v3917
  %v3992 = vpop.f32.mrb[0].mxu0
  %v3993 = vadd.f32 0.0, %v3992
  %v3994 = vpop.f32.mrb[0].mxu0
  %v3995 = vpop.f32.mrb[0].mxu0
  %v3996 = vadd.f32 0.0, %v3995
  %v3997 = vpop.f32.mrb[0].mxu0
  %3998 = vmatprep.mubr.bf16.mxu0 0
  %3999 = vmatmul.mubr.bf16.gmra.mrb[0].mxu0 %v3920
  %v4000 = vpop.f32.mrb[0].mxu0
  %v4001 = vadd.f32 0.0, %v4000
  %v4002 = vpop.f32.mrb[0].mxu0
  %v4003 = vpop.f32.mrb[0].mxu0
  %v4004 = vadd.f32 0.0, %v4003
  %v4005 = vpop.f32.mrb[0].mxu0
  %4006 = vmatprep.mubr.bf16.mxu0 0
  %4007 = vmatmul.mubr.bf16.gmra.mrb[0].mxu0 %v3923
  %v4008 = vpop.f32.mrb[0].mxu0
  %v4009 = vadd.f32 0.0, %v4008
  %v4010 = vpop.f32.mrb[0].mxu0
  %v4011 = vpop.f32.mrb[0].mxu0
  %v4012 = vadd.f32 0.0, %v4011
  %v4013 = vpop.f32.mrb[0].mxu0
  %4014 = vmatprep.mubr.bf16.mxu0 0
  %4015 = vmatmul.mubr.bf16.gmra.mrb[0].mxu0 %v3926
  %v4016 = vpop.f32.mrb[0].mxu0
  %v4017 = vadd.f32 0.0, %v4016
  %v4018 = vpop.f32.mrb[0].mxu0
  %v4019 = vpop.f32.mrb[0].mxu0
  %v4020 = vadd.f32 0.0, %v4019
  %v4021 = vpop.f32.mrb[0].mxu0
  %4022 = vmatprep.mubr.bf16.mxu0 0
  %4023 = vmatmul.mubr.bf16.gmra.mrb[0].mxu0 %v3929
  %v4024 = vpop.f32.mrb[0].mxu0
  %v4025 = vadd.f32 0.0, %v4024
  %v4026 = vpop.f32.mrb[0].mxu0
  %v4027 = vpop.f32.mrb[0].mxu0
  %v4028 = vadd.f32 0.0, %v4027
  %v4029 = vpop.f32.mrb[0].mxu0
  %4030 = vdwg.mxu0
  %s4031 = scalar_lea.vmem %s5, 132
  %v4032 = vld [vmem:[%s4031] sm:$0xf]
  %v4033 = vld [vmem:[%s4031 + $0x4] sm:$0xf]
  %v4034 = vld [vmem:[%s4031 + $0x8] sm:$0xf]
  %v4035 = vld [vmem:[%s4031 + $0xc] sm:$0xf]
  %v4036 = vld [vmem:[%s4031 + $0x10] sm:$0xf]
  %v4037 = vld [vmem:[%s4031 + $0x14] sm:$0xf]
  %v4038 = vld [vmem:[%s4031 + $0x18] sm:$0xf]
  %v4039 = vld [vmem:[%s4031 + $0x1c] sm:$0xf]
  %v4040 = vld [vmem:[%s4031 + $0x20] sm:$0xf]
  %v4041 = vld [vmem:[%s4031 + $0x24] sm:$0xf]
  %v4042 = vld [vmem:[%s4031 + $0x28] sm:$0x3]
  %v4054 = vunpack.c.l.b16 %v4032
  %v4055 = vunpack.c.l.b16 %v4033
  %v4056 = vunpack.c.l.b16 %v4034
  %v4057 = vunpack.c.l.b16 %v4035
  %v4058 = vunpack.c.l.b16 %v4036
  %v4059 = vunpack.c.l.b16 %v4037
  %v4060 = vunpack.c.l.b16 %v4038
  %v4061 = vunpack.c.l.b16 %v4039
  %v4062 = vunpack.c.l.b16 %v4040
  %v4063 = vunpack.c.l.b16 %v4041
  %v4064 = vunpack.c.l.b16 %v4042
  %v4065 = vpack.c.b16 %v4055, %v4054
  %v4066 = vpack.c.b16 %v4057, %v4056
  %v4067 = vpack.c.b16 %v4059, %v4058
  %v4068 = vpack.c.b16 %v4061, %v4060
  %v4069 = vpack.c.b16 %v4063, %v4062
  %v4070 = vpack.c.b16 %v4064, %v4064
  %v4077 = vsel %vm2932, %v4070, 0
  %4079 = vmatprep.subr.bf16.mxu0 0
  %4080 = vmatpush1.bf16.msra.mxu0 %v4065
  %4081 = vmatprep.subr.bf16.mxu0 0
  %4082 = vmatpush1.bf16.msra.mxu0 %v4066
  %4083 = vmatprep.subr.bf16.mxu0 0
  %4084 = vmatpush1.bf16.msra.mxu0 %v4067
  %4085 = vmatprep.subr.bf16.mxu0 0
  %4086 = vmatpush1.bf16.msra.mxu0 %v4068
  %4087 = vmatprep.subr.bf16.mxu0 0
  %4088 = vmatpush1.bf16.msra.mxu0 %v4069
  %4089 = vmatprep.subr.bf16.mxu0 0
  %4090 = vmatpush1.bf16.msra.mxu0 %v4077
  %4091 = vmatprep.subr.bf16.mxu0 0
  %4092 = vmatpush1.bf16.msra.mxu0 0
  %4093 = vmatprep.subr.bf16.mxu0 0
  %4094 = vmatpush1.bf16.msra.mxu0 0
  %4095 = vmatprep.subr.bf16.mxu0 0
  %4096 = vmatpush1.bf16.msra.mxu0 0
  %4097 = vmatprep.subr.bf16.mxu0 0
  %4098 = vmatpush1.bf16.msra.mxu0 0
  %4099 = vmatprep.subr.bf16.mxu0 0
  %4100 = vmatpush1.bf16.msra.mxu0 0
  %4101 = vmatprep.subr.bf16.mxu0 0
  %4102 = vmatpush1.bf16.msra.mxu0 0
  %4103 = vmatprep.subr.bf16.mxu0 0
  %4104 = vmatpush1.bf16.msra.mxu0 0
  %4105 = vmatprep.subr.bf16.mxu0 0
  %4106 = vmatpush1.bf16.msra.mxu0 0
  %4107 = vmatprep.subr.bf16.mxu0 0
  %4108 = vmatpush1.bf16.msra.mxu0 0
  %4109 = vmatprep.subr.bf16.mxu0 0
  %4110 = vmatpush1.bf16.msra.mxu0 0
  %4111 = vmatprep.mubr.bf16.mxu0 0
  %4112 = vmatmul.mubr.bf16.gmra.mrb[0].mxu0 %v3908
  %v4113 = vpop.f32.mrb[0].mxu0
  %v4114 = vadd.f32 0.0, %v4113
  %v4115 = vpop.f32.mrb[0].mxu0
  %v4116 = vpop.f32.mrb[0].mxu0
  %v4117 = vadd.f32 0.0, %v4116
  %v4118 = vpop.f32.mrb[0].mxu0
  %4119 = vmatprep.mubr.bf16.mxu0 0
  %4120 = vmatmul.mubr.bf16.gmra.mrb[0].mxu0 %v3911
  %v4121 = vpop.f32.mrb[0].mxu0
  %v4122 = vadd.f32 0.0, %v4121
  %v4123 = vpop.f32.mrb[0].mxu0
  %v4124 = vpop.f32.mrb[0].mxu0
  %v4125 = vadd.f32 0.0, %v4124
  %v4126 = vpop.f32.mrb[0].mxu0
  %4127 = vmatprep.mubr.bf16.mxu0 0
  %4128 = vmatmul.mubr.bf16.gmra.mrb[0].mxu0 %v3914
  %v4129 = vpop.f32.mrb[0].mxu0
  %v4130 = vadd.f32 0.0, %v4129
  %v4131 = vpop.f32.mrb[0].mxu0
  %v4132 = vpop.f32.mrb[0].mxu0
  %v4133 = vadd.f32 0.0, %v4132
  %v4134 = vpop.f32.mrb[0].mxu0
  %4135 = vmatprep.mubr.bf16.mxu0 0
  %4136 = vmatmul.mubr.bf16.gmra.mrb[0].mxu0 %v3917
  %v4137 = vpop.f32.mrb[0].mxu0
  %v4138 = vadd.f32 0.0, %v4137
  %v4139 = vpop.f32.mrb[0].mxu0
  %v4140 = vpop.f32.mrb[0].mxu0
  %v4141 = vadd.f32 0.0, %v4140
  %v4142 = vpop.f32.mrb[0].mxu0
  %4143 = vmatprep.mubr.bf16.mxu0 0
  %4144 = vmatmul.mubr.bf16.gmra.mrb[0].mxu0 %v3920
  %v4145 = vpop.f32.mrb[0].mxu0
  %v4146 = vadd.f32 0.0, %v4145
  %v4147 = vpop.f32.mrb[0].mxu0
  %v4148 = vpop.f32.mrb[0].mxu0
  %v4149 = vadd.f32 0.0, %v4148
  %v4150 = vpop.f32.mrb[0].mxu0
  %4151 = vmatprep.mubr.bf16.mxu0 0
  %4152 = vmatmul.mubr.bf16.gmra.mrb[0].mxu0 %v3923
  %v4153 = vpop.f32.mrb[0].mxu0
  %v4154 = vadd.f32 0.0, %v4153
  %v4155 = vpop.f32.mrb[0].mxu0
  %v4156 = vpop.f32.mrb[0].mxu0
  %v4157 = vadd.f32 0.0, %v4156
  %v4158 = vpop.f32.mrb[0].mxu0
  %4159 = vmatprep.mubr.bf16.mxu0 0
  %4160 = vmatmul.mubr.bf16.gmra.mrb[0].mxu0 %v3926
  %v4161 = vpop.f32.mrb[0].mxu0
  %v4162 = vadd.f32 0.0, %v4161
  %v4163 = vpop.f32.mrb[0].mxu0
  %v4164 = vpop.f32.mrb[0].mxu0
  %v4165 = vadd.f32 0.0, %v4164
  %v4166 = vpop.f32.mrb[0].mxu0
  %4167 = vmatprep.mubr.bf16.mxu0 0
  %4168 = vmatmul.mubr.bf16.gmra.mrb[0].mxu0 %v3929
  %v4169 = vpop.f32.mrb[0].mxu0
  %v4170 = vadd.f32 0.0, %v4169
  %v4171 = vpop.f32.mrb[0].mxu0
  %v4172 = vpop.f32.mrb[0].mxu0
  %v4173 = vadd.f32 0.0, %v4172
  %v4174 = vpop.f32.mrb[0].mxu0
  %4175 = vdwg.mxu0
  %v4176 = vadd.f32 %v3806, %v3969
  %v4177 = vadd.f32 %v3807, %v3972
  %v4178 = vadd.f32 %v3808, %v3977
  %v4179 = vadd.f32 %v3809, %v3980
  %v4180 = vadd.f32 %v3810, %v3985
  %v4181 = vadd.f32 %v3811, %v3988
  %v4182 = vadd.f32 %v3812, %v3993
  %v4183 = vadd.f32 %v3813, %v3996
  %v4184 = vadd.f32 %v3814, %v4001
  %v4185 = vadd.f32 %v3815, %v4004
  %v4186 = vadd.f32 %v3816, %v4009
  %v4187 = vadd.f32 %v3817, %v4012
  %v4188 = vadd.f32 %v3818, %v4017
  %v4189 = vadd.f32 %v3819, %v4020
  %v4190 = vadd.f32 %v3820, %v4025
  %v4191 = vadd.f32 %v3821, %v4028
  %v4192 = vadd.f32 %v3822, %v4114
  %v4193 = vadd.f32 %v3823, %v4117
  %v4194 = vadd.f32 %v3824, %v4122
  %v4195 = vadd.f32 %v3825, %v4125
  %v4196 = vadd.f32 %v3826, %v4130
  %v4197 = vadd.f32 %v3827, %v4133
  %v4198 = vadd.f32 %v3828, %v4138
  %v4199 = vadd.f32 %v3829, %v4141
  %v4200 = vadd.f32 %v3830, %v4146
  %v4201 = vadd.f32 %v3831, %v4149
  %v4202 = vadd.f32 %v3832, %v4154
  %v4203 = vadd.f32 %v3833, %v4157
  %v4204 = vadd.f32 %v3834, %v4162
  %v4205 = vadd.f32 %v3835, %v4165
  %v4206 = vadd.f32 %v3836, %v4170
  %v4207 = vadd.f32 %v3837, %v4173
  %v4208 = vld [vmem:[#allocation4 + $0x4] sm:$0xff]
  %v4209 = vld [vmem:[#allocation4 + $0xc] sm:$0xff]
  %v4210 = vld [vmem:[#allocation4 + $0x14] sm:$0xff]
  %v4211 = vld [vmem:[#allocation4 + $0x1c] sm:$0xff]
  %v4212 = vld [vmem:[#allocation4 + $0x24] sm:$0xff]
  %v4213 = vld [vmem:[#allocation4 + $0x2c] sm:$0xff]
  %v4214 = vld [vmem:[#allocation4 + $0x34] sm:$0xff]
  %v4215 = vld [vmem:[#allocation4 + $0x3c] sm:$0xff]
  %v4216 = vld [vmem:[#allocation4 + $0x44] sm:$0xff]
  %v4217 = vld [vmem:[#allocation4 + $0x4c] sm:$0xff]
  %v4218 = vld [vmem:[#allocation4 + $0x54] sm:$0xff]
  %v4219 = vld [vmem:[#allocation4 + $0x5c] sm:$0xff]
  %v4220 = vld [vmem:[#allocation4 + $0x64] sm:$0xff]
  %v4221 = vld [vmem:[#allocation4 + $0x6c] sm:$0xff]
  %v4222 = vld [vmem:[#allocation4 + $0x74] sm:$0xff]
  %v4223 = vld [vmem:[#allocation4 + $0x7c] sm:$0xff]
  %v4224 = vpack.c.bf16 %v4209, %v4208
  %v4225 = vpack.c.bf16 %v4211, %v4210
  %v4226 = vpack.c.bf16 %v4213, %v4212
  %v4227 = vpack.c.bf16 %v4215, %v4214
  %v4228 = vpack.c.bf16 %v4217, %v4216
  %v4229 = vpack.c.bf16 %v4219, %v4218
  %v4230 = vpack.c.bf16 %v4221, %v4220
  %v4231 = vpack.c.bf16 %v4223, %v4222
  %s4232 = scalar_lea.vmem %s4, 176
  %v4233 = vld [vmem:[%s4232] sm:$0xf]
  %v4234 = vld [vmem:[%s4232 + $0x4] sm:$0xf]
  %v4235 = vld [vmem:[%s4232 + $0x8] sm:$0xf]
  %v4236 = vld [vmem:[%s4232 + $0xc] sm:$0xf]
  %v4237 = vld [vmem:[%s4232 + $0x10] sm:$0xf]
  %v4238 = vld [vmem:[%s4232 + $0x14] sm:$0xf]
  %v4239 = vld [vmem:[%s4232 + $0x18] sm:$0xf]
  %v4240 = vld [vmem:[%s4232 + $0x1c] sm:$0xf]
  %v4241 = vld [vmem:[%s4232 + $0x20] sm:$0xf]
  %v4242 = vld [vmem:[%s4232 + $0x24] sm:$0xf]
  %v4243 = vld [vmem:[%s4232 + $0x28] sm:$0x3]
  %v4255 = vunpack.c.l.b16 %v4233
  %v4256 = vunpack.c.l.b16 %v4234
  %v4257 = vunpack.c.l.b16 %v4235
  %v4258 = vunpack.c.l.b16 %v4236
  %v4259 = vunpack.c.l.b16 %v4237
  %v4260 = vunpack.c.l.b16 %v4238
  %v4261 = vunpack.c.l.b16 %v4239
  %v4262 = vunpack.c.l.b16 %v4240
  %v4263 = vunpack.c.l.b16 %v4241
  %v4264 = vunpack.c.l.b16 %v4242
  %v4265 = vunpack.c.l.b16 %v4243
  %v4266 = vpack.c.b16 %v4256, %v4255
  %v4267 = vpack.c.b16 %v4258, %v4257
  %v4268 = vpack.c.b16 %v4260, %v4259
  %v4269 = vpack.c.b16 %v4262, %v4261
  %v4270 = vpack.c.b16 %v4264, %v4263
  %v4271 = vpack.c.b16 %v4265, %v4265
  %v4278 = vsel %vm2664, %v4224, 0
  %v4281 = vsel %vm2664, %v4225, 0
  %v4284 = vsel %vm2664, %v4226, 0
  %v4287 = vsel %vm2664, %v4227, 0
  %v4290 = vsel %vm2664, %v4228, 0
  %v4293 = vsel %vm2664, %v4229, 0
  %v4296 = vsel %vm2664, %v4230, 0
  %v4299 = vsel %vm2664, %v4231, 0
  %v4302 = vsel %vm2932, %v4271, 0
  %4304 = vmatprep.subr.bf16.mxu0 0
  %4305 = vmatpush1.bf16.msra.mxu0 %v4266
  %4306 = vmatprep.subr.bf16.mxu0 0
  %4307 = vmatpush1.bf16.msra.mxu0 %v4267
  %4308 = vmatprep.subr.bf16.mxu0 0
  %4309 = vmatpush1.bf16.msra.mxu0 %v4268
  %4310 = vmatprep.subr.bf16.mxu0 0
  %4311 = vmatpush1.bf16.msra.mxu0 %v4269
  %4312 = vmatprep.subr.bf16.mxu0 0
  %4313 = vmatpush1.bf16.msra.mxu0 %v4270
  %4314 = vmatprep.subr.bf16.mxu0 0
  %4315 = vmatpush1.bf16.msra.mxu0 %v4302
  %4316 = vmatprep.subr.bf16.mxu0 0
  %4317 = vmatpush1.bf16.msra.mxu0 0
  %4318 = vmatprep.subr.bf16.mxu0 0
  %4319 = vmatpush1.bf16.msra.mxu0 0
  %4320 = vmatprep.subr.bf16.mxu0 0
  %4321 = vmatpush1.bf16.msra.mxu0 0
  %4322 = vmatprep.subr.bf16.mxu0 0
  %4323 = vmatpush1.bf16.msra.mxu0 0
  %4324 = vmatprep.subr.bf16.mxu0 0
  %4325 = vmatpush1.bf16.msra.mxu0 0
  %4326 = vmatprep.subr.bf16.mxu0 0
  %4327 = vmatpush1.bf16.msra.mxu0 0
  %4328 = vmatprep.subr.bf16.mxu0 0
  %4329 = vmatpush1.bf16.msra.mxu0 0
  %4330 = vmatprep.subr.bf16.mxu0 0
  %4331 = vmatpush1.bf16.msra.mxu0 0
  %4332 = vmatprep.subr.bf16.mxu0 0
  %4333 = vmatpush1.bf16.msra.mxu0 0
  %4334 = vmatprep.subr.bf16.mxu0 0
  %4335 = vmatpush1.bf16.msra.mxu0 0
  %4336 = vmatprep.mubr.bf16.mxu0 0
  %4337 = vmatmul.mubr.bf16.gmra.mrb[0].mxu0 %v4278
  %v4338 = vpop.f32.mrb[0].mxu0
  %v4339 = vadd.f32 0.0, %v4338
  %v4340 = vpop.f32.mrb[0].mxu0
  %v4341 = vpop.f32.mrb[0].mxu0
  %v4342 = vadd.f32 0.0, %v4341
  %v4343 = vpop.f32.mrb[0].mxu0
  %4344 = vmatprep.mubr.bf16.mxu0 0
  %4345 = vmatmul.mubr.bf16.gmra.mrb[0].mxu0 %v4281
  %v4346 = vpop.f32.mrb[0].mxu0
  %v4347 = vadd.f32 0.0, %v4346
  %v4348 = vpop.f32.mrb[0].mxu0
  %v4349 = vpop.f32.mrb[0].mxu0
  %v4350 = vadd.f32 0.0, %v4349
  %v4351 = vpop.f32.mrb[0].mxu0
  %4352 = vmatprep.mubr.bf16.mxu0 0
  %4353 = vmatmul.mubr.bf16.gmra.mrb[0].mxu0 %v4284
  %v4354 = vpop.f32.mrb[0].mxu0
  %v4355 = vadd.f32 0.0, %v4354
  %v4356 = vpop.f32.mrb[0].mxu0
  %v4357 = vpop.f32.mrb[0].mxu0
  %v4358 = vadd.f32 0.0, %v4357
  %v4359 = vpop.f32.mrb[0].mxu0
  %4360 = vmatprep.mubr.bf16.mxu0 0
  %4361 = vmatmul.mubr.bf16.gmra.mrb[0].mxu0 %v4287
  %v4362 = vpop.f32.mrb[0].mxu0
  %v4363 = vadd.f32 0.0, %v4362
  %v4364 = vpop.f32.mrb[0].mxu0
  %v4365 = vpop.f32.mrb[0].mxu0
  %v4366 = vadd.f32 0.0, %v4365
  %v4367 = vpop.f32.mrb[0].mxu0
  %4368 = vmatprep.mubr.bf16.mxu0 0
  %4369 = vmatmul.mubr.bf16.gmra.mrb[0].mxu0 %v4290
  %v4370 = vpop.f32.mrb[0].mxu0
  %v4371 = vadd.f32 0.0, %v4370
  %v4372 = vpop.f32.mrb[0].mxu0
  %v4373 = vpop.f32.mrb[0].mxu0
  %v4374 = vadd.f32 0.0, %v4373
  %v4375 = vpop.f32.mrb[0].mxu0
  %4376 = vmatprep.mubr.bf16.mxu0 0
  %4377 = vmatmul.mubr.bf16.gmra.mrb[0].mxu0 %v4293
  %v4378 = vpop.f32.mrb[0].mxu0
  %v4379 = vadd.f32 0.0, %v4378
  %v4380 = vpop.f32.mrb[0].mxu0
  %v4381 = vpop.f32.mrb[0].mxu0
  %v4382 = vadd.f32 0.0, %v4381
  %v4383 = vpop.f32.mrb[0].mxu0
  %4384 = vmatprep.mubr.bf16.mxu0 0
  %4385 = vmatmul.mubr.bf16.gmra.mrb[0].mxu0 %v4296
  %v4386 = vpop.f32.mrb[0].mxu0
  %v4387 = vadd.f32 0.0, %v4386
  %v4388 = vpop.f32.mrb[0].mxu0
  %v4389 = vpop.f32.mrb[0].mxu0
  %v4390 = vadd.f32 0.0, %v4389
  %v4391 = vpop.f32.mrb[0].mxu0
  %4392 = vmatprep.mubr.bf16.mxu0 0
  %4393 = vmatmul.mubr.bf16.gmra.mrb[0].mxu0 %v4299
  %v4394 = vpop.f32.mrb[0].mxu0
  %v4395 = vadd.f32 0.0, %v4394
  %v4396 = vpop.f32.mrb[0].mxu0
  %v4397 = vpop.f32.mrb[0].mxu0
  %v4398 = vadd.f32 0.0, %v4397
  %v4399 = vpop.f32.mrb[0].mxu0
  %4400 = vdwg.mxu0
  %s4401 = scalar_lea.vmem %s5, 176
  %v4402 = vld [vmem:[%s4401] sm:$0xf]
  %v4403 = vld [vmem:[%s4401 + $0x4] sm:$0xf]
  %v4404 = vld [vmem:[%s4401 + $0x8] sm:$0xf]
  %v4405 = vld [vmem:[%s4401 + $0xc] sm:$0xf]
  %v4406 = vld [vmem:[%s4401 + $0x10] sm:$0xf]
  %v4407 = vld [vmem:[%s4401 + $0x14] sm:$0xf]
  %v4408 = vld [vmem:[%s4401 + $0x18] sm:$0xf]
  %v4409 = vld [vmem:[%s4401 + $0x1c] sm:$0xf]
  %v4410 = vld [vmem:[%s4401 + $0x20] sm:$0xf]
  %v4411 = vld [vmem:[%s4401 + $0x24] sm:$0xf]
  %v4412 = vld [vmem:[%s4401 + $0x28] sm:$0x3]
  %v4424 = vunpack.c.l.b16 %v4402
  %v4425 = vunpack.c.l.b16 %v4403
  %v4426 = vunpack.c.l.b16 %v4404
  %v4427 = vunpack.c.l.b16 %v4405
  %v4428 = vunpack.c.l.b16 %v4406
  %v4429 = vunpack.c.l.b16 %v4407
  %v4430 = vunpack.c.l.b16 %v4408
  %v4431 = vunpack.c.l.b16 %v4409
  %v4432 = vunpack.c.l.b16 %v4410
  %v4433 = vunpack.c.l.b16 %v4411
  %v4434 = vunpack.c.l.b16 %v4412
  %v4435 = vpack.c.b16 %v4425, %v4424
  %v4436 = vpack.c.b16 %v4427, %v4426
  %v4437 = vpack.c.b16 %v4429, %v4428
  %v4438 = vpack.c.b16 %v4431, %v4430
  %v4439 = vpack.c.b16 %v4433, %v4432
  %v4440 = vpack.c.b16 %v4434, %v4434
  %v4447 = vsel %vm2932, %v4440, 0
  %4449 = vmatprep.subr.bf16.mxu0 0
  %4450 = vmatpush1.bf16.msra.mxu0 %v4435
  %4451 = vmatprep.subr.bf16.mxu0 0
  %4452 = vmatpush1.bf16.msra.mxu0 %v4436
  %4453 = vmatprep.subr.bf16.mxu0 0
  %4454 = vmatpush1.bf16.msra.mxu0 %v4437
  %4455 = vmatprep.subr.bf16.mxu0 0
  %4456 = vmatpush1.bf16.msra.mxu0 %v4438
  %4457 = vmatprep.subr.bf16.mxu0 0
  %4458 = vmatpush1.bf16.msra.mxu0 %v4439
  %4459 = vmatprep.subr.bf16.mxu0 0
  %4460 = vmatpush1.bf16.msra.mxu0 %v4447
  %4461 = vmatprep.subr.bf16.mxu0 0
  %4462 = vmatpush1.bf16.msra.mxu0 0
  %4463 = vmatprep.subr.bf16.mxu0 0
  %4464 = vmatpush1.bf16.msra.mxu0 0
  %4465 = vmatprep.subr.bf16.mxu0 0
  %4466 = vmatpush1.bf16.msra.mxu0 0
  %4467 = vmatprep.subr.bf16.mxu0 0
  %4468 = vmatpush1.bf16.msra.mxu0 0
  %4469 = vmatprep.subr.bf16.mxu0 0
  %4470 = vmatpush1.bf16.msra.mxu0 0
  %4471 = vmatprep.subr.bf16.mxu0 0
  %4472 = vmatpush1.bf16.msra.mxu0 0
  %4473 = vmatprep.subr.bf16.mxu0 0
  %4474 = vmatpush1.bf16.msra.mxu0 0
  %4475 = vmatprep.subr.bf16.mxu0 0
  %4476 = vmatpush1.bf16.msra.mxu0 0
  %4477 = vmatprep.subr.bf16.mxu0 0
  %4478 = vmatpush1.bf16.msra.mxu0 0
  %4479 = vmatprep.subr.bf16.mxu0 0
  %4480 = vmatpush1.bf16.msra.mxu0 0
  %4481 = vmatprep.mubr.bf16.mxu0 0
  %4482 = vmatmul.mubr.bf16.gmra.mrb[0].mxu0 %v4278
  %v4483 = vpop.f32.mrb[0].mxu0
  %v4484 = vadd.f32 0.0, %v4483
  %v4485 = vpop.f32.mrb[0].mxu0
  %v4486 = vpop.f32.mrb[0].mxu0
  %v4487 = vadd.f32 0.0, %v4486
  %v4488 = vpop.f32.mrb[0].mxu0
  %4489 = vmatprep.mubr.bf16.mxu0 0
  %4490 = vmatmul.mubr.bf16.gmra.mrb[0].mxu0 %v4281
  %v4491 = vpop.f32.mrb[0].mxu0
  %v4492 = vadd.f32 0.0, %v4491
  %v4493 = vpop.f32.mrb[0].mxu0
  %v4494 = vpop.f32.mrb[0].mxu0
  %v4495 = vadd.f32 0.0, %v4494
  %v4496 = vpop.f32.mrb[0].mxu0
  %4497 = vmatprep.mubr.bf16.mxu0 0
  %4498 = vmatmul.mubr.bf16.gmra.mrb[0].mxu0 %v4284
  %v4499 = vpop.f32.mrb[0].mxu0
  %v4500 = vadd.f32 0.0, %v4499
  %v4501 = vpop.f32.mrb[0].mxu0
  %v4502 = vpop.f32.mrb[0].mxu0
  %v4503 = vadd.f32 0.0, %v4502
  %v4504 = vpop.f32.mrb[0].mxu0
  %4505 = vmatprep.mubr.bf16.mxu0 0
  %4506 = vmatmul.mubr.bf16.gmra.mrb[0].mxu0 %v4287
  %v4507 = vpop.f32.mrb[0].mxu0
  %v4508 = vadd.f32 0.0, %v4507
  %v4509 = vpop.f32.mrb[0].mxu0
  %v4510 = vpop.f32.mrb[0].mxu0
  %v4511 = vadd.f32 0.0, %v4510
  %v4512 = vpop.f32.mrb[0].mxu0
  %4513 = vmatprep.mubr.bf16.mxu0 0
  %4514 = vmatmul.mubr.bf16.gmra.mrb[0].mxu0 %v4290
  %v4515 = vpop.f32.mrb[0].mxu0
  %v4516 = vadd.f32 0.0, %v4515
  %v4517 = vpop.f32.mrb[0].mxu0
  %v4518 = vpop.f32.mrb[0].mxu0
  %v4519 = vadd.f32 0.0, %v4518
  %v4520 = vpop.f32.mrb[0].mxu0
  %4521 = vmatprep.mubr.bf16.mxu0 0
  %4522 = vmatmul.mubr.bf16.gmra.mrb[0].mxu0 %v4293
  %v4523 = vpop.f32.mrb[0].mxu0
  %v4524 = vadd.f32 0.0, %v4523
  %v4525 = vpop.f32.mrb[0].mxu0
  %v4526 = vpop.f32.mrb[0].mxu0
  %v4527 = vadd.f32 0.0, %v4526
  %v4528 = vpop.f32.mrb[0].mxu0
  %4529 = vmatprep.mubr.bf16.mxu0 0
  %4530 = vmatmul.mubr.bf16.gmra.mrb[0].mxu0 %v4296
  %v4531 = vpop.f32.mrb[0].mxu0
  %v4532 = vadd.f32 0.0, %v4531
  %v4533 = vpop.f32.mrb[0].mxu0
  %v4534 = vpop.f32.mrb[0].mxu0
  %v4535 = vadd.f32 0.0, %v4534
  %v4536 = vpop.f32.mrb[0].mxu0
  %4537 = vmatprep.mubr.bf16.mxu0 0
  %4538 = vmatmul.mubr.bf16.gmra.mrb[0].mxu0 %v4299
  %v4539 = vpop.f32.mrb[0].mxu0
  %v4540 = vadd.f32 0.0, %v4539
  %v4541 = vpop.f32.mrb[0].mxu0
  %v4542 = vpop.f32.mrb[0].mxu0
  %v4543 = vadd.f32 0.0, %v4542
  %v4544 = vpop.f32.mrb[0].mxu0
  %4545 = vdwg.mxu0
  %v4546 = vadd.f32 %v4176, %v4339
  %v4547 = vadd.f32 %v4177, %v4342
  %v4548 = vadd.f32 %v4178, %v4347
  %v4549 = vadd.f32 %v4179, %v4350
  %v4550 = vadd.f32 %v4180, %v4355
  %v4551 = vadd.f32 %v4181, %v4358
  %v4552 = vadd.f32 %v4182, %v4363
  %v4553 = vadd.f32 %v4183, %v4366
  %v4554 = vadd.f32 %v4184, %v4371
  %v4555 = vadd.f32 %v4185, %v4374
  %v4556 = vadd.f32 %v4186, %v4379
  %v4557 = vadd.f32 %v4187, %v4382
  %v4558 = vadd.f32 %v4188, %v4387
  %v4559 = vadd.f32 %v4189, %v4390
  %v4560 = vadd.f32 %v4190, %v4395
  %v4561 = vadd.f32 %v4191, %v4398
  %v4562 = vadd.f32 %v4192, %v4484
  %v4563 = vadd.f32 %v4193, %v4487
  %v4564 = vadd.f32 %v4194, %v4492
  %v4565 = vadd.f32 %v4195, %v4495
  %v4566 = vadd.f32 %v4196, %v4500
  %v4567 = vadd.f32 %v4197, %v4503
  %v4568 = vadd.f32 %v4198, %v4508
  %v4569 = vadd.f32 %v4199, %v4511
  %v4570 = vadd.f32 %v4200, %v4516
  %v4571 = vadd.f32 %v4201, %v4519
  %v4572 = vadd.f32 %v4202, %v4524
  %v4573 = vadd.f32 %v4203, %v4527
  %v4574 = vadd.f32 %v4204, %v4532
  %v4575 = vadd.f32 %v4205, %v4535
  %v4576 = vadd.f32 %v4206, %v4540
  %v4577 = vadd.f32 %v4207, %v4543
  %v4578 = vmax.f32 %v4546, %v4562
  %v4579 = vmax.f32 %v4547, %v4563
  %v4580 = vmax.f32 %v4548, %v4564
  %v4581 = vmax.f32 %v4549, %v4565
  %v4582 = vmax.f32 %v4550, %v4566
  %v4583 = vmax.f32 %v4551, %v4567
  %v4584 = vmax.f32 %v4552, %v4568
  %v4585 = vmax.f32 %v4553, %v4569
  %v4586 = vmax.f32 %v4554, %v4570
  %v4587 = vmax.f32 %v4555, %v4571
  %v4588 = vmax.f32 %v4556, %v4572
  %v4589 = vmax.f32 %v4557, %v4573
  %v4590 = vmax.f32 %v4558, %v4574
  %v4591 = vmax.f32 %v4559, %v4575
  %v4592 = vmax.f32 %v4560, %v4576
  %v4593 = vmax.f32 %v4561, %v4577
  %v4594 = vld [vmem:[%s6] sm:$0x1]
  %v4596 = vlaneseq
  %v4597 = vshrl.u32 %v4596, 7
  %v4598 = vsub.s32 0, %v4597
  %v4599 = vrot.slane %v4594, %v4598
  %v4601 = vadd.f32 %v4578, %v4599
  %v4602 = vadd.f32 %v4579, %v4599
  %v4603 = vadd.f32 %v4580, %v4599
  %v4604 = vadd.f32 %v4581, %v4599
  %v4605 = vadd.f32 %v4582, %v4599
  %v4606 = vadd.f32 %v4583, %v4599
  %v4607 = vadd.f32 %v4584, %v4599
  %v4608 = vadd.f32 %v4585, %v4599
  %v4609 = vadd.f32 %v4586, %v4599
  %v4610 = vadd.f32 %v4587, %v4599
  %v4611 = vadd.f32 %v4588, %v4599
  %v4612 = vadd.f32 %v4589, %v4599
  %v4613 = vadd.f32 %v4590, %v4599
  %v4614 = vadd.f32 %v4591, %v4599
  %v4615 = vadd.f32 %v4592, %v4599
  %v4616 = vadd.f32 %v4593, %v4599
  %v4617 = vmax.f32 %v4601, 0.0
  %v4618 = vmax.f32 %v4602, 0.0
  %v4619 = vmax.f32 %v4603, 0.0
  %v4620 = vmax.f32 %v4604, 0.0
  %v4621 = vmax.f32 %v4605, 0.0
  %v4622 = vmax.f32 %v4606, 0.0
  %v4623 = vmax.f32 %v4607, 0.0
  %v4624 = vmax.f32 %v4608, 0.0
  %v4625 = vmax.f32 %v4609, 0.0
  %v4626 = vmax.f32 %v4610, 0.0
  %v4627 = vmax.f32 %v4611, 0.0
  %v4628 = vmax.f32 %v4612, 0.0
  %v4629 = vmax.f32 %v4613, 0.0
  %v4630 = vmax.f32 %v4614, 0.0
  %v4631 = vmax.f32 %v4615, 0.0
  %v4632 = vmax.f32 %v4616, 0.0
  %vm4633 = vcmask 654336
  %4634 = vst.msk [vmem:[#allocation5] sm:$0xff] %vm4633, %v4617
  %4635 = vst.msk [vmem:[#allocation5 + $0x8] sm:$0xff] %vm4633, %v4618
  %4636 = vst.msk [vmem:[#allocation5 + $0x10] sm:$0xff] %vm4633, %v4619
  %4637 = vst.msk [vmem:[#allocation5 + $0x18] sm:$0xff] %vm4633, %v4620
  %4638 = vst.msk [vmem:[#allocation5 + $0x20] sm:$0xff] %vm4633, %v4621
  %4639 = vst.msk [vmem:[#allocation5 + $0x28] sm:$0xff] %vm4633, %v4622
  %4640 = vst.msk [vmem:[#allocation5 + $0x30] sm:$0xff] %vm4633, %v4623
  %4641 = vst.msk [vmem:[#allocation5 + $0x38] sm:$0xff] %vm4633, %v4624
  %4642 = vst.msk [vmem:[#allocation5 + $0x40] sm:$0xff] %vm4633, %v4625
  %4643 = vst.msk [vmem:[#allocation5 + $0x48] sm:$0xff] %vm4633, %v4626
  %4644 = vst.msk [vmem:[#allocation5 + $0x50] sm:$0xff] %vm4633, %v4627
  %4645 = vst.msk [vmem:[#allocation5 + $0x58] sm:$0xff] %vm4633, %v4628
  %4646 = vst.msk [vmem:[#allocation5 + $0x60] sm:$0xff] %vm4633, %v4629
  %4647 = vst.msk [vmem:[#allocation5 + $0x68] sm:$0xff] %vm4633, %v4630
  %4648 = vst.msk [vmem:[#allocation5 + $0x70] sm:$0xff] %vm4633, %v4631
  %4649 = vst.msk [vmem:[#allocation5 + $0x78] sm:$0xff] %vm4633, %v4632
  %v4650 = vld [vmem:[#allocation5] ss:$2 sm:$0xff]
  %s4651 = scalar_lea.vmem [#allocation5], 16
  %v4652 = vld [vmem:[%s4651] ss:$2 sm:$0xff]
  %s4653 = scalar_lea.vmem [#allocation5], 32
  %v4654 = vld [vmem:[%s4653] ss:$2 sm:$0xff]
  %s4655 = scalar_lea.vmem [#allocation5], 48
  %v4656 = vld [vmem:[%s4655] ss:$2 sm:$0xff]
  %s4657 = scalar_lea.vmem [#allocation5], 64
  %v4658 = vld [vmem:[%s4657] ss:$2 sm:$0xff]
  %s4659 = scalar_lea.vmem [#allocation5], 80
  %v4660 = vld [vmem:[%s4659] ss:$2 sm:$0xff]
  %s4661 = scalar_lea.vmem [#allocation5], 96
  %v4662 = vld [vmem:[%s4661] ss:$2 sm:$0xff]
  %s4663 = scalar_lea.vmem [#allocation5], 112
  %v4664 = vld [vmem:[%s4663] ss:$2 sm:$0xff]
  %s4665 = scalar_lea.vmem [#allocation5], 1
  %v4666 = vld [vmem:[%s4665] ss:$2 sm:$0xff]
  %s4667 = scalar_lea.vmem [#allocation5], 17
  %v4668 = vld [vmem:[%s4667] ss:$2 sm:$0xff]
  %s4669 = scalar_lea.vmem [#allocation5], 33
  %v4670 = vld [vmem:[%s4669] ss:$2 sm:$0xff]
  %s4671 = scalar_lea.vmem [#allocation5], 49
  %v4672 = vld [vmem:[%s4671] ss:$2 sm:$0xff]
  %s4673 = scalar_lea.vmem [#allocation5], 65
  %v4674 = vld [vmem:[%s4673] ss:$2 sm:$0xff]
  %s4675 = scalar_lea.vmem [#allocation5], 81
  %v4676 = vld [vmem:[%s4675] ss:$2 sm:$0xff]
  %s4677 = scalar_lea.vmem [#allocation5], 97
  %v4678 = vld [vmem:[%s4677] ss:$2 sm:$0xff]
  %s4679 = scalar_lea.vmem [#allocation5], 113
  %v4680 = vld [vmem:[%s4679] ss:$2 sm:$0xff]
  %v4681 = vmax.f32 %v4650, %v4666
  %v4682 = vmax.f32 %v4652, %v4668
  %v4683 = vmax.f32 %v4654, %v4670
  %v4684 = vmax.f32 %v4656, %v4672
  %v4685 = vmax.f32 %v4658, %v4674
  %v4686 = vmax.f32 %v4660, %v4676
  %v4687 = vmax.f32 %v4662, %v4678
  %v4688 = vmax.f32 %v4664, %v4680
  %4689 = vst.msk [vmem:[#allocation6] sm:$0xff] %vm4633, %v4681
  %4690 = vst.msk [vmem:[#allocation6 + $0x8] sm:$0xff] %vm4633, %v4682
  %4691 = vst.msk [vmem:[#allocation6 + $0x10] sm:$0xff] %vm4633, %v4683
  %4692 = vst.msk [vmem:[#allocation6 + $0x18] sm:$0xff] %vm4633, %v4684
  %4693 = vst.msk [vmem:[#allocation6 + $0x20] sm:$0xff] %vm4633, %v4685
  %4694 = vst.msk [vmem:[#allocation6 + $0x28] sm:$0xff] %vm4633, %v4686
  %4695 = vst.msk [vmem:[#allocation6 + $0x30] sm:$0xff] %vm4633, %v4687
  %4696 = vst.msk [vmem:[#allocation6 + $0x38] sm:$0xff] %vm4633, %v4688
  %v4697 = vld [vmem:[#allocation6] ss:$8 sm:$0xf]
  %v4698 = vld [vmem:[#allocation6] ss:$8 sm:$0xf0]
  %v4699 = vor.u32 %v4697, %v4698
  %v4700 = vpack.c.bf16 %v4699, %v4699
  %v4701 = vld [vmem:[%s7] sm:$0xf]
  %v4702 = vld [vmem:[%s7 + $0x4] sm:$0xf]
  %v4703 = vld [vmem:[%s7 + $0x8] sm:$0xf]
  %v4704 = vld [vmem:[%s7 + $0xc] sm:$0xf]
  %v4705 = vld [vmem:[%s7 + $0x10] sm:$0xf]
  %v4706 = vld [vmem:[%s7 + $0x14] sm:$0xf]
  %v4707 = vld [vmem:[%s7 + $0x18] sm:$0xf]
  %v4708 = vld [vmem:[%s7 + $0x1c] sm:$0xf]
  %v4709 = vld [vmem:[%s7 + $0x20] sm:$0xf]
  %v4710 = vld [vmem:[%s7 + $0x24] sm:$0xf]
  %s4711 = scalar_lea.vmem [#allocation6], 1
  %v4712 = vld [vmem:[%s4711] ss:$8 sm:$0xf]
  %v4713 = vld [vmem:[%s4711] ss:$8 sm:$0xf0]
  %v4714 = vor.u32 %v4712, %v4713
  %v4715 = vpack.c.bf16 %v4714, %v4714
  %s4716 = scalar_lea.vmem %s7, 40
  %v4717 = vld [vmem:[%s4716] sm:$0xf]
  %v4718 = vld [vmem:[%s4716 + $0x4] sm:$0xf]
  %v4719 = vld [vmem:[%s4716 + $0x8] sm:$0xf]
  %v4720 = vld [vmem:[%s4716 + $0xc] sm:$0xf]
  %v4721 = vld [vmem:[%s4716 + $0x10] sm:$0xf]
  %v4722 = vld [vmem:[%s4716 + $0x14] sm:$0xf]
  %v4723 = vld [vmem:[%s4716 + $0x18] sm:$0xf]
  %v4724 = vld [vmem:[%s4716 + $0x1c] sm:$0xf]
  %v4725 = vld [vmem:[%s4716 + $0x20] sm:$0xf]
  %v4726 = vld [vmem:[%s4716 + $0x24] sm:$0xf]
  %v4737 = vunpack.c.l.b16 %v4717
  %v4738 = vunpack.c.l.b16 %v4718
  %v4739 = vunpack.c.l.b16 %v4719
  %v4740 = vunpack.c.l.b16 %v4720
  %v4741 = vunpack.c.l.b16 %v4721
  %v4742 = vunpack.c.l.b16 %v4722
  %v4743 = vunpack.c.l.b16 %v4723
  %v4744 = vunpack.c.l.b16 %v4724
  %v4745 = vunpack.c.l.b16 %v4725
  %v4746 = vunpack.c.l.b16 %v4726
  %v4747 = vpack.c.b16 %v4738, %v4737
  %v4748 = vpack.c.b16 %v4740, %v4739
  %v4749 = vpack.c.b16 %v4742, %v4741
  %v4750 = vpack.c.b16 %v4744, %v4743
  %v4751 = vpack.c.b16 %v4746, %v4745
  %v4758 = vsel %vm4633, %v4715, 0
  %4760 = vmatprep.subr.bf16.mxu0 0
  %4761 = vmatpush1.bf16.msra.mxu0 %v4747
  %4762 = vmatprep.subr.bf16.mxu0 0
  %4763 = vmatpush1.bf16.msra.mxu0 %v4748
  %4764 = vmatprep.subr.bf16.mxu0 0
  %4765 = vmatpush1.bf16.msra.mxu0 %v4749
  %4766 = vmatprep.subr.bf16.mxu0 0
  %4767 = vmatpush1.bf16.msra.mxu0 %v4750
  %4768 = vmatprep.subr.bf16.mxu0 0
  %4769 = vmatpush1.bf16.msra.mxu0 %v4751
  %4770 = vmatprep.subr.bf16.mxu0 0
  %4771 = vmatpush1.bf16.msra.mxu0 0
  %4772 = vmatprep.subr.bf16.mxu0 0
  %4773 = vmatpush1.bf16.msra.mxu0 0
  %4774 = vmatprep.subr.bf16.mxu0 0
  %4775 = vmatpush1.bf16.msra.mxu0 0
  %4776 = vmatprep.subr.bf16.mxu0 0
  %4777 = vmatpush1.bf16.msra.mxu0 0
  %4778 = vmatprep.subr.bf16.mxu0 0
  %4779 = vmatpush1.bf16.msra.mxu0 0
  %4780 = vmatprep.subr.bf16.mxu0 0
  %4781 = vmatpush1.bf16.msra.mxu0 0
  %4782 = vmatprep.subr.bf16.mxu0 0
  %4783 = vmatpush1.bf16.msra.mxu0 0
  %4784 = vmatprep.subr.bf16.mxu0 0
  %4785 = vmatpush1.bf16.msra.mxu0 0
  %4786 = vmatprep.subr.bf16.mxu0 0
  %4787 = vmatpush1.bf16.msra.mxu0 0
  %4788 = vmatprep.subr.bf16.mxu0 0
  %4789 = vmatpush1.bf16.msra.mxu0 0
  %4790 = vmatprep.subr.bf16.mxu0 0
  %4791 = vmatpush1.bf16.msra.mxu0 0
  %4792 = vmatprep.mubr.bf16.mxu0 0
  %4793 = vmatmul.mubr.bf16.gmra.mrb[0].mxu0 %v4758
  %v4794 = vpop.f32.mrb[0].mxu0
  %v4795 = vadd.f32 0.0, %v4794
  %v4796 = vpop.f32.mrb[0].mxu0
  %v4797 = vpop.f32.mrb[0].mxu0
  %v4798 = vpop.f32.mrb[0].mxu0
  %4799 = vdwg.mxu0
  %v4810 = vunpack.c.l.b16 %v4701
  %v4811 = vunpack.c.l.b16 %v4702
  %v4812 = vunpack.c.l.b16 %v4703
  %v4813 = vunpack.c.l.b16 %v4704
  %v4814 = vunpack.c.l.b16 %v4705
  %v4815 = vunpack.c.l.b16 %v4706
  %v4816 = vunpack.c.l.b16 %v4707
  %v4817 = vunpack.c.l.b16 %v4708
  %v4818 = vunpack.c.l.b16 %v4709
  %v4819 = vunpack.c.l.b16 %v4710
  %v4820 = vpack.c.b16 %v4811, %v4810
  %v4821 = vpack.c.b16 %v4813, %v4812
  %v4822 = vpack.c.b16 %v4815, %v4814
  %v4823 = vpack.c.b16 %v4817, %v4816
  %v4824 = vpack.c.b16 %v4819, %v4818
  %v4831 = vsel %vm4633, %v4700, 0
  %4833 = vmatprep.subr.bf16.mxu0 0
  %4834 = vmatpush1.bf16.msra.mxu0 %v4820
  %4835 = vmatprep.subr.bf16.mxu0 0
  %4836 = vmatpush1.bf16.msra.mxu0 %v4821
  %4837 = vmatprep.subr.bf16.mxu0 0
  %4838 = vmatpush1.bf16.msra.mxu0 %v4822
  %4839 = vmatprep.subr.bf16.mxu0 0
  %4840 = vmatpush1.bf16.msra.mxu0 %v4823
  %4841 = vmatprep.subr.bf16.mxu0 0
  %4842 = vmatpush1.bf16.msra.mxu0 %v4824
  %4843 = vmatprep.subr.bf16.mxu0 0
  %4844 = vmatpush1.bf16.msra.mxu0 0
  %4845 = vmatprep.subr.bf16.mxu0 0
  %4846 = vmatpush1.bf16.msra.mxu0 0
  %4847 = vmatprep.subr.bf16.mxu0 0
  %4848 = vmatpush1.bf16.msra.mxu0 0
  %4849 = vmatprep.subr.bf16.mxu0 0
  %4850 = vmatpush1.bf16.msra.mxu0 0
  %4851 = vmatprep.subr.bf16.mxu0 0
  %4852 = vmatpush1.bf16.msra.mxu0 0
  %4853 = vmatprep.subr.bf16.mxu0 0
  %4854 = vmatpush1.bf16.msra.mxu0 0
  %4855 = vmatprep.subr.bf16.mxu0 0
  %4856 = vmatpush1.bf16.msra.mxu0 0
  %4857 = vmatprep.subr.bf16.mxu0 0
  %4858 = vmatpush1.bf16.msra.mxu0 0
  %4859 = vmatprep.subr.bf16.mxu0 0
  %4860 = vmatpush1.bf16.msra.mxu0 0
  %4861 = vmatprep.subr.bf16.mxu0 0
  %4862 = vmatpush1.bf16.msra.mxu0 0
  %4863 = vmatprep.subr.bf16.mxu0 0
  %4864 = vmatpush1.bf16.msra.mxu0 0
  %4865 = vmatprep.mubr.bf16.mxu0 0
  %4866 = vmatmul.mubr.bf16.gmra.mrb[0].mxu0 %v4831
  %v4867 = vpop.f32.mrb[0].mxu0
  %v4868 = vadd.f32 %v4795, %v4867
  %v4869 = vpop.f32.mrb[0].mxu0
  %v4870 = vpop.f32.mrb[0].mxu0
  %v4871 = vpop.f32.mrb[0].mxu0
  %4872 = vdwg.mxu0
  %s4873 = scalar_lea.vmem [#allocation6], 2
  %v4874 = vld [vmem:[%s4873] ss:$8 sm:$0xf]
  %v4875 = vld [vmem:[%s4873] ss:$8 sm:$0xf0]
  %v4876 = vor.u32 %v4874, %v4875
  %v4877 = vpack.c.bf16 %v4876, %v4876
  %s4878 = scalar_lea.vmem %s7, 80
  %v4879 = vld [vmem:[%s4878] sm:$0xf]
  %v4880 = vld [vmem:[%s4878 + $0x4] sm:$0xf]
  %v4881 = vld [vmem:[%s4878 + $0x8] sm:$0xf]
  %v4882 = vld [vmem:[%s4878 + $0xc] sm:$0xf]
  %v4883 = vld [vmem:[%s4878 + $0x10] sm:$0xf]
  %v4884 = vld [vmem:[%s4878 + $0x14] sm:$0xf]
  %v4885 = vld [vmem:[%s4878 + $0x18] sm:$0xf]
  %v4886 = vld [vmem:[%s4878 + $0x1c] sm:$0xf]
  %v4887 = vld [vmem:[%s4878 + $0x20] sm:$0xf]
  %v4888 = vld [vmem:[%s4878 + $0x24] sm:$0xf]
  %v4899 = vunpack.c.l.b16 %v4879
  %v4900 = vunpack.c.l.b16 %v4880
  %v4901 = vunpack.c.l.b16 %v4881
  %v4902 = vunpack.c.l.b16 %v4882
  %v4903 = vunpack.c.l.b16 %v4883
  %v4904 = vunpack.c.l.b16 %v4884
  %v4905 = vunpack.c.l.b16 %v4885
  %v4906 = vunpack.c.l.b16 %v4886
  %v4907 = vunpack.c.l.b16 %v4887
  %v4908 = vunpack.c.l.b16 %v4888
  %v4909 = vpack.c.b16 %v4900, %v4899
  %v4910 = vpack.c.b16 %v4902, %v4901
  %v4911 = vpack.c.b16 %v4904, %v4903
  %v4912 = vpack.c.b16 %v4906, %v4905
  %v4913 = vpack.c.b16 %v4908, %v4907
  %v4920 = vsel %vm4633, %v4877, 0
  %4922 = vmatprep.subr.bf16.mxu0 0
  %4923 = vmatpush1.bf16.msra.mxu0 %v4909
  %4924 = vmatprep.subr.bf16.mxu0 0
  %4925 = vmatpush1.bf16.msra.mxu0 %v4910
  %4926 = vmatprep.subr.bf16.mxu0 0
  %4927 = vmatpush1.bf16.msra.mxu0 %v4911
  %4928 = vmatprep.subr.bf16.mxu0 0
  %4929 = vmatpush1.bf16.msra.mxu0 %v4912
  %4930 = vmatprep.subr.bf16.mxu0 0
  %4931 = vmatpush1.bf16.msra.mxu0 %v4913
  %4932 = vmatprep.subr.bf16.mxu0 0
  %4933 = vmatpush1.bf16.msra.mxu0 0
  %4934 = vmatprep.subr.bf16.mxu0 0
  %4935 = vmatpush1.bf16.msra.mxu0 0
  %4936 = vmatprep.subr.bf16.mxu0 0
  %4937 = vmatpush1.bf16.msra.mxu0 0
  %4938 = vmatprep.subr.bf16.mxu0 0
  %4939 = vmatpush1.bf16.msra.mxu0 0
  %4940 = vmatprep.subr.bf16.mxu0 0
  %4941 = vmatpush1.bf16.msra.mxu0 0
  %4942 = vmatprep.subr.bf16.mxu0 0
  %4943 = vmatpush1.bf16.msra.mxu0 0
  %4944 = vmatprep.subr.bf16.mxu0 0
  %4945 = vmatpush1.bf16.msra.mxu0 0
  %4946 = vmatprep.subr.bf16.mxu0 0
  %4947 = vmatpush1.bf16.msra.mxu0 0
  %4948 = vmatprep.subr.bf16.mxu0 0
  %4949 = vmatpush1.bf16.msra.mxu0 0
  %4950 = vmatprep.subr.bf16.mxu0 0
  %4951 = vmatpush1.bf16.msra.mxu0 0
  %4952 = vmatprep.subr.bf16.mxu0 0
  %4953 = vmatpush1.bf16.msra.mxu0 0
  %4954 = vmatprep.mubr.bf16.mxu0 0
  %4955 = vmatmul.mubr.bf16.gmra.mrb[0].mxu0 %v4920
  %v4956 = vpop.f32.mrb[0].mxu0
  %v4957 = vadd.f32 0.0, %v4956
  %v4958 = vpop.f32.mrb[0].mxu0
  %v4959 = vpop.f32.mrb[0].mxu0
  %v4960 = vpop.f32.mrb[0].mxu0
  %4961 = vdwg.mxu0
  %v4962 = vadd.f32 %v4868, %v4957
  %s4963 = scalar_lea.vmem [#allocation6], 3
  %v4964 = vld [vmem:[%s4963] ss:$8 sm:$0xf]
  %v4965 = vld [vmem:[%s4963] ss:$8 sm:$0xf0]
  %v4966 = vor.u32 %v4964, %v4965
  %v4967 = vpack.c.bf16 %v4966, %v4966
  %s4968 = scalar_lea.vmem %s7, 120
  %v4969 = vld [vmem:[%s4968] sm:$0xf]
  %v4970 = vld [vmem:[%s4968 + $0x4] sm:$0xf]
  %v4971 = vld [vmem:[%s4968 + $0x8] sm:$0xf]
  %v4972 = vld [vmem:[%s4968 + $0xc] sm:$0xf]
  %v4973 = vld [vmem:[%s4968 + $0x10] sm:$0xf]
  %v4974 = vld [vmem:[%s4968 + $0x14] sm:$0xf]
  %v4975 = vld [vmem:[%s4968 + $0x18] sm:$0xf]
  %v4976 = vld [vmem:[%s4968 + $0x1c] sm:$0xf]
  %v4977 = vld [vmem:[%s4968 + $0x20] sm:$0xf]
  %v4978 = vld [vmem:[%s4968 + $0x24] sm:$0xf]
  %v4989 = vunpack.c.l.b16 %v4969
  %v4990 = vunpack.c.l.b16 %v4970
  %v4991 = vunpack.c.l.b16 %v4971
  %v4992 = vunpack.c.l.b16 %v4972
  %v4993 = vunpack.c.l.b16 %v4973
  %v4994 = vunpack.c.l.b16 %v4974
  %v4995 = vunpack.c.l.b16 %v4975
  %v4996 = vunpack.c.l.b16 %v4976
  %v4997 = vunpack.c.l.b16 %v4977
  %v4998 = vunpack.c.l.b16 %v4978
  %v4999 = vpack.c.b16 %v4990, %v4989
  %v5000 = vpack.c.b16 %v4992, %v4991
  %v5001 = vpack.c.b16 %v4994, %v4993
  %v5002 = vpack.c.b16 %v4996, %v4995
  %v5003 = vpack.c.b16 %v4998, %v4997
  %v5010 = vsel %vm4633, %v4967, 0
  %5012 = vmatprep.subr.bf16.mxu0 0
  %5013 = vmatpush1.bf16.msra.mxu0 %v4999
  %5014 = vmatprep.subr.bf16.mxu0 0
  %5015 = vmatpush1.bf16.msra.mxu0 %v5000
  %5016 = vmatprep.subr.bf16.mxu0 0
  %5017 = vmatpush1.bf16.msra.mxu0 %v5001
  %5018 = vmatprep.subr.bf16.mxu0 0
  %5019 = vmatpush1.bf16.msra.mxu0 %v5002
  %5020 = vmatprep.subr.bf16.mxu0 0
  %5021 = vmatpush1.bf16.msra.mxu0 %v5003
  %5022 = vmatprep.subr.bf16.mxu0 0
  %5023 = vmatpush1.bf16.msra.mxu0 0
  %5024 = vmatprep.subr.bf16.mxu0 0
  %5025 = vmatpush1.bf16.msra.mxu0 0
  %5026 = vmatprep.subr.bf16.mxu0 0
  %5027 = vmatpush1.bf16.msra.mxu0 0
  %5028 = vmatprep.subr.bf16.mxu0 0
  %5029 = vmatpush1.bf16.msra.mxu0 0
  %5030 = vmatprep.subr.bf16.mxu0 0
  %5031 = vmatpush1.bf16.msra.mxu0 0
  %5032 = vmatprep.subr.bf16.mxu0 0
  %5033 = vmatpush1.bf16.msra.mxu0 0
  %5034 = vmatprep.subr.bf16.mxu0 0
  %5035 = vmatpush1.bf16.msra.mxu0 0
  %5036 = vmatprep.subr.bf16.mxu0 0
  %5037 = vmatpush1.bf16.msra.mxu0 0
  %5038 = vmatprep.subr.bf16.mxu0 0
  %5039 = vmatpush1.bf16.msra.mxu0 0
  %5040 = vmatprep.subr.bf16.mxu0 0
  %5041 = vmatpush1.bf16.msra.mxu0 0
  %5042 = vmatprep.subr.bf16.mxu0 0
  %5043 = vmatpush1.bf16.msra.mxu0 0
  %5044 = vmatprep.mubr.bf16.mxu0 0
  %5045 = vmatmul.mubr.bf16.gmra.mrb[0].mxu0 %v5010
  %v5046 = vpop.f32.mrb[0].mxu0
  %v5047 = vadd.f32 0.0, %v5046
  %v5048 = vpop.f32.mrb[0].mxu0
  %v5049 = vpop.f32.mrb[0].mxu0
  %v5050 = vpop.f32.mrb[0].mxu0
  %5051 = vdwg.mxu0
  %v5052 = vadd.f32 %v4962, %v5047
  %s5053 = scalar_lea.vmem [#allocation6], 4
  %v5054 = vld [vmem:[%s5053] ss:$8 sm:$0xf]
  %v5055 = vld [vmem:[%s5053] ss:$8 sm:$0xf0]
  %v5056 = vor.u32 %v5054, %v5055
  %v5057 = vpack.c.bf16 %v5056, %v5056
  %s5058 = scalar_lea.vmem %s7, 160
  %v5059 = vld [vmem:[%s5058] sm:$0xf]
  %v5060 = vld [vmem:[%s5058 + $0x4] sm:$0xf]
  %v5061 = vld [vmem:[%s5058 + $0x8] sm:$0xf]
  %v5062 = vld [vmem:[%s5058 + $0xc] sm:$0xf]
  %v5063 = vld [vmem:[%s5058 + $0x10] sm:$0xf]
  %v5064 = vld [vmem:[%s5058 + $0x14] sm:$0xf]
  %v5065 = vld [vmem:[%s5058 + $0x18] sm:$0xf]
  %v5066 = vld [vmem:[%s5058 + $0x1c] sm:$0xf]
  %v5067 = vld [vmem:[%s5058 + $0x20] sm:$0xf]
  %v5068 = vld [vmem:[%s5058 + $0x24] sm:$0xf]
  %v5079 = vunpack.c.l.b16 %v5059
  %v5080 = vunpack.c.l.b16 %v5060
  %v5081 = vunpack.c.l.b16 %v5061
  %v5082 = vunpack.c.l.b16 %v5062
  %v5083 = vunpack.c.l.b16 %v5063
  %v5084 = vunpack.c.l.b16 %v5064
  %v5085 = vunpack.c.l.b16 %v5065
  %v5086 = vunpack.c.l.b16 %v5066
  %v5087 = vunpack.c.l.b16 %v5067
  %v5088 = vunpack.c.l.b16 %v5068
  %v5089 = vpack.c.b16 %v5080, %v5079
  %v5090 = vpack.c.b16 %v5082, %v5081
  %v5091 = vpack.c.b16 %v5084, %v5083
  %v5092 = vpack.c.b16 %v5086, %v5085
  %v5093 = vpack.c.b16 %v5088, %v5087
  %v5100 = vsel %vm4633, %v5057, 0
  %5102 = vmatprep.subr.bf16.mxu0 0
  %5103 = vmatpush1.bf16.msra.mxu0 %v5089
  %5104 = vmatprep.subr.bf16.mxu0 0
  %5105 = vmatpush1.bf16.msra.mxu0 %v5090
  %5106 = vmatprep.subr.bf16.mxu0 0
  %5107 = vmatpush1.bf16.msra.mxu0 %v5091
  %5108 = vmatprep.subr.bf16.mxu0 0
  %5109 = vmatpush1.bf16.msra.mxu0 %v5092
  %5110 = vmatprep.subr.bf16.mxu0 0
  %5111 = vmatpush1.bf16.msra.mxu0 %v5093
  %5112 = vmatprep.subr.bf16.mxu0 0
  %5113 = vmatpush1.bf16.msra.mxu0 0
  %5114 = vmatprep.subr.bf16.mxu0 0
  %5115 = vmatpush1.bf16.msra.mxu0 0
  %5116 = vmatprep.subr.bf16.mxu0 0
  %5117 = vmatpush1.bf16.msra.mxu0 0
  %5118 = vmatprep.subr.bf16.mxu0 0
  %5119 = vmatpush1.bf16.msra.mxu0 0
  %5120 = vmatprep.subr.bf16.mxu0 0
  %5121 = vmatpush1.bf16.msra.mxu0 0
  %5122 = vmatprep.subr.bf16.mxu0 0
  %5123 = vmatpush1.bf16.msra.mxu0 0
  %5124 = vmatprep.subr.bf16.mxu0 0
  %5125 = vmatpush1.bf16.msra.mxu0 0
  %5126 = vmatprep.subr.bf16.mxu0 0
  %5127 = vmatpush1.bf16.msra.mxu0 0
  %5128 = vmatprep.subr.bf16.mxu0 0
  %5129 = vmatpush1.bf16.msra.mxu0 0
  %5130 = vmatprep.subr.bf16.mxu0 0
  %5131 = vmatpush1.bf16.msra.mxu0 0
  %5132 = vmatprep.subr.bf16.mxu0 0
  %5133 = vmatpush1.bf16.msra.mxu0 0
  %5134 = vmatprep.mubr.bf16.mxu0 0
  %5135 = vmatmul.mubr.bf16.gmra.mrb[0].mxu0 %v5100
  %v5136 = vpop.f32.mrb[0].mxu0
  %v5137 = vadd.f32 0.0, %v5136
  %v5138 = vpop.f32.mrb[0].mxu0
  %v5139 = vpop.f32.mrb[0].mxu0
  %v5140 = vpop.f32.mrb[0].mxu0
  %5141 = vdwg.mxu0
  %v5142 = vadd.f32 %v5052, %v5137
  %v5143 = vld [vmem:[%s8] sm:$0x1]
  %v5145 = vlaneseq
  %v5146 = vshrl.u32 %v5145, 7
  %v5147 = vsub.s32 0, %v5146
  %v5148 = vrot.slane %v5143, %v5147
  %v5150 = vadd.f32 %v5142, %v5148
  %v5151 = vmax.f32 %v5150, 0.0
  %v5152 = vpack.c.bf16 %v5151, %v5151
  %v5153 = vld [vmem:[%s9] sm:$0xf]
  %v5154 = vld [vmem:[%s9 + $0x4] sm:$0xf]
  %v5155 = vld [vmem:[%s9 + $0x8] sm:$0xf]
  %v5156 = vld [vmem:[%s9 + $0xc] sm:$0xf]
  %v5157 = vld [vmem:[%s9 + $0x10] sm:$0xf]
  %v5158 = vld [vmem:[%s9 + $0x14] sm:$0xf]
  %v5159 = vld [vmem:[%s9 + $0x18] sm:$0xf]
  %v5160 = vld [vmem:[%s9 + $0x1c] sm:$0xf]
  %v5161 = vld [vmem:[%s9 + $0x20] sm:$0xf]
  %v5162 = vld [vmem:[%s9 + $0x24] sm:$0xf]
  %v5163 = vld [vmem:[%s9 + $0x28] sm:$0xf]
  %v5164 = vld [vmem:[%s9 + $0x2c] sm:$0xf]
  %v5165 = vld [vmem:[%s9 + $0x30] sm:$0xf]
  %v5166 = vld [vmem:[%s9 + $0x34] sm:$0xf]
  %v5167 = vld [vmem:[%s9 + $0x38] sm:$0xf]
  %v5168 = vld [vmem:[%s9 + $0x3c] sm:$0xf]
  %v5169 = vld [vmem:[%s10] sm:$0x1]
  %v5171 = vlaneseq
  %v5172 = vshrl.u32 %v5171, 7
  %v5173 = vsub.s32 0, %v5172
  %v5174 = vrot.slane %v5169, %v5173
  %v5192 = vunpack.c.l.b16 %v5153
  %v5193 = vunpack.c.l.b16 %v5154
  %v5194 = vunpack.c.l.b16 %v5155
  %v5195 = vunpack.c.l.b16 %v5156
  %v5196 = vunpack.c.l.b16 %v5157
  %v5197 = vunpack.c.l.b16 %v5158
  %v5198 = vunpack.c.l.b16 %v5159
  %v5199 = vunpack.c.l.b16 %v5160
  %v5200 = vunpack.c.l.b16 %v5161
  %v5201 = vunpack.c.l.b16 %v5162
  %v5202 = vunpack.c.l.b16 %v5163
  %v5203 = vunpack.c.l.b16 %v5164
  %v5204 = vunpack.c.l.b16 %v5165
  %v5205 = vunpack.c.l.b16 %v5166
  %v5206 = vunpack.c.l.b16 %v5167
  %v5207 = vunpack.c.l.b16 %v5168
  %v5208 = vpack.c.b16 %v5193, %v5192
  %v5209 = vpack.c.b16 %v5195, %v5194
  %v5210 = vpack.c.b16 %v5197, %v5196
  %v5211 = vpack.c.b16 %v5199, %v5198
  %v5212 = vpack.c.b16 %v5201, %v5200
  %v5213 = vpack.c.b16 %v5203, %v5202
  %v5214 = vpack.c.b16 %v5205, %v5204
  %v5215 = vpack.c.b16 %v5207, %v5206
  %5224 = vmatprep.subr.bf16.mxu0 0
  %5225 = vmatpush1.bf16.msra.mxu0 %v5208
  %5226 = vmatprep.subr.bf16.mxu0 0
  %5227 = vmatpush1.bf16.msra.mxu0 %v5209
  %5228 = vmatprep.subr.bf16.mxu0 0
  %5229 = vmatpush1.bf16.msra.mxu0 %v5210
  %5230 = vmatprep.subr.bf16.mxu0 0
  %5231 = vmatpush1.bf16.msra.mxu0 %v5211
  %5232 = vmatprep.subr.bf16.mxu0 0
  %5233 = vmatpush1.bf16.msra.mxu0 %v5212
  %5234 = vmatprep.subr.bf16.mxu0 0
  %5235 = vmatpush1.bf16.msra.mxu0 %v5213
  %5236 = vmatprep.subr.bf16.mxu0 0
  %5237 = vmatpush1.bf16.msra.mxu0 %v5214
  %5238 = vmatprep.subr.bf16.mxu0 0
  %5239 = vmatpush1.bf16.msra.mxu0 %v5215
  %5240 = vmatprep.subr.bf16.mxu0 0
  %5241 = vmatpush1.bf16.msra.mxu0 0
  %5242 = vmatprep.subr.bf16.mxu0 0
  %5243 = vmatpush1.bf16.msra.mxu0 0
  %5244 = vmatprep.subr.bf16.mxu0 0
  %5245 = vmatpush1.bf16.msra.mxu0 0
  %5246 = vmatprep.subr.bf16.mxu0 0
  %5247 = vmatpush1.bf16.msra.mxu0 0
  %5248 = vmatprep.subr.bf16.mxu0 0
  %5249 = vmatpush1.bf16.msra.mxu0 0
  %5250 = vmatprep.subr.bf16.mxu0 0
  %5251 = vmatpush1.bf16.msra.mxu0 0
  %5252 = vmatprep.subr.bf16.mxu0 0
  %5253 = vmatpush1.bf16.msra.mxu0 0
  %5254 = vmatprep.subr.bf16.mxu0 0
  %5255 = vmatpush1.bf16.msra.mxu0 0
  %5256 = vmatprep.mubr.bf16.mxu0 0
  %5257 = vmatmul.mubr.bf16.gmra.mrb[0].mxu0 %v5152
  %v5258 = vpop.f32.mrb[0].mxu0
  %v5259 = vadd.f32 %v5174, %v5258
  %v5260 = vpop.f32.mrb[0].mxu0
  %v5261 = vpop.f32.mrb[0].mxu0
  %v5262 = vpop.f32.mrb[0].mxu0
  %5263 = vdwg.mxu0
  %v5264 = vmax.f32 %v5259, 0.0
  %v5265 = vpack.c.bf16 %v5264, %v5264
  %v5266 = vld [vmem:[%s11] sm:$0xf]
  %v5267 = vld [vmem:[%s11 + $0x4] sm:$0xf]
  %v5268 = vld [vmem:[%s11 + $0x8] sm:$0xf]
  %v5269 = vld [vmem:[%s11 + $0xc] sm:$0xf]
  %v5270 = vld [vmem:[%s11 + $0x10] sm:$0xf]
  %v5271 = vld [vmem:[%s11 + $0x14] sm:$0xf]
  %v5272 = vld [vmem:[%s11 + $0x18] sm:$0xf]
  %v5273 = vld [vmem:[%s11 + $0x1c] sm:$0xf]
  %v5274 = vld [vmem:[%s11 + $0x20] sm:$0xf]
  %v5275 = vld [vmem:[%s11 + $0x24] sm:$0xf]
  %v5276 = vld [vmem:[%s11 + $0x28] sm:$0xf]
  %v5277 = vld [vmem:[%s11 + $0x2c] sm:$0xf]
  %v5278 = vld [vmem:[%s11 + $0x30] sm:$0xf]
  %v5279 = vld [vmem:[%s11 + $0x34] sm:$0xf]
  %v5280 = vld [vmem:[%s11 + $0x38] sm:$0xf]
  %v5281 = vld [vmem:[%s11 + $0x3c] sm:$0xf]
  %v5282 = vld [vmem:[%s12] sm:$0x1]
  %v5284 = vlaneseq
  %v5285 = vshrl.u32 %v5284, 7
  %v5286 = vsub.s32 0, %v5285
  %v5287 = vrot.slane %v5282, %v5286
  %v5305 = vunpack.c.l.b16 %v5266
  %v5306 = vunpack.c.l.b16 %v5267
  %v5307 = vunpack.c.l.b16 %v5268
  %v5308 = vunpack.c.l.b16 %v5269
  %v5309 = vunpack.c.l.b16 %v5270
  %v5310 = vunpack.c.l.b16 %v5271
  %v5311 = vunpack.c.l.b16 %v5272
  %v5312 = vunpack.c.l.b16 %v5273
  %v5313 = vunpack.c.l.b16 %v5274
  %v5314 = vunpack.c.l.b16 %v5275
  %v5315 = vunpack.c.l.b16 %v5276
  %v5316 = vunpack.c.l.b16 %v5277
  %v5317 = vunpack.c.l.b16 %v5278
  %v5318 = vunpack.c.l.b16 %v5279
  %v5319 = vunpack.c.l.b16 %v5280
  %v5320 = vunpack.c.l.b16 %v5281
  %v5321 = vpack.c.b16 %v5306, %v5305
  %v5322 = vpack.c.b16 %v5308, %v5307
  %v5323 = vpack.c.b16 %v5310, %v5309
  %v5324 = vpack.c.b16 %v5312, %v5311
  %v5325 = vpack.c.b16 %v5314, %v5313
  %v5326 = vpack.c.b16 %v5316, %v5315
  %v5327 = vpack.c.b16 %v5318, %v5317
  %v5328 = vpack.c.b16 %v5320, %v5319
  %5337 = vmatprep.subr.bf16.mxu0 0
  %5338 = vmatpush1.bf16.msra.mxu0 %v5321
  %5339 = vmatprep.subr.bf16.mxu0 0
  %5340 = vmatpush1.bf16.msra.mxu0 %v5322
  %5341 = vmatprep.subr.bf16.mxu0 0
  %5342 = vmatpush1.bf16.msra.mxu0 %v5323
  %5343 = vmatprep.subr.bf16.mxu0 0
  %5344 = vmatpush1.bf16.msra.mxu0 %v5324
  %5345 = vmatprep.subr.bf16.mxu0 0
  %5346 = vmatpush1.bf16.msra.mxu0 %v5325
  %5347 = vmatprep.subr.bf16.mxu0 0
  %5348 = vmatpush1.bf16.msra.mxu0 %v5326
  %5349 = vmatprep.subr.bf16.mxu0 0
  %5350 = vmatpush1.bf16.msra.mxu0 %v5327
  %5351 = vmatprep.subr.bf16.mxu0 0
  %5352 = vmatpush1.bf16.msra.mxu0 %v5328
  %5353 = vmatprep.subr.bf16.mxu0 0
  %5354 = vmatpush1.bf16.msra.mxu0 0
  %5355 = vmatprep.subr.bf16.mxu0 0
  %5356 = vmatpush1.bf16.msra.mxu0 0
  %5357 = vmatprep.subr.bf16.mxu0 0
  %5358 = vmatpush1.bf16.msra.mxu0 0
  %5359 = vmatprep.subr.bf16.mxu0 0
  %5360 = vmatpush1.bf16.msra.mxu0 0
  %5361 = vmatprep.subr.bf16.mxu0 0
  %5362 = vmatpush1.bf16.msra.mxu0 0
  %5363 = vmatprep.subr.bf16.mxu0 0
  %5364 = vmatpush1.bf16.msra.mxu0 0
  %5365 = vmatprep.subr.bf16.mxu0 0
  %5366 = vmatpush1.bf16.msra.mxu0 0
  %5367 = vmatprep.subr.bf16.mxu0 0
  %5368 = vmatpush1.bf16.msra.mxu0 0
  %5369 = vmatprep.mubr.bf16.mxu0 0
  %5370 = vmatmul.mubr.bf16.gmra.mrb[0].mxu0 %v5265
  %v5371 = vpop.f32.mrb[0].mxu0
  %v5372 = vadd.f32 %v5287, %v5371
  %v5373 = vpop.f32.mrb[0].mxu0
  %v5374 = vpop.f32.mrb[0].mxu0
  %v5375 = vpop.f32.mrb[0].mxu0
  %5376 = vdwg.mxu0
  %5377 = vst [vmem:[%s13] sm:$0xff] %v5372
  // Predicated region
  $region54: #{lenet_forward.1} parent=0 // pred_check
    _
  $region55: #{lenet_forward.1} parent=0 // pred_check_branch
    %5379 = sbr.rel (0) target = $region57
  $region56: #{lenet_forward.1} parent=0 // pred_region
    _
  $region57: #{lenet_forward.1} parent=0 // pred_fallthru
    _
  // Predicated region
  $region58: #{lenet_forward.1} parent=0 // pred_check
    _
  $region59: #{lenet_forward.1} parent=0 // pred_check_branch
    %5381 = sbr.rel (0) target = $region61
  $region60: #{lenet_forward.1} parent=0 // pred_region
    _
  $region61: #{lenet_forward.1} parent=0 // pred_fallthru
    _

</llo_original>
